<compile_context>
chip_gen: v7x
topology: tpu7x:2x2x1
jax: 0.10.0
libtpu: 0.0.40
codegen_flags: <defaults>
</compile_context>

<pallas_src>
import jax
import jax.numpy as jnp
from jax.experimental import pallas as pl
from jax.experimental.pallas import tpu as pltpu

LANE = 128
TM = 256  # row tile for large batch (multiple of 256 keeps v6e/v7x MXU fed)


def _round_up(x, m):
    return ((x + m - 1) // m) * m


def _row_tiling(B):
    """Return (padded_rows, row_tile)."""
    if B <= TM:
        # Single block equal to the full array dims: always layout-legal,
        # needs no padding, grid of 1.
        return B, B
    return _round_up(B, TM), TM


# ----------------------------------------------------------------------------
# One-time parameter preparation (hoisted out of the forward path).
# ----------------------------------------------------------------------------
def prepare_params(params, labels_count):
    L = labels_count
    Lp = _round_up(max(L, LANE), LANE)  # lane-dense padded label width
    w3 = params["w3"].astype(jnp.float32)
    b3 = params["b3"].astype(jnp.float32)
    # Padded label columns carry a -1e30 bias (kept in f32!) so exp() == 0 and
    # the softmax normalization over the padded block equals the real softmax.
    w3p = jnp.zeros((w3.shape[0], Lp), jnp.float32).at[:, :L].set(w3)
    b3p = jnp.full((1, Lp), -1e30, jnp.float32).at[0, :L].set(b3)
    return {
        "ffn_w": params["ffn_w"].astype(jnp.bfloat16),
        "ffn_b": params["ffn_b"].reshape(1, -1).astype(jnp.float32),
        "w1": params["w1"].astype(jnp.bfloat16),
        "b1": params["b1"].reshape(1, -1).astype(jnp.float32),
        "w2": params["w2"].astype(jnp.bfloat16),
        "b2": params["b2"].reshape(1, -1).astype(jnp.float32),
        "w3p": w3p.astype(jnp.bfloat16),
        "b3p": b3p,                      # stays f32 (safe -1e30 padding)
        "labels_count": L,
        "labels_padded": Lp,
    }


# ----------------------------------------------------------------------------
# Fused kernel:
#   ffn Linear(768,1024) -> [qwen passthrough] ->
#   Linear(1024,256) -> ReLU -> Linear(256,256) -> ReLU -> Linear(256,Lp)
#   -> softmax over the lane-dense padded label axis.
# bf16 into the MXU, f32 accumulation (preferred_element_type) + f32 epilogue.
# ----------------------------------------------------------------------------
def fused_mlp_kernel(x_ref, wf_ref, bf_ref, w1_ref, b1_ref,
                     w2_ref, b2_ref, w3_ref, b3_ref, o_ref):
    xb = x_ref[...].astype(jnp.bfloat16)                 # in-kernel cast (no XLA op)
    h = jnp.dot(xb, wf_ref[...], preferred_element_type=jnp.float32) + bf_ref[...]
    # TODO(synk): pretrained Qwen stage is a passthrough on the hidden states.
    h = jnp.dot(h.astype(jnp.bfloat16), w1_ref[...],
                preferred_element_type=jnp.float32) + b1_ref[...]
    h = jnp.maximum(h, 0.0)
    h = jnp.dot(h.astype(jnp.bfloat16), w2_ref[...],
                preferred_element_type=jnp.float32) + b2_ref[...]
    h = jnp.maximum(h, 0.0)
    logits = jnp.dot(h.astype(jnp.bfloat16), w3_ref[...],
                     preferred_element_type=jnp.float32) + b3_ref[...]
    # Softmax (padded columns have -1e30 bias in f32 -> exp == 0).
    m = jnp.max(logits, axis=1, keepdims=True)
    e = jnp.exp(logits - m)
    denom = jnp.sum(e, axis=1, keepdims=True)
    o_ref[...] = e * pl.reciprocal(denom, approx=False)  # exact: rows sum to 1


# ----------------------------------------------------------------------------
# Forward pass of BertQwenMLP (single Pallas call on the matmul hot path).
# ----------------------------------------------------------------------------
def bert_qwen_mlp_forward(bert_sequence_output, prepped):
    """bert_sequence_output: (B, S, 768) f32 — stand-in for BERT's sequence output."""
    # TODO(synk): pretrained BertModel has no clean Pallas equivalent; the
    # kernel consumes its (B, S, 768) sequence output directly.
    # TODO(synk): the Qwen (AutoModelForSequenceClassification) stack is
    # treated as a passthrough on the hidden states, so only the CLS row feeds
    # the head and the ffn is applied to that single row per example
    # (identical downstream result, S-fold fewer FLOPs / HBM bytes).
    B = bert_sequence_output.shape[0]
    L = prepped["labels_count"]
    Lp = prepped["labels_padded"]

    cls = bert_sequence_output[:, 0, :]                  # (B, 768) f32
    b_pad, tm = _row_tiling(B)
    if b_pad != B:
        cls = jnp.pad(cls, ((0, b_pad - B), (0, 0)))     # only for large ragged B

    K, H = prepped["ffn_w"].shape                        # 768, 1024
    Dm = prepped["w1"].shape[1]                          # 256

    flops = 2 * b_pad * (K * H + H * Dm + Dm * Dm + Dm * Lp)
    bytes_accessed = (
        b_pad * K * 4                                            # streamed CLS rows (f32)
        + 2 * (K * H + H * Dm + Dm * Dm + Dm * Lp)               # bf16 weights
        + 4 * (H + 2 * Dm + Lp)                                  # f32 biases
        + b_pad * Lp * 4                                         # f32 probs out
    )

    def resident(shape):                                  # VMEM-resident block
        return pl.BlockSpec(shape, lambda i: (0, 0))

    probs = pl.pallas_call(
        fused_mlp_kernel,
        out_shape=jax.ShapeDtypeStruct((b_pad, Lp), jnp.float32),
        grid=(b_pad // tm,),
        in_specs=[
            pl.BlockSpec((tm, K), lambda i: (i, 0)),      # streamed CLS row tile
            resident((K, H)), resident((1, H)),           # ffn  W, b
            resident((H, Dm)), resident((1, Dm)),         # mlp layer 1
            resident((Dm, Dm)), resident((1, Dm)),        # mlp layer 2
            resident((Dm, Lp)), resident((1, Lp)),        # mlp layer 3 (lane-padded)
        ],
        out_specs=pl.BlockSpec((tm, Lp), lambda i: (i, 0)),
        compiler_params=pltpu.CompilerParams(
            dimension_semantics=("parallel",)),
        cost_estimate=pl.CostEstimate(
            flops=int(flops),
            transcendentals=int(b_pad * Lp),
            bytes_accessed=int(bytes_accessed)),
    )(
        cls,
        prepped["ffn_w"], prepped["ffn_b"],
        prepped["w1"], prepped["b1"],
        prepped["w2"], prepped["b2"],
        prepped["w3p"], prepped["b3p"],
    )
    return probs[:B, :L]


# ----------------------------------------------------------------------------
# Deterministic parameter init, pure-JAX reference, smoke test.
# ----------------------------------------------------------------------------
def init_params(key, hidden_dim=1024, mlp_dim=256, labels_count=4):
    ks = jax.random.split(key, 7)
    scale = 0.02
    return {
        "ffn_w": scale * jax.random.normal(ks[0], (768, hidden_dim), jnp.float32),
        "ffn_b": scale * jax.random.normal(ks[1], (hidden_dim,), jnp.float32),
        "w1": scale * jax.random.normal(ks[2], (hidden_dim, mlp_dim), jnp.float32),
        "b1": scale * jax.random.normal(ks[3], (mlp_dim,), jnp.float32),
        "w2": scale * jax.random.normal(ks[4], (mlp_dim, mlp_dim), jnp.float32),
        "b2": scale * jax.random.normal(ks[5], (mlp_dim,), jnp.float32),
        "w3": scale * jax.random.normal(ks[6], (mlp_dim, labels_count), jnp.float32),
        "b3": jnp.zeros((labels_count,), jnp.float32),
    }


def reference_forward(x_seq, params):
    cls = x_seq[:, 0, :]
    h = cls @ params["ffn_w"] + params["ffn_b"]
    h = jnp.maximum(h @ params["w1"] + params["b1"], 0.0)
    h = jnp.maximum(h @ params["w2"] + params["b2"], 0.0)
    logits = h @ params["w3"] + params["b3"]
    return jax.nn.softmax(logits, axis=1)


if __name__ == "__main__":
    key = jax.random.PRNGKey(0)
    k_x, k_p = jax.random.split(key)

    B, S, D = 2, 8, 768          # small shapes consistent with the forward pass
    labels_count = 4

    x = jax.random.normal(k_x, (B, S, D), jnp.float32)   # BERT sequence-output stand-in
    raw_params = init_params(k_p, hidden_dim=1024, mlp_dim=256,
                             labels_count=labels_count)
    prepped = prepare_params(raw_params, labels_count)   # one-time cast/pad hoist

    fwd = jax.jit(lambda xx: bert_qwen_mlp_forward(xx, prepped))
    out = jax.block_until_ready(fwd(x))

    assert out.shape == (B, labels_count)
    # softmax rows sum to 1 (exact reciprocal; bf16 matmul inputs -> loose tol)
    assert bool(jnp.all(jnp.abs(jnp.sum(out, axis=1) - 1.0) < 1e-3))
    # match the f32 pure-JAX reference to bf16-matmul tolerance
    ref = reference_forward(x, raw_params)
    assert bool(jnp.all(jnp.abs(out - ref) < 5e-2))

    print("KERNEL_OK")
</pallas_src>

<mosaic_0001>
module attributes {stable_mosaic.version = 11 : i64} {
  func.func @fused_mlp_kernel(%arg0: i32, %arg1: memref<2x768xf32, #tpu.memory_space<vmem>>, %arg2: memref<768x1024xbf16, #tpu.memory_space<vmem>>, %arg3: memref<1x1024xf32, #tpu.memory_space<vmem>>, %arg4: memref<1024x256xbf16, #tpu.memory_space<vmem>>, %arg5: memref<1x256xf32, #tpu.memory_space<vmem>>, %arg6: memref<256x256xbf16, #tpu.memory_space<vmem>>, %arg7: memref<1x256xf32, #tpu.memory_space<vmem>>, %arg8: memref<256x128xbf16, #tpu.memory_space<vmem>>, %arg9: memref<1x128xf32, #tpu.memory_space<vmem>>, %arg10: memref<2x128xf32, #tpu.memory_space<vmem>>) attributes {dimension_semantics = [#tpu.dimension_semantics<parallel>], iteration_bounds = array<i64: 1>, scalar_prefetch = 0 : i64, scratch_operands = 0 : i64, tpu.core_type = #tpu.core_type<tc>, window_params = [{transform_indices = @transform_0, window_bounds = array<i64: 2, 768>}, {pipeline_mode = #tpu.pipeline_mode<synchronous>, transform_indices = @transform_1, window_bounds = array<i64: 768, 1024>}, {pipeline_mode = #tpu.pipeline_mode<synchronous>, transform_indices = @transform_2, window_bounds = array<i64: 1, 1024>}, {pipeline_mode = #tpu.pipeline_mode<synchronous>, transform_indices = @transform_3, window_bounds = array<i64: 1024, 256>}, {pipeline_mode = #tpu.pipeline_mode<synchronous>, transform_indices = @transform_4, window_bounds = array<i64: 1, 256>}, {pipeline_mode = #tpu.pipeline_mode<synchronous>, transform_indices = @transform_5, window_bounds = array<i64: 256, 256>}, {pipeline_mode = #tpu.pipeline_mode<synchronous>, transform_indices = @transform_6, window_bounds = array<i64: 1, 256>}, {pipeline_mode = #tpu.pipeline_mode<synchronous>, transform_indices = @transform_7, window_bounds = array<i64: 256, 128>}, {pipeline_mode = #tpu.pipeline_mode<synchronous>, transform_indices = @transform_8, window_bounds = array<i64: 1, 128>}, {transform_indices = @transform_9, window_bounds = array<i64: 2, 128>}]} {
    %c0 = arith.constant 0 : index
    %c0_0 = arith.constant 0 : index
    %0 = vector.load %arg1[%c0, %c0_0] : memref<2x768xf32, #tpu.memory_space<vmem>>, vector<2x768xf32>
    %1 = arith.truncf %0 : vector<2x768xf32> to vector<2x768xbf16>
    %c0_1 = arith.constant 0 : index
    %c0_2 = arith.constant 0 : index
    %2 = vector.load %arg2[%c0_1, %c0_2] : memref<768x1024xbf16, #tpu.memory_space<vmem>>, vector<768x1024xbf16>
    %cst = arith.constant dense<0.000000e+00> : vector<2x1024xf32>
    %3 = tpu.matmul %1, %2, %cst {dimension_numbers = #tpu.dot_dimension_numbers<[1], [0], [0], [1], [0, 0, 1, 1], [], []>} : vector<2x768xbf16>, vector<768x1024xbf16>, vector<2x1024xf32> -> vector<2x1024xf32>
    %c0_3 = arith.constant 0 : index
    %c0_4 = arith.constant 0 : index
    %4 = vector.load %arg3[%c0_3, %c0_4] : memref<1x1024xf32, #tpu.memory_space<vmem>>, vector<1x1024xf32>
    %5 = vector.broadcast %4 : vector<1x1024xf32> to vector<2x1024xf32>
    %6 = arith.addf %3, %5 : vector<2x1024xf32>
    %7 = arith.truncf %6 : vector<2x1024xf32> to vector<2x1024xbf16>
    %c0_5 = arith.constant 0 : index
    %c0_6 = arith.constant 0 : index
    %8 = vector.load %arg4[%c0_5, %c0_6] : memref<1024x256xbf16, #tpu.memory_space<vmem>>, vector<1024x256xbf16>
    %cst_7 = arith.constant dense<0.000000e+00> : vector<2x256xf32>
    %9 = tpu.matmul %7, %8, %cst_7 {dimension_numbers = #tpu.dot_dimension_numbers<[1], [0], [0], [1], [0, 0, 1, 1], [], []>} : vector<2x1024xbf16>, vector<1024x256xbf16>, vector<2x256xf32> -> vector<2x256xf32>
    %c0_8 = arith.constant 0 : index
    %c0_9 = arith.constant 0 : index
    %10 = vector.load %arg5[%c0_8, %c0_9] : memref<1x256xf32, #tpu.memory_space<vmem>>, vector<1x256xf32>
    %11 = vector.broadcast %10 : vector<1x256xf32> to vector<2x256xf32>
    %12 = arith.addf %9, %11 : vector<2x256xf32>
    %cst_10 = arith.constant 0.000000e+00 : f32
    %13 = vector.broadcast %cst_10 : f32 to vector<2x256xf32>
    %14 = arith.maximumf %12, %13 : vector<2x256xf32>
    %15 = arith.truncf %14 : vector<2x256xf32> to vector<2x256xbf16>
    %c0_11 = arith.constant 0 : index
    %c0_12 = arith.constant 0 : index
    %16 = vector.load %arg6[%c0_11, %c0_12] : memref<256x256xbf16, #tpu.memory_space<vmem>>, vector<256x256xbf16>
    %cst_13 = arith.constant dense<0.000000e+00> : vector<2x256xf32>
    %17 = tpu.matmul %15, %16, %cst_13 {dimension_numbers = #tpu.dot_dimension_numbers<[1], [0], [0], [1], [0, 0, 1, 1], [], []>} : vector<2x256xbf16>, vector<256x256xbf16>, vector<2x256xf32> -> vector<2x256xf32>
    %c0_14 = arith.constant 0 : index
    %c0_15 = arith.constant 0 : index
    %18 = vector.load %arg7[%c0_14, %c0_15] : memref<1x256xf32, #tpu.memory_space<vmem>>, vector<1x256xf32>
    %19 = vector.broadcast %18 : vector<1x256xf32> to vector<2x256xf32>
    %20 = arith.addf %17, %19 : vector<2x256xf32>
    %cst_16 = arith.constant 0.000000e+00 : f32
    %21 = vector.broadcast %cst_16 : f32 to vector<2x256xf32>
    %22 = arith.maximumf %20, %21 : vector<2x256xf32>
    %23 = arith.truncf %22 : vector<2x256xf32> to vector<2x256xbf16>
    %c0_17 = arith.constant 0 : index
    %c0_18 = arith.constant 0 : index
    %24 = vector.load %arg8[%c0_17, %c0_18] : memref<256x128xbf16, #tpu.memory_space<vmem>>, vector<256x128xbf16>
    %cst_19 = arith.constant dense<0.000000e+00> : vector<2x128xf32>
    %25 = tpu.matmul %23, %24, %cst_19 {dimension_numbers = #tpu.dot_dimension_numbers<[1], [0], [0], [1], [0, 0, 1, 1], [], []>} : vector<2x256xbf16>, vector<256x128xbf16>, vector<2x128xf32> -> vector<2x128xf32>
    %c0_20 = arith.constant 0 : index
    %c0_21 = arith.constant 0 : index
    %26 = vector.load %arg9[%c0_20, %c0_21] : memref<1x128xf32, #tpu.memory_space<vmem>>, vector<1x128xf32>
    %27 = vector.broadcast %26 : vector<1x128xf32> to vector<2x128xf32>
    %28 = arith.addf %25, %27 : vector<2x128xf32>
    %cst_22 = arith.constant dense<0xFF800000> : vector<2xf32>
    %29 = vector.multi_reduction <maximumf>, %28, %cst_22 [1] : vector<2x128xf32> to vector<2xf32>
    %30 = vector.shape_cast %29 : vector<2xf32> to vector<2x1xf32>
    %31 = vector.broadcast %30 : vector<2x1xf32> to vector<2x128xf32>
    %32 = arith.subf %28, %31 : vector<2x128xf32>
    %33 = math.exp %32 : vector<2x128xf32>
    %cst_23 = arith.constant dense<0.000000e+00> : vector<2xf32>
    %34 = vector.multi_reduction <add>, %33, %cst_23 [1] : vector<2x128xf32> to vector<2xf32>
    %35 = vector.shape_cast %34 : vector<2xf32> to vector<2x1xf32>
    %36 = tpu.reciprocal %35 : vector<2x1xf32> -> vector<2x1xf32>
    %37 = vector.broadcast %36 : vector<2x1xf32> to vector<2x128xf32>
    %38 = arith.mulf %33, %37 : vector<2x128xf32>
    %c0_24 = arith.constant 0 : index
    %c0_25 = arith.constant 0 : index
    %39 = vector.load %arg10[%c0_24, %c0_25] : memref<2x128xf32, #tpu.memory_space<vmem>>, vector<2x128xf32>
    tpu.vector_store %arg10[%c0_24, %c0_25], %38 {strides = array<i32>} : memref<2x128xf32, #tpu.memory_space<vmem>>, vector<2x128xf32>,
    return
  }
  func.func @transform_0(%arg0: i32) -> (i32, i32) {
    %c0_i32 = arith.constant 0 : i32
    %c0_i32_0 = arith.constant 0 : i32
    return %arg0, %c0_i32 : i32, i32
  }
  func.func @transform_1(%arg0: i32) -> (i32, i32) {
    %c0_i32 = arith.constant 0 : i32
    %c0_i32_0 = arith.constant 0 : i32
    %c0_i32_1 = arith.constant 0 : i32
    return %c0_i32, %c0_i32_0 : i32, i32
  }
  func.func @transform_2(%arg0: i32) -> (i32, i32) {
    %c0_i32 = arith.constant 0 : i32
    %c0_i32_0 = arith.constant 0 : i32
    %c0_i32_1 = arith.constant 0 : i32
    return %c0_i32, %c0_i32_0 : i32, i32
  }
  func.func @transform_3(%arg0: i32) -> (i32, i32) {
    %c0_i32 = arith.constant 0 : i32
    %c0_i32_0 = arith.constant 0 : i32
    %c0_i32_1 = arith.constant 0 : i32
    return %c0_i32, %c0_i32_0 : i32, i32
  }
  func.func @transform_4(%arg0: i32) -> (i32, i32) {
    %c0_i32 = arith.constant 0 : i32
    %c0_i32_0 = arith.constant 0 : i32
    %c0_i32_1 = arith.constant 0 : i32
    return %c0_i32, %c0_i32_0 : i32, i32
  }
  func.func @transform_5(%arg0: i32) -> (i32, i32) {
    %c0_i32 = arith.constant 0 : i32
    %c0_i32_0 = arith.constant 0 : i32
    %c0_i32_1 = arith.constant 0 : i32
    return %c0_i32, %c0_i32_0 : i32, i32
  }
  func.func @transform_6(%arg0: i32) -> (i32, i32) {
    %c0_i32 = arith.constant 0 : i32
    %c0_i32_0 = arith.constant 0 : i32
    %c0_i32_1 = arith.constant 0 : i32
    return %c0_i32, %c0_i32_0 : i32, i32
  }
  func.func @transform_7(%arg0: i32) -> (i32, i32) {
    %c0_i32 = arith.constant 0 : i32
    %c0_i32_0 = arith.constant 0 : i32
    %c0_i32_1 = arith.constant 0 : i32
    return %c0_i32, %c0_i32_0 : i32, i32
  }
  func.func @transform_8(%arg0: i32) -> (i32, i32) {
    %c0_i32 = arith.constant 0 : i32
    %c0_i32_0 = arith.constant 0 : i32
    %c0_i32_1 = arith.constant 0 : i32
    return %c0_i32, %c0_i32_0 : i32, i32
  }
  func.func @transform_9(%arg0: i32) -> (i32, i32) {
    %c0_i32 = arith.constant 0 : i32
    %c0_i32_0 = arith.constant 0 : i32
    return %arg0, %c0_i32 : i32, i32
  }
}

</mosaic_0001>

<llo_original>
// kernel: _lambda_.1
$region0: #{_lambda_.1}
  #allocation0 [shape = 'u32[]', space=smem, size = 0x4, offset = 0x4, fixed_abs, tag = 'smem constant byte address 0x4 - core index']
  #allocation1 [shape = 'u32[144,128]{1,0:T(1,128)}', space=vmem, size = 0x12000, scoped, tag = 'internal scratch']
  %s0 = inlined_call_operand.vmem [shape: f32[2,768], index: 0, kind: input, shape index: {}]
  %s1 = inlined_call_operand.vmem [shape: bf16[768,1024], index: 1, kind: input, shape index: {}]
  %s2 = inlined_call_operand.vmem [shape: f32[1,1024], index: 2, kind: input, shape index: {}]
  %s3 = inlined_call_operand.vmem [shape: bf16[1024,256], index: 3, kind: input, shape index: {}]
  %s4 = inlined_call_operand.vmem [shape: f32[1,256], index: 4, kind: input, shape index: {}]
  %s5 = inlined_call_operand.vmem [shape: bf16[256,256], index: 5, kind: input, shape index: {}]
  %s6 = inlined_call_operand.vmem [shape: f32[1,256], index: 6, kind: input, shape index: {}]
  %s7 = inlined_call_operand.vmem [shape: bf16[256,128], index: 7, kind: input, shape index: {}]
  %s8 = inlined_call_operand.vmem [shape: f32[1,128], index: 8, kind: input, shape index: {}]
  %s9 = inlined_call_operand.hbm [shape: f32[2,128], index: 9, kind: output, shape index: {}]
  %s10 = sld [smem:[#allocation0]]
  $region46: #{_lambda_.1} parent=0
    _
  %s12 = ssub.s32 1, %s10
  %s13 = scalar_select 0, %s12, %s10
  $region1: #{_lambda_.1} parent=0
    #allocation2 [shape = 'u8[1024]{0}', space=vmem, size = 0x400, scoped, tag = 'output window, operand 0, single buffered']
    #allocation3 [shape = 's32[1]{0}', space=sflag, size = 0x4, scoped, tag = 'scoped memory for _lambda_.1']
    %14 = vsyncpa [#allocation3], 0
    // Predicated region
    $region2: #{_lambda_.1} parent=1 // pred_check
      _
    $region3: #{_lambda_.1} parent=1 // pred_check_branch
      %16 = sbr.rel (0) target = $region5
    $region4: #{_lambda_.1} parent=1 // pred_region
      _
    $region5: #{_lambda_.1} parent=1 // pred_fallthru
      _
    // Predicated region
    $region6: #{_lambda_.1} parent=1 // pred_check
      _
    $region7: #{_lambda_.1} parent=1 // pred_check_branch
      %18 = sbr.rel (0) target = $region9
    $region8: #{_lambda_.1} parent=1 // pred_region
      _
    $region9: #{_lambda_.1} parent=1 // pred_fallthru
      _
    // Predicated region
    $region10: #{_lambda_.1} parent=1 // pred_check
      _
    $region11: #{_lambda_.1} parent=1 // pred_check_branch
      %20 = sbr.rel (0) target = $region13
    $region12: #{_lambda_.1} parent=1 // pred_region
      _
    $region13: #{_lambda_.1} parent=1 // pred_fallthru
      _
    // Predicated region
    $region14: #{_lambda_.1} parent=1 // pred_check
      _
    $region15: #{_lambda_.1} parent=1 // pred_check_branch
      %22 = sbr.rel (0) target = $region17
    $region16: #{_lambda_.1} parent=1 // pred_region
      _
    $region17: #{_lambda_.1} parent=1 // pred_fallthru
      _
    // Predicated region
    $region18: #{_lambda_.1} parent=1 // pred_check
      _
    $region19: #{_lambda_.1} parent=1 // pred_check_branch
      %24 = sbr.rel (0) target = $region21
    $region20: #{_lambda_.1} parent=1 // pred_region
      _
    $region21: #{_lambda_.1} parent=1 // pred_fallthru
      _
    // Predicated region
    $region22: #{_lambda_.1} parent=1 // pred_check
      _
    $region23: #{_lambda_.1} parent=1 // pred_check_branch
      %26 = sbr.rel (0) target = $region25
    $region24: #{_lambda_.1} parent=1 // pred_region
      _
    $region25: #{_lambda_.1} parent=1 // pred_fallthru
      _
    // Predicated region
    $region26: #{_lambda_.1} parent=1 // pred_check
      _
    $region27: #{_lambda_.1} parent=1 // pred_check_branch
      %28 = sbr.rel (0) target = $region29
    $region28: #{_lambda_.1} parent=1 // pred_region
      _
    $region29: #{_lambda_.1} parent=1 // pred_fallthru
      _
    // Predicated region
    $region30: #{_lambda_.1} parent=1 // pred_check
      _
    $region31: #{_lambda_.1} parent=1 // pred_check_branch
      %30 = sbr.rel (0) target = $region33
    $region32: #{_lambda_.1} parent=1 // pred_region
      _
    $region33: #{_lambda_.1} parent=1 // pred_fallthru
      _
    // Predicated region
    $region34: #{_lambda_.1} parent=1 // pred_check
      _
    $region35: #{_lambda_.1} parent=1 // pred_check_branch
      %32 = sbr.rel (0) target = $region37
    $region36: #{_lambda_.1} parent=1 // pred_region
      _
    $region37: #{_lambda_.1} parent=1 // pred_fallthru
      _
    %v34 = vld [vmem:[%s0] sm:$0xff]
    %v35 = vld [vmem:[%s0 + $0x8] sm:$0xf]
    %v38 = vcombine.high %v34, %v34
    %v40 = vunpack.c.l.s4 1983009808
    %v41 = vunpack.c.0.s8 %v40
    %v42 = vlaneseq
    %v43 = vshrl.u32 %v42, 7
    %v44 = vsub.s32 %v41, %v43
    %v45 = vrot.slane %v34, %v44
    %v47 = vunpack.c.l.s4 1983009808
    %v48 = vunpack.c.0.s8 %v47
    %v49 = vlaneseq
    %v50 = vshrl.u32 %v49, 7
    %v51 = vsub.s32 %v48, %v50
    %v52 = vrot.slane %v38, %v51
    %v53 = vcombine.high %v45, %v45
    %v54 = vcombine.high %v52, %v52
    %v56 = vunpack.c.l.s4 1983009808
    %v57 = vunpack.c.0.s8 %v56
    %v58 = vlaneseq
    %v59 = vshrl.u32 %v58, 7
    %v60 = vsub.s32 %v57, %v59
    %v61 = vrot.slane %v35, %v60
    %v62 = vcombine.high %v61, %v61
    %v69 = vpack.c.bf16 %v45, %v45
    %v70 = vpack.c.bf16 %v53, %v53
    %v71 = vpack.c.bf16 %v52, %v52
    %v72 = vpack.c.bf16 %v54, %v54
    %v73 = vpack.c.bf16 %v61, %v61
    %v74 = vpack.c.bf16 %v62, %v62
    %v75 = vld [vmem:[%s1] sm:$0xff]
    %v76 = vld [vmem:[%s1 + $0x8] sm:$0xff]
    %v77 = vld [vmem:[%s1 + $0x10] sm:$0xff]
    %v78 = vld [vmem:[%s1 + $0x18] sm:$0xff]
    %v79 = vld [vmem:[%s1 + $0x20] sm:$0xff]
    %v80 = vld [vmem:[%s1 + $0x28] sm:$0xff]
    %v81 = vld [vmem:[%s1 + $0x30] sm:$0xff]
    %v82 = vld [vmem:[%s1 + $0x38] sm:$0xff]
    %v83 = vld [vmem:[%s1 + $0x40] sm:$0xff]
    %v84 = vld [vmem:[%s1 + $0x48] sm:$0xff]
    %v85 = vld [vmem:[%s1 + $0x50] sm:$0xff]
    %v86 = vld [vmem:[%s1 + $0x58] sm:$0xff]
    %v87 = vld [vmem:[%s1 + $0x60] sm:$0xff]
    %v88 = vld [vmem:[%s1 + $0x68] sm:$0xff]
    %v89 = vld [vmem:[%s1 + $0x70] sm:$0xff]
    %v90 = vld [vmem:[%s1 + $0x78] sm:$0xff]
    %v91 = vld [vmem:[%s1 + $0x80] sm:$0xff]
    %v92 = vld [vmem:[%s1 + $0x88] sm:$0xff]
    %v93 = vld [vmem:[%s1 + $0x90] sm:$0xff]
    %v94 = vld [vmem:[%s1 + $0x98] sm:$0xff]
    %v95 = vld [vmem:[%s1 + $0xa0] sm:$0xff]
    %v96 = vld [vmem:[%s1 + $0xa8] sm:$0xff]
    %v97 = vld [vmem:[%s1 + $0xb0] sm:$0xff]
    %v98 = vld [vmem:[%s1 + $0xb8] sm:$0xff]
    %v99 = vld [vmem:[%s1 + $0xc0] sm:$0xff]
    %v100 = vld [vmem:[%s1 + $0xc8] sm:$0xff]
    %v101 = vld [vmem:[%s1 + $0xd0] sm:$0xff]
    %v102 = vld [vmem:[%s1 + $0xd8] sm:$0xff]
    %v103 = vld [vmem:[%s1 + $0xe0] sm:$0xff]
    %v104 = vld [vmem:[%s1 + $0xe8] sm:$0xff]
    %v105 = vld [vmem:[%s1 + $0xf0] sm:$0xff]
    %v106 = vld [vmem:[%s1 + $0xf8] sm:$0xff]
    %v107 = vld [vmem:[%s1 + $0x100] sm:$0xff]
    %v108 = vld [vmem:[%s1 + $0x108] sm:$0xff]
    %v109 = vld [vmem:[%s1 + $0x110] sm:$0xff]
    %v110 = vld [vmem:[%s1 + $0x118] sm:$0xff]
    %v111 = vld [vmem:[%s1 + $0x120] sm:$0xff]
    %v112 = vld [vmem:[%s1 + $0x128] sm:$0xff]
    %v113 = vld [vmem:[%s1 + $0x130] sm:$0xff]
    %v114 = vld [vmem:[%s1 + $0x138] sm:$0xff]
    %v115 = vld [vmem:[%s1 + $0x140] sm:$0xff]
    %v116 = vld [vmem:[%s1 + $0x148] sm:$0xff]
    %v117 = vld [vmem:[%s1 + $0x150] sm:$0xff]
    %v118 = vld [vmem:[%s1 + $0x158] sm:$0xff]
    %v119 = vld [vmem:[%s1 + $0x160] sm:$0xff]
    %v120 = vld [vmem:[%s1 + $0x168] sm:$0xff]
    %v121 = vld [vmem:[%s1 + $0x170] sm:$0xff]
    %v122 = vld [vmem:[%s1 + $0x178] sm:$0xff]
    %v123 = vld [vmem:[%s1 + $0x180] sm:$0xff]
    %v124 = vld [vmem:[%s1 + $0x188] sm:$0xff]
    %v125 = vld [vmem:[%s1 + $0x190] sm:$0xff]
    %v126 = vld [vmem:[%s1 + $0x198] sm:$0xff]
    %v127 = vld [vmem:[%s1 + $0x1a0] sm:$0xff]
    %v128 = vld [vmem:[%s1 + $0x1a8] sm:$0xff]
    %v129 = vld [vmem:[%s1 + $0x1b0] sm:$0xff]
    %v130 = vld [vmem:[%s1 + $0x1b8] sm:$0xff]
    %v131 = vld [vmem:[%s1 + $0x1c0] sm:$0xff]
    %v132 = vld [vmem:[%s1 + $0x1c8] sm:$0xff]
    %v133 = vld [vmem:[%s1 + $0x1d0] sm:$0xff]
    %v134 = vld [vmem:[%s1 + $0x1d8] sm:$0xff]
    %v135 = vld [vmem:[%s1 + $0x1e0] sm:$0xff]
    %v136 = vld [vmem:[%s1 + $0x1e8] sm:$0xff]
    %v137 = vld [vmem:[%s1 + $0x1f0] sm:$0xff]
    %v138 = vld [vmem:[%s1 + $0x1f8] sm:$0xff]
    %v139 = vld [vmem:[%s1 + $0x200] sm:$0xff]
    %v140 = vld [vmem:[%s1 + $0x208] sm:$0xff]
    %v141 = vld [vmem:[%s1 + $0x210] sm:$0xff]
    %v142 = vld [vmem:[%s1 + $0x218] sm:$0xff]
    %v143 = vld [vmem:[%s1 + $0x220] sm:$0xff]
    %v144 = vld [vmem:[%s1 + $0x228] sm:$0xff]
    %v145 = vld [vmem:[%s1 + $0x230] sm:$0xff]
    %v146 = vld [vmem:[%s1 + $0x238] sm:$0xff]
    %v147 = vld [vmem:[%s1 + $0x240] sm:$0xff]
    %v148 = vld [vmem:[%s1 + $0x248] sm:$0xff]
    %v149 = vld [vmem:[%s1 + $0x250] sm:$0xff]
    %v150 = vld [vmem:[%s1 + $0x258] sm:$0xff]
    %v151 = vld [vmem:[%s1 + $0x260] sm:$0xff]
    %v152 = vld [vmem:[%s1 + $0x268] sm:$0xff]
    %v153 = vld [vmem:[%s1 + $0x270] sm:$0xff]
    %v154 = vld [vmem:[%s1 + $0x278] sm:$0xff]
    %v155 = vld [vmem:[%s1 + $0x280] sm:$0xff]
    %v156 = vld [vmem:[%s1 + $0x288] sm:$0xff]
    %v157 = vld [vmem:[%s1 + $0x290] sm:$0xff]
    %v158 = vld [vmem:[%s1 + $0x298] sm:$0xff]
    %v159 = vld [vmem:[%s1 + $0x2a0] sm:$0xff]
    %v160 = vld [vmem:[%s1 + $0x2a8] sm:$0xff]
    %v161 = vld [vmem:[%s1 + $0x2b0] sm:$0xff]
    %v162 = vld [vmem:[%s1 + $0x2b8] sm:$0xff]
    %v163 = vld [vmem:[%s1 + $0x2c0] sm:$0xff]
    %v164 = vld [vmem:[%s1 + $0x2c8] sm:$0xff]
    %v165 = vld [vmem:[%s1 + $0x2d0] sm:$0xff]
    %v166 = vld [vmem:[%s1 + $0x2d8] sm:$0xff]
    %v167 = vld [vmem:[%s1 + $0x2e0] sm:$0xff]
    %v168 = vld [vmem:[%s1 + $0x2e8] sm:$0xff]
    %v169 = vld [vmem:[%s1 + $0x2f0] sm:$0xff]
    %v170 = vld [vmem:[%s1 + $0x2f8] sm:$0xff]
    %v171 = vld [vmem:[%s1 + $0x300] sm:$0xff]
    %v172 = vld [vmem:[%s1 + $0x308] sm:$0xff]
    %v173 = vld [vmem:[%s1 + $0x310] sm:$0xff]
    %v174 = vld [vmem:[%s1 + $0x318] sm:$0xff]
    %v175 = vld [vmem:[%s1 + $0x320] sm:$0xff]
    %v176 = vld [vmem:[%s1 + $0x328] sm:$0xff]
    %v177 = vld [vmem:[%s1 + $0x330] sm:$0xff]
    %v178 = vld [vmem:[%s1 + $0x338] sm:$0xff]
    %v179 = vld [vmem:[%s1 + $0x340] sm:$0xff]
    %v180 = vld [vmem:[%s1 + $0x348] sm:$0xff]
    %v181 = vld [vmem:[%s1 + $0x350] sm:$0xff]
    %v182 = vld [vmem:[%s1 + $0x358] sm:$0xff]
    %v183 = vld [vmem:[%s1 + $0x360] sm:$0xff]
    %v184 = vld [vmem:[%s1 + $0x368] sm:$0xff]
    %v185 = vld [vmem:[%s1 + $0x370] sm:$0xff]
    %v186 = vld [vmem:[%s1 + $0x378] sm:$0xff]
    %v187 = vld [vmem:[%s1 + $0x380] sm:$0xff]
    %v188 = vld [vmem:[%s1 + $0x388] sm:$0xff]
    %v189 = vld [vmem:[%s1 + $0x390] sm:$0xff]
    %v190 = vld [vmem:[%s1 + $0x398] sm:$0xff]
    %v191 = vld [vmem:[%s1 + $0x3a0] sm:$0xff]
    %v192 = vld [vmem:[%s1 + $0x3a8] sm:$0xff]
    %v193 = vld [vmem:[%s1 + $0x3b0] sm:$0xff]
    %v194 = vld [vmem:[%s1 + $0x3b8] sm:$0xff]
    %v195 = vld [vmem:[%s1 + $0x3c0] sm:$0xff]
    %v196 = vld [vmem:[%s1 + $0x3c8] sm:$0xff]
    %v197 = vld [vmem:[%s1 + $0x3d0] sm:$0xff]
    %v198 = vld [vmem:[%s1 + $0x3d8] sm:$0xff]
    %v199 = vld [vmem:[%s1 + $0x3e0] sm:$0xff]
    %v200 = vld [vmem:[%s1 + $0x3e8] sm:$0xff]
    %v201 = vld [vmem:[%s1 + $0x3f0] sm:$0xff]
    %v202 = vld [vmem:[%s1 + $0x3f8] sm:$0xff]
    %v203 = vld [vmem:[%s1 + $0x400] sm:$0xff]
    %v204 = vld [vmem:[%s1 + $0x408] sm:$0xff]
    %v205 = vld [vmem:[%s1 + $0x410] sm:$0xff]
    %v206 = vld [vmem:[%s1 + $0x418] sm:$0xff]
    %v207 = vld [vmem:[%s1 + $0x420] sm:$0xff]
    %v208 = vld [vmem:[%s1 + $0x428] sm:$0xff]
    %v209 = vld [vmem:[%s1 + $0x430] sm:$0xff]
    %v210 = vld [vmem:[%s1 + $0x438] sm:$0xff]
    %v211 = vld [vmem:[%s1 + $0x440] sm:$0xff]
    %v212 = vld [vmem:[%s1 + $0x448] sm:$0xff]
    %v213 = vld [vmem:[%s1 + $0x450] sm:$0xff]
    %v214 = vld [vmem:[%s1 + $0x458] sm:$0xff]
    %v215 = vld [vmem:[%s1 + $0x460] sm:$0xff]
    %v216 = vld [vmem:[%s1 + $0x468] sm:$0xff]
    %v217 = vld [vmem:[%s1 + $0x470] sm:$0xff]
    %v218 = vld [vmem:[%s1 + $0x478] sm:$0xff]
    %v219 = vld [vmem:[%s1 + $0x480] sm:$0xff]
    %v220 = vld [vmem:[%s1 + $0x488] sm:$0xff]
    %v221 = vld [vmem:[%s1 + $0x490] sm:$0xff]
    %v222 = vld [vmem:[%s1 + $0x498] sm:$0xff]
    %v223 = vld [vmem:[%s1 + $0x4a0] sm:$0xff]
    %v224 = vld [vmem:[%s1 + $0x4a8] sm:$0xff]
    %v225 = vld [vmem:[%s1 + $0x4b0] sm:$0xff]
    %v226 = vld [vmem:[%s1 + $0x4b8] sm:$0xff]
    %v227 = vld [vmem:[%s1 + $0x4c0] sm:$0xff]
    %v228 = vld [vmem:[%s1 + $0x4c8] sm:$0xff]
    %v229 = vld [vmem:[%s1 + $0x4d0] sm:$0xff]
    %v230 = vld [vmem:[%s1 + $0x4d8] sm:$0xff]
    %v231 = vld [vmem:[%s1 + $0x4e0] sm:$0xff]
    %v232 = vld [vmem:[%s1 + $0x4e8] sm:$0xff]
    %v233 = vld [vmem:[%s1 + $0x4f0] sm:$0xff]
    %v234 = vld [vmem:[%s1 + $0x4f8] sm:$0xff]
    %v235 = vld [vmem:[%s1 + $0x500] sm:$0xff]
    %v236 = vld [vmem:[%s1 + $0x508] sm:$0xff]
    %v237 = vld [vmem:[%s1 + $0x510] sm:$0xff]
    %v238 = vld [vmem:[%s1 + $0x518] sm:$0xff]
    %v239 = vld [vmem:[%s1 + $0x520] sm:$0xff]
    %v240 = vld [vmem:[%s1 + $0x528] sm:$0xff]
    %v241 = vld [vmem:[%s1 + $0x530] sm:$0xff]
    %v242 = vld [vmem:[%s1 + $0x538] sm:$0xff]
    %v243 = vld [vmem:[%s1 + $0x540] sm:$0xff]
    %v244 = vld [vmem:[%s1 + $0x548] sm:$0xff]
    %v245 = vld [vmem:[%s1 + $0x550] sm:$0xff]
    %v246 = vld [vmem:[%s1 + $0x558] sm:$0xff]
    %v247 = vld [vmem:[%s1 + $0x560] sm:$0xff]
    %v248 = vld [vmem:[%s1 + $0x568] sm:$0xff]
    %v249 = vld [vmem:[%s1 + $0x570] sm:$0xff]
    %v250 = vld [vmem:[%s1 + $0x578] sm:$0xff]
    %v251 = vld [vmem:[%s1 + $0x580] sm:$0xff]
    %v252 = vld [vmem:[%s1 + $0x588] sm:$0xff]
    %v253 = vld [vmem:[%s1 + $0x590] sm:$0xff]
    %v254 = vld [vmem:[%s1 + $0x598] sm:$0xff]
    %v255 = vld [vmem:[%s1 + $0x5a0] sm:$0xff]
    %v256 = vld [vmem:[%s1 + $0x5a8] sm:$0xff]
    %v257 = vld [vmem:[%s1 + $0x5b0] sm:$0xff]
    %v258 = vld [vmem:[%s1 + $0x5b8] sm:$0xff]
    %v259 = vld [vmem:[%s1 + $0x5c0] sm:$0xff]
    %v260 = vld [vmem:[%s1 + $0x5c8] sm:$0xff]
    %v261 = vld [vmem:[%s1 + $0x5d0] sm:$0xff]
    %v262 = vld [vmem:[%s1 + $0x5d8] sm:$0xff]
    %v263 = vld [vmem:[%s1 + $0x5e0] sm:$0xff]
    %v264 = vld [vmem:[%s1 + $0x5e8] sm:$0xff]
    %v265 = vld [vmem:[%s1 + $0x5f0] sm:$0xff]
    %v266 = vld [vmem:[%s1 + $0x5f8] sm:$0xff]
    %v267 = vld [vmem:[%s1 + $0x600] sm:$0xff]
    %v268 = vld [vmem:[%s1 + $0x608] sm:$0xff]
    %v269 = vld [vmem:[%s1 + $0x610] sm:$0xff]
    %v270 = vld [vmem:[%s1 + $0x618] sm:$0xff]
    %v271 = vld [vmem:[%s1 + $0x620] sm:$0xff]
    %v272 = vld [vmem:[%s1 + $0x628] sm:$0xff]
    %v273 = vld [vmem:[%s1 + $0x630] sm:$0xff]
    %v274 = vld [vmem:[%s1 + $0x638] sm:$0xff]
    %v275 = vld [vmem:[%s1 + $0x640] sm:$0xff]
    %v276 = vld [vmem:[%s1 + $0x648] sm:$0xff]
    %v277 = vld [vmem:[%s1 + $0x650] sm:$0xff]
    %v278 = vld [vmem:[%s1 + $0x658] sm:$0xff]
    %v279 = vld [vmem:[%s1 + $0x660] sm:$0xff]
    %v280 = vld [vmem:[%s1 + $0x668] sm:$0xff]
    %v281 = vld [vmem:[%s1 + $0x670] sm:$0xff]
    %v282 = vld [vmem:[%s1 + $0x678] sm:$0xff]
    %v283 = vld [vmem:[%s1 + $0x680] sm:$0xff]
    %v284 = vld [vmem:[%s1 + $0x688] sm:$0xff]
    %v285 = vld [vmem:[%s1 + $0x690] sm:$0xff]
    %v286 = vld [vmem:[%s1 + $0x698] sm:$0xff]
    %v287 = vld [vmem:[%s1 + $0x6a0] sm:$0xff]
    %v288 = vld [vmem:[%s1 + $0x6a8] sm:$0xff]
    %v289 = vld [vmem:[%s1 + $0x6b0] sm:$0xff]
    %v290 = vld [vmem:[%s1 + $0x6b8] sm:$0xff]
    %v291 = vld [vmem:[%s1 + $0x6c0] sm:$0xff]
    %v292 = vld [vmem:[%s1 + $0x6c8] sm:$0xff]
    %v293 = vld [vmem:[%s1 + $0x6d0] sm:$0xff]
    %v294 = vld [vmem:[%s1 + $0x6d8] sm:$0xff]
    %v295 = vld [vmem:[%s1 + $0x6e0] sm:$0xff]
    %v296 = vld [vmem:[%s1 + $0x6e8] sm:$0xff]
    %v297 = vld [vmem:[%s1 + $0x6f0] sm:$0xff]
    %v298 = vld [vmem:[%s1 + $0x6f8] sm:$0xff]
    %v299 = vld [vmem:[%s1 + $0x700] sm:$0xff]
    %v300 = vld [vmem:[%s1 + $0x708] sm:$0xff]
    %v301 = vld [vmem:[%s1 + $0x710] sm:$0xff]
    %v302 = vld [vmem:[%s1 + $0x718] sm:$0xff]
    %v303 = vld [vmem:[%s1 + $0x720] sm:$0xff]
    %v304 = vld [vmem:[%s1 + $0x728] sm:$0xff]
    %v305 = vld [vmem:[%s1 + $0x730] sm:$0xff]
    %v306 = vld [vmem:[%s1 + $0x738] sm:$0xff]
    %v307 = vld [vmem:[%s1 + $0x740] sm:$0xff]
    %v308 = vld [vmem:[%s1 + $0x748] sm:$0xff]
    %v309 = vld [vmem:[%s1 + $0x750] sm:$0xff]
    %v310 = vld [vmem:[%s1 + $0x758] sm:$0xff]
    %v311 = vld [vmem:[%s1 + $0x760] sm:$0xff]
    %v312 = vld [vmem:[%s1 + $0x768] sm:$0xff]
    %v313 = vld [vmem:[%s1 + $0x770] sm:$0xff]
    %v314 = vld [vmem:[%s1 + $0x778] sm:$0xff]
    %v315 = vld [vmem:[%s1 + $0x780] sm:$0xff]
    %v316 = vld [vmem:[%s1 + $0x788] sm:$0xff]
    %v317 = vld [vmem:[%s1 + $0x790] sm:$0xff]
    %v318 = vld [vmem:[%s1 + $0x798] sm:$0xff]
    %v319 = vld [vmem:[%s1 + $0x7a0] sm:$0xff]
    %v320 = vld [vmem:[%s1 + $0x7a8] sm:$0xff]
    %v321 = vld [vmem:[%s1 + $0x7b0] sm:$0xff]
    %v322 = vld [vmem:[%s1 + $0x7b8] sm:$0xff]
    %v323 = vld [vmem:[%s1 + $0x7c0] sm:$0xff]
    %v324 = vld [vmem:[%s1 + $0x7c8] sm:$0xff]
    %v325 = vld [vmem:[%s1 + $0x7d0] sm:$0xff]
    %v326 = vld [vmem:[%s1 + $0x7d8] sm:$0xff]
    %v327 = vld [vmem:[%s1 + $0x7e0] sm:$0xff]
    %v328 = vld [vmem:[%s1 + $0x7e8] sm:$0xff]
    %v329 = vld [vmem:[%s1 + $0x7f0] sm:$0xff]
    %v330 = vld [vmem:[%s1 + $0x7f8] sm:$0xff]
    %v331 = vld [vmem:[%s1 + $0x800] sm:$0xff]
    %v332 = vld [vmem:[%s1 + $0x808] sm:$0xff]
    %v333 = vld [vmem:[%s1 + $0x810] sm:$0xff]
    %v334 = vld [vmem:[%s1 + $0x818] sm:$0xff]
    %v335 = vld [vmem:[%s1 + $0x820] sm:$0xff]
    %v336 = vld [vmem:[%s1 + $0x828] sm:$0xff]
    %v337 = vld [vmem:[%s1 + $0x830] sm:$0xff]
    %v338 = vld [vmem:[%s1 + $0x838] sm:$0xff]
    %v339 = vld [vmem:[%s1 + $0x840] sm:$0xff]
    %v340 = vld [vmem:[%s1 + $0x848] sm:$0xff]
    %v341 = vld [vmem:[%s1 + $0x850] sm:$0xff]
    %v342 = vld [vmem:[%s1 + $0x858] sm:$0xff]
    %v343 = vld [vmem:[%s1 + $0x860] sm:$0xff]
    %v344 = vld [vmem:[%s1 + $0x868] sm:$0xff]
    %v345 = vld [vmem:[%s1 + $0x870] sm:$0xff]
    %v346 = vld [vmem:[%s1 + $0x878] sm:$0xff]
    %v347 = vld [vmem:[%s1 + $0x880] sm:$0xff]
    %v348 = vld [vmem:[%s1 + $0x888] sm:$0xff]
    %v349 = vld [vmem:[%s1 + $0x890] sm:$0xff]
    %v350 = vld [vmem:[%s1 + $0x898] sm:$0xff]
    %v351 = vld [vmem:[%s1 + $0x8a0] sm:$0xff]
    %v352 = vld [vmem:[%s1 + $0x8a8] sm:$0xff]
    %v353 = vld [vmem:[%s1 + $0x8b0] sm:$0xff]
    %v354 = vld [vmem:[%s1 + $0x8b8] sm:$0xff]
    %v355 = vld [vmem:[%s1 + $0x8c0] sm:$0xff]
    %v356 = vld [vmem:[%s1 + $0x8c8] sm:$0xff]
    %v357 = vld [vmem:[%s1 + $0x8d0] sm:$0xff]
    %v358 = vld [vmem:[%s1 + $0x8d8] sm:$0xff]
    %v359 = vld [vmem:[%s1 + $0x8e0] sm:$0xff]
    %v360 = vld [vmem:[%s1 + $0x8e8] sm:$0xff]
    %v361 = vld [vmem:[%s1 + $0x8f0] sm:$0xff]
    %v362 = vld [vmem:[%s1 + $0x8f8] sm:$0xff]
    %v363 = vld [vmem:[%s1 + $0x900] sm:$0xff]
    %v364 = vld [vmem:[%s1 + $0x908] sm:$0xff]
    %v365 = vld [vmem:[%s1 + $0x910] sm:$0xff]
    %v366 = vld [vmem:[%s1 + $0x918] sm:$0xff]
    %v367 = vld [vmem:[%s1 + $0x920] sm:$0xff]
    %v368 = vld [vmem:[%s1 + $0x928] sm:$0xff]
    %v369 = vld [vmem:[%s1 + $0x930] sm:$0xff]
    %v370 = vld [vmem:[%s1 + $0x938] sm:$0xff]
    %v371 = vld [vmem:[%s1 + $0x940] sm:$0xff]
    %v372 = vld [vmem:[%s1 + $0x948] sm:$0xff]
    %v373 = vld [vmem:[%s1 + $0x950] sm:$0xff]
    %v374 = vld [vmem:[%s1 + $0x958] sm:$0xff]
    %v375 = vld [vmem:[%s1 + $0x960] sm:$0xff]
    %v376 = vld [vmem:[%s1 + $0x968] sm:$0xff]
    %v377 = vld [vmem:[%s1 + $0x970] sm:$0xff]
    %v378 = vld [vmem:[%s1 + $0x978] sm:$0xff]
    %v379 = vld [vmem:[%s1 + $0x980] sm:$0xff]
    %v380 = vld [vmem:[%s1 + $0x988] sm:$0xff]
    %v381 = vld [vmem:[%s1 + $0x990] sm:$0xff]
    %v382 = vld [vmem:[%s1 + $0x998] sm:$0xff]
    %v383 = vld [vmem:[%s1 + $0x9a0] sm:$0xff]
    %v384 = vld [vmem:[%s1 + $0x9a8] sm:$0xff]
    %v385 = vld [vmem:[%s1 + $0x9b0] sm:$0xff]
    %v386 = vld [vmem:[%s1 + $0x9b8] sm:$0xff]
    %v387 = vld [vmem:[%s1 + $0x9c0] sm:$0xff]
    %v388 = vld [vmem:[%s1 + $0x9c8] sm:$0xff]
    %v389 = vld [vmem:[%s1 + $0x9d0] sm:$0xff]
    %v390 = vld [vmem:[%s1 + $0x9d8] sm:$0xff]
    %v391 = vld [vmem:[%s1 + $0x9e0] sm:$0xff]
    %v392 = vld [vmem:[%s1 + $0x9e8] sm:$0xff]
    %v393 = vld [vmem:[%s1 + $0x9f0] sm:$0xff]
    %v394 = vld [vmem:[%s1 + $0x9f8] sm:$0xff]
    %v395 = vld [vmem:[%s1 + $0xa00] sm:$0xff]
    %v396 = vld [vmem:[%s1 + $0xa08] sm:$0xff]
    %v397 = vld [vmem:[%s1 + $0xa10] sm:$0xff]
    %v398 = vld [vmem:[%s1 + $0xa18] sm:$0xff]
    %v399 = vld [vmem:[%s1 + $0xa20] sm:$0xff]
    %v400 = vld [vmem:[%s1 + $0xa28] sm:$0xff]
    %v401 = vld [vmem:[%s1 + $0xa30] sm:$0xff]
    %v402 = vld [vmem:[%s1 + $0xa38] sm:$0xff]
    %v403 = vld [vmem:[%s1 + $0xa40] sm:$0xff]
    %v404 = vld [vmem:[%s1 + $0xa48] sm:$0xff]
    %v405 = vld [vmem:[%s1 + $0xa50] sm:$0xff]
    %v406 = vld [vmem:[%s1 + $0xa58] sm:$0xff]
    %v407 = vld [vmem:[%s1 + $0xa60] sm:$0xff]
    %v408 = vld [vmem:[%s1 + $0xa68] sm:$0xff]
    %v409 = vld [vmem:[%s1 + $0xa70] sm:$0xff]
    %v410 = vld [vmem:[%s1 + $0xa78] sm:$0xff]
    %v411 = vld [vmem:[%s1 + $0xa80] sm:$0xff]
    %v412 = vld [vmem:[%s1 + $0xa88] sm:$0xff]
    %v413 = vld [vmem:[%s1 + $0xa90] sm:$0xff]
    %v414 = vld [vmem:[%s1 + $0xa98] sm:$0xff]
    %v415 = vld [vmem:[%s1 + $0xaa0] sm:$0xff]
    %v416 = vld [vmem:[%s1 + $0xaa8] sm:$0xff]
    %v417 = vld [vmem:[%s1 + $0xab0] sm:$0xff]
    %v418 = vld [vmem:[%s1 + $0xab8] sm:$0xff]
    %v419 = vld [vmem:[%s1 + $0xac0] sm:$0xff]
    %v420 = vld [vmem:[%s1 + $0xac8] sm:$0xff]
    %v421 = vld [vmem:[%s1 + $0xad0] sm:$0xff]
    %v422 = vld [vmem:[%s1 + $0xad8] sm:$0xff]
    %v423 = vld [vmem:[%s1 + $0xae0] sm:$0xff]
    %v424 = vld [vmem:[%s1 + $0xae8] sm:$0xff]
    %v425 = vld [vmem:[%s1 + $0xaf0] sm:$0xff]
    %v426 = vld [vmem:[%s1 + $0xaf8] sm:$0xff]
    %v427 = vld [vmem:[%s1 + $0xb00] sm:$0xff]
    %v428 = vld [vmem:[%s1 + $0xb08] sm:$0xff]
    %v429 = vld [vmem:[%s1 + $0xb10] sm:$0xff]
    %v430 = vld [vmem:[%s1 + $0xb18] sm:$0xff]
    %v431 = vld [vmem:[%s1 + $0xb20] sm:$0xff]
    %v432 = vld [vmem:[%s1 + $0xb28] sm:$0xff]
    %v433 = vld [vmem:[%s1 + $0xb30] sm:$0xff]
    %v434 = vld [vmem:[%s1 + $0xb38] sm:$0xff]
    %v435 = vld [vmem:[%s1 + $0xb40] sm:$0xff]
    %v436 = vld [vmem:[%s1 + $0xb48] sm:$0xff]
    %v437 = vld [vmem:[%s1 + $0xb50] sm:$0xff]
    %v438 = vld [vmem:[%s1 + $0xb58] sm:$0xff]
    %v439 = vld [vmem:[%s1 + $0xb60] sm:$0xff]
    %v440 = vld [vmem:[%s1 + $0xb68] sm:$0xff]
    %v441 = vld [vmem:[%s1 + $0xb70] sm:$0xff]
    %v442 = vld [vmem:[%s1 + $0xb78] sm:$0xff]
    %v443 = vld [vmem:[%s1 + $0xb80] sm:$0xff]
    %v444 = vld [vmem:[%s1 + $0xb88] sm:$0xff]
    %v445 = vld [vmem:[%s1 + $0xb90] sm:$0xff]
    %v446 = vld [vmem:[%s1 + $0xb98] sm:$0xff]
    %v447 = vld [vmem:[%s1 + $0xba0] sm:$0xff]
    %v448 = vld [vmem:[%s1 + $0xba8] sm:$0xff]
    %v449 = vld [vmem:[%s1 + $0xbb0] sm:$0xff]
    %v450 = vld [vmem:[%s1 + $0xbb8] sm:$0xff]
    %v451 = vld [vmem:[%s1 + $0xbc0] sm:$0xff]
    %v452 = vld [vmem:[%s1 + $0xbc8] sm:$0xff]
    %v453 = vld [vmem:[%s1 + $0xbd0] sm:$0xff]
    %v454 = vld [vmem:[%s1 + $0xbd8] sm:$0xff]
    %v455 = vld [vmem:[%s1 + $0xbe0] sm:$0xff]
    %v456 = vld [vmem:[%s1 + $0xbe8] sm:$0xff]
    %v457 = vld [vmem:[%s1 + $0xbf0] sm:$0xff]
    %v458 = vld [vmem:[%s1 + $0xbf8] sm:$0xff]
    %v459 = vld [vmem:[%s2] sm:$0xff]
    %v461 = vlaneseq
    %v462 = vshrl.u32 %v461, 7
    %v463 = vsub.s32 0, %v462
    %v464 = vrot.slane %v459, %v463
    %v465 = vlaneseq
    %v466 = vshrl.u32 %v465, 7
    %v467 = vsub.s32 1, %v466
    %v468 = vrot.slane %v459, %v467
    %v469 = vlaneseq
    %v470 = vshrl.u32 %v469, 7
    %v471 = vsub.s32 2, %v470
    %v472 = vrot.slane %v459, %v471
    %v473 = vlaneseq
    %v474 = vshrl.u32 %v473, 7
    %v475 = vsub.s32 3, %v474
    %v476 = vrot.slane %v459, %v475
    %v477 = vlaneseq
    %v478 = vshrl.u32 %v477, 7
    %v479 = vsub.s32 4, %v478
    %v480 = vrot.slane %v459, %v479
    %v481 = vlaneseq
    %v482 = vshrl.u32 %v481, 7
    %v483 = vsub.s32 5, %v482
    %v484 = vrot.slane %v459, %v483
    %v485 = vlaneseq
    %v486 = vshrl.u32 %v485, 7
    %v487 = vsub.s32 6, %v486
    %v488 = vrot.slane %v459, %v487
    %v489 = vlaneseq
    %v490 = vshrl.u32 %v489, 7
    %v491 = vsub.s32 7, %v490
    %v492 = vrot.slane %v459, %v491
    %v885 = vunpack.c.l.b16 %v75
    %v886 = vunpack.c.h.b16 %v75
    %v887 = vunpack.c.l.b16 %v76
    %v888 = vunpack.c.h.b16 %v76
    %v889 = vunpack.c.l.b16 %v77
    %v890 = vunpack.c.h.b16 %v77
    %v891 = vunpack.c.l.b16 %v78
    %v892 = vunpack.c.h.b16 %v78
    %v893 = vunpack.c.l.b16 %v79
    %v894 = vunpack.c.h.b16 %v79
    %v895 = vunpack.c.l.b16 %v80
    %v896 = vunpack.c.h.b16 %v80
    %v897 = vunpack.c.l.b16 %v81
    %v898 = vunpack.c.h.b16 %v81
    %v899 = vunpack.c.l.b16 %v82
    %v900 = vunpack.c.h.b16 %v82
    %v901 = vunpack.c.l.b16 %v83
    %v902 = vunpack.c.h.b16 %v83
    %v903 = vunpack.c.l.b16 %v84
    %v904 = vunpack.c.h.b16 %v84
    %v905 = vunpack.c.l.b16 %v85
    %v906 = vunpack.c.h.b16 %v85
    %v907 = vunpack.c.l.b16 %v86
    %v908 = vunpack.c.h.b16 %v86
    %v909 = vunpack.c.l.b16 %v87
    %v910 = vunpack.c.h.b16 %v87
    %v911 = vunpack.c.l.b16 %v88
    %v912 = vunpack.c.h.b16 %v88
    %v913 = vunpack.c.l.b16 %v89
    %v914 = vunpack.c.h.b16 %v89
    %v915 = vunpack.c.l.b16 %v90
    %v916 = vunpack.c.h.b16 %v90
    %v917 = vunpack.c.l.b16 %v91
    %v918 = vunpack.c.h.b16 %v91
    %v919 = vunpack.c.l.b16 %v92
    %v920 = vunpack.c.h.b16 %v92
    %v921 = vunpack.c.l.b16 %v93
    %v922 = vunpack.c.h.b16 %v93
    %v923 = vunpack.c.l.b16 %v94
    %v924 = vunpack.c.h.b16 %v94
    %v925 = vunpack.c.l.b16 %v95
    %v926 = vunpack.c.h.b16 %v95
    %v927 = vunpack.c.l.b16 %v96
    %v928 = vunpack.c.h.b16 %v96
    %v929 = vunpack.c.l.b16 %v97
    %v930 = vunpack.c.h.b16 %v97
    %v931 = vunpack.c.l.b16 %v98
    %v932 = vunpack.c.h.b16 %v98
    %v933 = vunpack.c.l.b16 %v99
    %v934 = vunpack.c.h.b16 %v99
    %v935 = vunpack.c.l.b16 %v100
    %v936 = vunpack.c.h.b16 %v100
    %v937 = vunpack.c.l.b16 %v101
    %v938 = vunpack.c.h.b16 %v101
    %v939 = vunpack.c.l.b16 %v102
    %v940 = vunpack.c.h.b16 %v102
    %v941 = vunpack.c.l.b16 %v103
    %v942 = vunpack.c.h.b16 %v103
    %v943 = vunpack.c.l.b16 %v104
    %v944 = vunpack.c.h.b16 %v104
    %v945 = vunpack.c.l.b16 %v105
    %v946 = vunpack.c.h.b16 %v105
    %v947 = vunpack.c.l.b16 %v106
    %v948 = vunpack.c.h.b16 %v106
    %v949 = vunpack.c.l.b16 %v107
    %v950 = vunpack.c.h.b16 %v107
    %v951 = vunpack.c.l.b16 %v108
    %v952 = vunpack.c.h.b16 %v108
    %v953 = vunpack.c.l.b16 %v109
    %v954 = vunpack.c.h.b16 %v109
    %v955 = vunpack.c.l.b16 %v110
    %v956 = vunpack.c.h.b16 %v110
    %v957 = vunpack.c.l.b16 %v111
    %v958 = vunpack.c.h.b16 %v111
    %v959 = vunpack.c.l.b16 %v112
    %v960 = vunpack.c.h.b16 %v112
    %v961 = vunpack.c.l.b16 %v113
    %v962 = vunpack.c.h.b16 %v113
    %v963 = vunpack.c.l.b16 %v114
    %v964 = vunpack.c.h.b16 %v114
    %v965 = vunpack.c.l.b16 %v115
    %v966 = vunpack.c.h.b16 %v115
    %v967 = vunpack.c.l.b16 %v116
    %v968 = vunpack.c.h.b16 %v116
    %v969 = vunpack.c.l.b16 %v117
    %v970 = vunpack.c.h.b16 %v117
    %v971 = vunpack.c.l.b16 %v118
    %v972 = vunpack.c.h.b16 %v118
    %v973 = vunpack.c.l.b16 %v119
    %v974 = vunpack.c.h.b16 %v119
    %v975 = vunpack.c.l.b16 %v120
    %v976 = vunpack.c.h.b16 %v120
    %v977 = vunpack.c.l.b16 %v121
    %v978 = vunpack.c.h.b16 %v121
    %v979 = vunpack.c.l.b16 %v122
    %v980 = vunpack.c.h.b16 %v122
    %v981 = vunpack.c.l.b16 %v123
    %v982 = vunpack.c.h.b16 %v123
    %v983 = vunpack.c.l.b16 %v124
    %v984 = vunpack.c.h.b16 %v124
    %v985 = vunpack.c.l.b16 %v125
    %v986 = vunpack.c.h.b16 %v125
    %v987 = vunpack.c.l.b16 %v126
    %v988 = vunpack.c.h.b16 %v126
    %v989 = vunpack.c.l.b16 %v127
    %v990 = vunpack.c.h.b16 %v127
    %v991 = vunpack.c.l.b16 %v128
    %v992 = vunpack.c.h.b16 %v128
    %v993 = vunpack.c.l.b16 %v129
    %v994 = vunpack.c.h.b16 %v129
    %v995 = vunpack.c.l.b16 %v130
    %v996 = vunpack.c.h.b16 %v130
    %v997 = vunpack.c.l.b16 %v131
    %v998 = vunpack.c.h.b16 %v131
    %v999 = vunpack.c.l.b16 %v132
    %v1000 = vunpack.c.h.b16 %v132
    %v1001 = vunpack.c.l.b16 %v133
    %v1002 = vunpack.c.h.b16 %v133
    %v1003 = vunpack.c.l.b16 %v134
    %v1004 = vunpack.c.h.b16 %v134
    %v1005 = vunpack.c.l.b16 %v135
    %v1006 = vunpack.c.h.b16 %v135
    %v1007 = vunpack.c.l.b16 %v136
    %v1008 = vunpack.c.h.b16 %v136
    %v1009 = vunpack.c.l.b16 %v137
    %v1010 = vunpack.c.h.b16 %v137
    %v1011 = vunpack.c.l.b16 %v138
    %v1012 = vunpack.c.h.b16 %v138
    %v1013 = vunpack.c.l.b16 %v139
    %v1014 = vunpack.c.h.b16 %v139
    %v1015 = vunpack.c.l.b16 %v140
    %v1016 = vunpack.c.h.b16 %v140
    %v1017 = vunpack.c.l.b16 %v141
    %v1018 = vunpack.c.h.b16 %v141
    %v1019 = vunpack.c.l.b16 %v142
    %v1020 = vunpack.c.h.b16 %v142
    %v1021 = vunpack.c.l.b16 %v143
    %v1022 = vunpack.c.h.b16 %v143
    %v1023 = vunpack.c.l.b16 %v144
    %v1024 = vunpack.c.h.b16 %v144
    %v1025 = vunpack.c.l.b16 %v145
    %v1026 = vunpack.c.h.b16 %v145
    %v1027 = vunpack.c.l.b16 %v146
    %v1028 = vunpack.c.h.b16 %v146
    %v1029 = vunpack.c.l.b16 %v147
    %v1030 = vunpack.c.h.b16 %v147
    %v1031 = vunpack.c.l.b16 %v148
    %v1032 = vunpack.c.h.b16 %v148
    %v1033 = vunpack.c.l.b16 %v149
    %v1034 = vunpack.c.h.b16 %v149
    %v1035 = vunpack.c.l.b16 %v150
    %v1036 = vunpack.c.h.b16 %v150
    %v1037 = vunpack.c.l.b16 %v151
    %v1038 = vunpack.c.h.b16 %v151
    %v1039 = vunpack.c.l.b16 %v152
    %v1040 = vunpack.c.h.b16 %v152
    %v1041 = vunpack.c.l.b16 %v153
    %v1042 = vunpack.c.h.b16 %v153
    %v1043 = vunpack.c.l.b16 %v154
    %v1044 = vunpack.c.h.b16 %v154
    %v1045 = vunpack.c.l.b16 %v155
    %v1046 = vunpack.c.h.b16 %v155
    %v1047 = vunpack.c.l.b16 %v156
    %v1048 = vunpack.c.h.b16 %v156
    %v1049 = vunpack.c.l.b16 %v157
    %v1050 = vunpack.c.h.b16 %v157
    %v1051 = vunpack.c.l.b16 %v158
    %v1052 = vunpack.c.h.b16 %v158
    %v1053 = vunpack.c.l.b16 %v159
    %v1054 = vunpack.c.h.b16 %v159
    %v1055 = vunpack.c.l.b16 %v160
    %v1056 = vunpack.c.h.b16 %v160
    %v1057 = vunpack.c.l.b16 %v161
    %v1058 = vunpack.c.h.b16 %v161
    %v1059 = vunpack.c.l.b16 %v162
    %v1060 = vunpack.c.h.b16 %v162
    %v1061 = vunpack.c.l.b16 %v163
    %v1062 = vunpack.c.h.b16 %v163
    %v1063 = vunpack.c.l.b16 %v164
    %v1064 = vunpack.c.h.b16 %v164
    %v1065 = vunpack.c.l.b16 %v165
    %v1066 = vunpack.c.h.b16 %v165
    %v1067 = vunpack.c.l.b16 %v166
    %v1068 = vunpack.c.h.b16 %v166
    %v1069 = vunpack.c.l.b16 %v167
    %v1070 = vunpack.c.h.b16 %v167
    %v1071 = vunpack.c.l.b16 %v168
    %v1072 = vunpack.c.h.b16 %v168
    %v1073 = vunpack.c.l.b16 %v169
    %v1074 = vunpack.c.h.b16 %v169
    %v1075 = vunpack.c.l.b16 %v170
    %v1076 = vunpack.c.h.b16 %v170
    %v1077 = vunpack.c.l.b16 %v171
    %v1078 = vunpack.c.h.b16 %v171
    %v1079 = vunpack.c.l.b16 %v172
    %v1080 = vunpack.c.h.b16 %v172
    %v1081 = vunpack.c.l.b16 %v173
    %v1082 = vunpack.c.h.b16 %v173
    %v1083 = vunpack.c.l.b16 %v174
    %v1084 = vunpack.c.h.b16 %v174
    %v1085 = vunpack.c.l.b16 %v175
    %v1086 = vunpack.c.h.b16 %v175
    %v1087 = vunpack.c.l.b16 %v176
    %v1088 = vunpack.c.h.b16 %v176
    %v1089 = vunpack.c.l.b16 %v177
    %v1090 = vunpack.c.h.b16 %v177
    %v1091 = vunpack.c.l.b16 %v178
    %v1092 = vunpack.c.h.b16 %v178
    %v1093 = vunpack.c.l.b16 %v179
    %v1094 = vunpack.c.h.b16 %v179
    %v1095 = vunpack.c.l.b16 %v180
    %v1096 = vunpack.c.h.b16 %v180
    %v1097 = vunpack.c.l.b16 %v181
    %v1098 = vunpack.c.h.b16 %v181
    %v1099 = vunpack.c.l.b16 %v182
    %v1100 = vunpack.c.h.b16 %v182
    %v1101 = vunpack.c.l.b16 %v183
    %v1102 = vunpack.c.h.b16 %v183
    %v1103 = vunpack.c.l.b16 %v184
    %v1104 = vunpack.c.h.b16 %v184
    %v1105 = vunpack.c.l.b16 %v185
    %v1106 = vunpack.c.h.b16 %v185
    %v1107 = vunpack.c.l.b16 %v186
    %v1108 = vunpack.c.h.b16 %v186
    %v1109 = vunpack.c.l.b16 %v187
    %v1110 = vunpack.c.h.b16 %v187
    %v1111 = vunpack.c.l.b16 %v188
    %v1112 = vunpack.c.h.b16 %v188
    %v1113 = vunpack.c.l.b16 %v189
    %v1114 = vunpack.c.h.b16 %v189
    %v1115 = vunpack.c.l.b16 %v190
    %v1116 = vunpack.c.h.b16 %v190
    %v1117 = vunpack.c.l.b16 %v191
    %v1118 = vunpack.c.h.b16 %v191
    %v1119 = vunpack.c.l.b16 %v192
    %v1120 = vunpack.c.h.b16 %v192
    %v1121 = vunpack.c.l.b16 %v193
    %v1122 = vunpack.c.h.b16 %v193
    %v1123 = vunpack.c.l.b16 %v194
    %v1124 = vunpack.c.h.b16 %v194
    %v1125 = vunpack.c.l.b16 %v195
    %v1126 = vunpack.c.h.b16 %v195
    %v1127 = vunpack.c.l.b16 %v196
    %v1128 = vunpack.c.h.b16 %v196
    %v1129 = vunpack.c.l.b16 %v197
    %v1130 = vunpack.c.h.b16 %v197
    %v1131 = vunpack.c.l.b16 %v198
    %v1132 = vunpack.c.h.b16 %v198
    %v1133 = vunpack.c.l.b16 %v199
    %v1134 = vunpack.c.h.b16 %v199
    %v1135 = vunpack.c.l.b16 %v200
    %v1136 = vunpack.c.h.b16 %v200
    %v1137 = vunpack.c.l.b16 %v201
    %v1138 = vunpack.c.h.b16 %v201
    %v1139 = vunpack.c.l.b16 %v202
    %v1140 = vunpack.c.h.b16 %v202
    %v1141 = vunpack.c.l.b16 %v203
    %v1142 = vunpack.c.h.b16 %v203
    %v1143 = vunpack.c.l.b16 %v204
    %v1144 = vunpack.c.h.b16 %v204
    %v1145 = vunpack.c.l.b16 %v205
    %v1146 = vunpack.c.h.b16 %v205
    %v1147 = vunpack.c.l.b16 %v206
    %v1148 = vunpack.c.h.b16 %v206
    %v1149 = vunpack.c.l.b16 %v207
    %v1150 = vunpack.c.h.b16 %v207
    %v1151 = vunpack.c.l.b16 %v208
    %v1152 = vunpack.c.h.b16 %v208
    %v1153 = vunpack.c.l.b16 %v209
    %v1154 = vunpack.c.h.b16 %v209
    %v1155 = vunpack.c.l.b16 %v210
    %v1156 = vunpack.c.h.b16 %v210
    %v1157 = vunpack.c.l.b16 %v211
    %v1158 = vunpack.c.h.b16 %v211
    %v1159 = vunpack.c.l.b16 %v212
    %v1160 = vunpack.c.h.b16 %v212
    %v1161 = vunpack.c.l.b16 %v213
    %v1162 = vunpack.c.h.b16 %v213
    %v1163 = vunpack.c.l.b16 %v214
    %v1164 = vunpack.c.h.b16 %v214
    %v1165 = vunpack.c.l.b16 %v215
    %v1166 = vunpack.c.h.b16 %v215
    %v1167 = vunpack.c.l.b16 %v216
    %v1168 = vunpack.c.h.b16 %v216
    %v1169 = vunpack.c.l.b16 %v217
    %v1170 = vunpack.c.h.b16 %v217
    %v1171 = vunpack.c.l.b16 %v218
    %v1172 = vunpack.c.h.b16 %v218
    %v1173 = vunpack.c.l.b16 %v219
    %v1174 = vunpack.c.h.b16 %v219
    %v1175 = vunpack.c.l.b16 %v220
    %v1176 = vunpack.c.h.b16 %v220
    %v1177 = vunpack.c.l.b16 %v221
    %v1178 = vunpack.c.h.b16 %v221
    %v1179 = vunpack.c.l.b16 %v222
    %v1180 = vunpack.c.h.b16 %v222
    %v1181 = vunpack.c.l.b16 %v223
    %v1182 = vunpack.c.h.b16 %v223
    %v1183 = vunpack.c.l.b16 %v224
    %v1184 = vunpack.c.h.b16 %v224
    %v1185 = vunpack.c.l.b16 %v225
    %v1186 = vunpack.c.h.b16 %v225
    %v1187 = vunpack.c.l.b16 %v226
    %v1188 = vunpack.c.h.b16 %v226
    %v1189 = vunpack.c.l.b16 %v227
    %v1190 = vunpack.c.h.b16 %v227
    %v1191 = vunpack.c.l.b16 %v228
    %v1192 = vunpack.c.h.b16 %v228
    %v1193 = vunpack.c.l.b16 %v229
    %v1194 = vunpack.c.h.b16 %v229
    %v1195 = vunpack.c.l.b16 %v230
    %v1196 = vunpack.c.h.b16 %v230
    %v1197 = vunpack.c.l.b16 %v231
    %v1198 = vunpack.c.h.b16 %v231
    %v1199 = vunpack.c.l.b16 %v232
    %v1200 = vunpack.c.h.b16 %v232
    %v1201 = vunpack.c.l.b16 %v233
    %v1202 = vunpack.c.h.b16 %v233
    %v1203 = vunpack.c.l.b16 %v234
    %v1204 = vunpack.c.h.b16 %v234
    %v1205 = vunpack.c.l.b16 %v235
    %v1206 = vunpack.c.h.b16 %v235
    %v1207 = vunpack.c.l.b16 %v236
    %v1208 = vunpack.c.h.b16 %v236
    %v1209 = vunpack.c.l.b16 %v237
    %v1210 = vunpack.c.h.b16 %v237
    %v1211 = vunpack.c.l.b16 %v238
    %v1212 = vunpack.c.h.b16 %v238
    %v1213 = vunpack.c.l.b16 %v239
    %v1214 = vunpack.c.h.b16 %v239
    %v1215 = vunpack.c.l.b16 %v240
    %v1216 = vunpack.c.h.b16 %v240
    %v1217 = vunpack.c.l.b16 %v241
    %v1218 = vunpack.c.h.b16 %v241
    %v1219 = vunpack.c.l.b16 %v242
    %v1220 = vunpack.c.h.b16 %v242
    %v1221 = vunpack.c.l.b16 %v243
    %v1222 = vunpack.c.h.b16 %v243
    %v1223 = vunpack.c.l.b16 %v244
    %v1224 = vunpack.c.h.b16 %v244
    %v1225 = vunpack.c.l.b16 %v245
    %v1226 = vunpack.c.h.b16 %v245
    %v1227 = vunpack.c.l.b16 %v246
    %v1228 = vunpack.c.h.b16 %v246
    %v1229 = vunpack.c.l.b16 %v247
    %v1230 = vunpack.c.h.b16 %v247
    %v1231 = vunpack.c.l.b16 %v248
    %v1232 = vunpack.c.h.b16 %v248
    %v1233 = vunpack.c.l.b16 %v249
    %v1234 = vunpack.c.h.b16 %v249
    %v1235 = vunpack.c.l.b16 %v250
    %v1236 = vunpack.c.h.b16 %v250
    %v1237 = vunpack.c.l.b16 %v251
    %v1238 = vunpack.c.h.b16 %v251
    %v1239 = vunpack.c.l.b16 %v252
    %v1240 = vunpack.c.h.b16 %v252
    %v1241 = vunpack.c.l.b16 %v253
    %v1242 = vunpack.c.h.b16 %v253
    %v1243 = vunpack.c.l.b16 %v254
    %v1244 = vunpack.c.h.b16 %v254
    %v1245 = vunpack.c.l.b16 %v255
    %v1246 = vunpack.c.h.b16 %v255
    %v1247 = vunpack.c.l.b16 %v256
    %v1248 = vunpack.c.h.b16 %v256
    %v1249 = vunpack.c.l.b16 %v257
    %v1250 = vunpack.c.h.b16 %v257
    %v1251 = vunpack.c.l.b16 %v258
    %v1252 = vunpack.c.h.b16 %v258
    %v1253 = vunpack.c.l.b16 %v259
    %v1254 = vunpack.c.h.b16 %v259
    %v1255 = vunpack.c.l.b16 %v260
    %v1256 = vunpack.c.h.b16 %v260
    %v1257 = vunpack.c.l.b16 %v261
    %v1258 = vunpack.c.h.b16 %v261
    %v1259 = vunpack.c.l.b16 %v262
    %v1260 = vunpack.c.h.b16 %v262
    %v1261 = vunpack.c.l.b16 %v263
    %v1262 = vunpack.c.h.b16 %v263
    %v1263 = vunpack.c.l.b16 %v264
    %v1264 = vunpack.c.h.b16 %v264
    %v1265 = vunpack.c.l.b16 %v265
    %v1266 = vunpack.c.h.b16 %v265
    %v1267 = vunpack.c.l.b16 %v266
    %v1268 = vunpack.c.h.b16 %v266
    %v1269 = vunpack.c.l.b16 %v267
    %v1270 = vunpack.c.h.b16 %v267
    %v1271 = vunpack.c.l.b16 %v268
    %v1272 = vunpack.c.h.b16 %v268
    %v1273 = vunpack.c.l.b16 %v269
    %v1274 = vunpack.c.h.b16 %v269
    %v1275 = vunpack.c.l.b16 %v270
    %v1276 = vunpack.c.h.b16 %v270
    %v1277 = vunpack.c.l.b16 %v271
    %v1278 = vunpack.c.h.b16 %v271
    %v1279 = vunpack.c.l.b16 %v272
    %v1280 = vunpack.c.h.b16 %v272
    %v1281 = vunpack.c.l.b16 %v273
    %v1282 = vunpack.c.h.b16 %v273
    %v1283 = vunpack.c.l.b16 %v274
    %v1284 = vunpack.c.h.b16 %v274
    %v1285 = vunpack.c.l.b16 %v275
    %v1286 = vunpack.c.h.b16 %v275
    %v1287 = vunpack.c.l.b16 %v276
    %v1288 = vunpack.c.h.b16 %v276
    %v1289 = vunpack.c.l.b16 %v277
    %v1290 = vunpack.c.h.b16 %v277
    %v1291 = vunpack.c.l.b16 %v278
    %v1292 = vunpack.c.h.b16 %v278
    %v1293 = vunpack.c.l.b16 %v279
    %v1294 = vunpack.c.h.b16 %v279
    %v1295 = vunpack.c.l.b16 %v280
    %v1296 = vunpack.c.h.b16 %v280
    %v1297 = vunpack.c.l.b16 %v281
    %v1298 = vunpack.c.h.b16 %v281
    %v1299 = vunpack.c.l.b16 %v282
    %v1300 = vunpack.c.h.b16 %v282
    %v1301 = vunpack.c.l.b16 %v283
    %v1302 = vunpack.c.h.b16 %v283
    %v1303 = vunpack.c.l.b16 %v284
    %v1304 = vunpack.c.h.b16 %v284
    %v1305 = vunpack.c.l.b16 %v285
    %v1306 = vunpack.c.h.b16 %v285
    %v1307 = vunpack.c.l.b16 %v286
    %v1308 = vunpack.c.h.b16 %v286
    %v1309 = vunpack.c.l.b16 %v287
    %v1310 = vunpack.c.h.b16 %v287
    %v1311 = vunpack.c.l.b16 %v288
    %v1312 = vunpack.c.h.b16 %v288
    %v1313 = vunpack.c.l.b16 %v289
    %v1314 = vunpack.c.h.b16 %v289
    %v1315 = vunpack.c.l.b16 %v290
    %v1316 = vunpack.c.h.b16 %v290
    %v1317 = vunpack.c.l.b16 %v291
    %v1318 = vunpack.c.h.b16 %v291
    %v1319 = vunpack.c.l.b16 %v292
    %v1320 = vunpack.c.h.b16 %v292
    %v1321 = vunpack.c.l.b16 %v293
    %v1322 = vunpack.c.h.b16 %v293
    %v1323 = vunpack.c.l.b16 %v294
    %v1324 = vunpack.c.h.b16 %v294
    %v1325 = vunpack.c.l.b16 %v295
    %v1326 = vunpack.c.h.b16 %v295
    %v1327 = vunpack.c.l.b16 %v296
    %v1328 = vunpack.c.h.b16 %v296
    %v1329 = vunpack.c.l.b16 %v297
    %v1330 = vunpack.c.h.b16 %v297
    %v1331 = vunpack.c.l.b16 %v298
    %v1332 = vunpack.c.h.b16 %v298
    %v1333 = vunpack.c.l.b16 %v299
    %v1334 = vunpack.c.h.b16 %v299
    %v1335 = vunpack.c.l.b16 %v300
    %v1336 = vunpack.c.h.b16 %v300
    %v1337 = vunpack.c.l.b16 %v301
    %v1338 = vunpack.c.h.b16 %v301
    %v1339 = vunpack.c.l.b16 %v302
    %v1340 = vunpack.c.h.b16 %v302
    %v1341 = vunpack.c.l.b16 %v303
    %v1342 = vunpack.c.h.b16 %v303
    %v1343 = vunpack.c.l.b16 %v304
    %v1344 = vunpack.c.h.b16 %v304
    %v1345 = vunpack.c.l.b16 %v305
    %v1346 = vunpack.c.h.b16 %v305
    %v1347 = vunpack.c.l.b16 %v306
    %v1348 = vunpack.c.h.b16 %v306
    %v1349 = vunpack.c.l.b16 %v307
    %v1350 = vunpack.c.h.b16 %v307
    %v1351 = vunpack.c.l.b16 %v308
    %v1352 = vunpack.c.h.b16 %v308
    %v1353 = vunpack.c.l.b16 %v309
    %v1354 = vunpack.c.h.b16 %v309
    %v1355 = vunpack.c.l.b16 %v310
    %v1356 = vunpack.c.h.b16 %v310
    %v1357 = vunpack.c.l.b16 %v311
    %v1358 = vunpack.c.h.b16 %v311
    %v1359 = vunpack.c.l.b16 %v312
    %v1360 = vunpack.c.h.b16 %v312
    %v1361 = vunpack.c.l.b16 %v313
    %v1362 = vunpack.c.h.b16 %v313
    %v1363 = vunpack.c.l.b16 %v314
    %v1364 = vunpack.c.h.b16 %v314
    %v1365 = vunpack.c.l.b16 %v315
    %v1366 = vunpack.c.h.b16 %v315
    %v1367 = vunpack.c.l.b16 %v316
    %v1368 = vunpack.c.h.b16 %v316
    %v1369 = vunpack.c.l.b16 %v317
    %v1370 = vunpack.c.h.b16 %v317
    %v1371 = vunpack.c.l.b16 %v318
    %v1372 = vunpack.c.h.b16 %v318
    %v1373 = vunpack.c.l.b16 %v319
    %v1374 = vunpack.c.h.b16 %v319
    %v1375 = vunpack.c.l.b16 %v320
    %v1376 = vunpack.c.h.b16 %v320
    %v1377 = vunpack.c.l.b16 %v321
    %v1378 = vunpack.c.h.b16 %v321
    %v1379 = vunpack.c.l.b16 %v322
    %v1380 = vunpack.c.h.b16 %v322
    %v1381 = vunpack.c.l.b16 %v323
    %v1382 = vunpack.c.h.b16 %v323
    %v1383 = vunpack.c.l.b16 %v324
    %v1384 = vunpack.c.h.b16 %v324
    %v1385 = vunpack.c.l.b16 %v325
    %v1386 = vunpack.c.h.b16 %v325
    %v1387 = vunpack.c.l.b16 %v326
    %v1388 = vunpack.c.h.b16 %v326
    %v1389 = vunpack.c.l.b16 %v327
    %v1390 = vunpack.c.h.b16 %v327
    %v1391 = vunpack.c.l.b16 %v328
    %v1392 = vunpack.c.h.b16 %v328
    %v1393 = vunpack.c.l.b16 %v329
    %v1394 = vunpack.c.h.b16 %v329
    %v1395 = vunpack.c.l.b16 %v330
    %v1396 = vunpack.c.h.b16 %v330
    %v1397 = vunpack.c.l.b16 %v331
    %v1398 = vunpack.c.h.b16 %v331
    %v1399 = vunpack.c.l.b16 %v332
    %v1400 = vunpack.c.h.b16 %v332
    %v1401 = vunpack.c.l.b16 %v333
    %v1402 = vunpack.c.h.b16 %v333
    %v1403 = vunpack.c.l.b16 %v334
    %v1404 = vunpack.c.h.b16 %v334
    %v1405 = vunpack.c.l.b16 %v335
    %v1406 = vunpack.c.h.b16 %v335
    %v1407 = vunpack.c.l.b16 %v336
    %v1408 = vunpack.c.h.b16 %v336
    %v1409 = vunpack.c.l.b16 %v337
    %v1410 = vunpack.c.h.b16 %v337
    %v1411 = vunpack.c.l.b16 %v338
    %v1412 = vunpack.c.h.b16 %v338
    %v1413 = vunpack.c.l.b16 %v339
    %v1414 = vunpack.c.h.b16 %v339
    %v1415 = vunpack.c.l.b16 %v340
    %v1416 = vunpack.c.h.b16 %v340
    %v1417 = vunpack.c.l.b16 %v341
    %v1418 = vunpack.c.h.b16 %v341
    %v1419 = vunpack.c.l.b16 %v342
    %v1420 = vunpack.c.h.b16 %v342
    %v1421 = vunpack.c.l.b16 %v343
    %v1422 = vunpack.c.h.b16 %v343
    %v1423 = vunpack.c.l.b16 %v344
    %v1424 = vunpack.c.h.b16 %v344
    %v1425 = vunpack.c.l.b16 %v345
    %v1426 = vunpack.c.h.b16 %v345
    %v1427 = vunpack.c.l.b16 %v346
    %v1428 = vunpack.c.h.b16 %v346
    %v1429 = vunpack.c.l.b16 %v347
    %v1430 = vunpack.c.h.b16 %v347
    %v1431 = vunpack.c.l.b16 %v348
    %v1432 = vunpack.c.h.b16 %v348
    %v1433 = vunpack.c.l.b16 %v349
    %v1434 = vunpack.c.h.b16 %v349
    %v1435 = vunpack.c.l.b16 %v350
    %v1436 = vunpack.c.h.b16 %v350
    %v1437 = vunpack.c.l.b16 %v351
    %v1438 = vunpack.c.h.b16 %v351
    %v1439 = vunpack.c.l.b16 %v352
    %v1440 = vunpack.c.h.b16 %v352
    %v1441 = vunpack.c.l.b16 %v353
    %v1442 = vunpack.c.h.b16 %v353
    %v1443 = vunpack.c.l.b16 %v354
    %v1444 = vunpack.c.h.b16 %v354
    %v1445 = vunpack.c.l.b16 %v355
    %v1446 = vunpack.c.h.b16 %v355
    %v1447 = vunpack.c.l.b16 %v356
    %v1448 = vunpack.c.h.b16 %v356
    %v1449 = vunpack.c.l.b16 %v357
    %v1450 = vunpack.c.h.b16 %v357
    %v1451 = vunpack.c.l.b16 %v358
    %v1452 = vunpack.c.h.b16 %v358
    %v1453 = vunpack.c.l.b16 %v359
    %v1454 = vunpack.c.h.b16 %v359
    %v1455 = vunpack.c.l.b16 %v360
    %v1456 = vunpack.c.h.b16 %v360
    %v1457 = vunpack.c.l.b16 %v361
    %v1458 = vunpack.c.h.b16 %v361
    %v1459 = vunpack.c.l.b16 %v362
    %v1460 = vunpack.c.h.b16 %v362
    %v1461 = vunpack.c.l.b16 %v363
    %v1462 = vunpack.c.h.b16 %v363
    %v1463 = vunpack.c.l.b16 %v364
    %v1464 = vunpack.c.h.b16 %v364
    %v1465 = vunpack.c.l.b16 %v365
    %v1466 = vunpack.c.h.b16 %v365
    %v1467 = vunpack.c.l.b16 %v366
    %v1468 = vunpack.c.h.b16 %v366
    %v1469 = vunpack.c.l.b16 %v367
    %v1470 = vunpack.c.h.b16 %v367
    %v1471 = vunpack.c.l.b16 %v368
    %v1472 = vunpack.c.h.b16 %v368
    %v1473 = vunpack.c.l.b16 %v369
    %v1474 = vunpack.c.h.b16 %v369
    %v1475 = vunpack.c.l.b16 %v370
    %v1476 = vunpack.c.h.b16 %v370
    %v1477 = vunpack.c.l.b16 %v371
    %v1478 = vunpack.c.h.b16 %v371
    %v1479 = vunpack.c.l.b16 %v372
    %v1480 = vunpack.c.h.b16 %v372
    %v1481 = vunpack.c.l.b16 %v373
    %v1482 = vunpack.c.h.b16 %v373
    %v1483 = vunpack.c.l.b16 %v374
    %v1484 = vunpack.c.h.b16 %v374
    %v1485 = vunpack.c.l.b16 %v375
    %v1486 = vunpack.c.h.b16 %v375
    %v1487 = vunpack.c.l.b16 %v376
    %v1488 = vunpack.c.h.b16 %v376
    %v1489 = vunpack.c.l.b16 %v377
    %v1490 = vunpack.c.h.b16 %v377
    %v1491 = vunpack.c.l.b16 %v378
    %v1492 = vunpack.c.h.b16 %v378
    %v1493 = vunpack.c.l.b16 %v379
    %v1494 = vunpack.c.h.b16 %v379
    %v1495 = vunpack.c.l.b16 %v380
    %v1496 = vunpack.c.h.b16 %v380
    %v1497 = vunpack.c.l.b16 %v381
    %v1498 = vunpack.c.h.b16 %v381
    %v1499 = vunpack.c.l.b16 %v382
    %v1500 = vunpack.c.h.b16 %v382
    %v1501 = vunpack.c.l.b16 %v383
    %v1502 = vunpack.c.h.b16 %v383
    %v1503 = vunpack.c.l.b16 %v384
    %v1504 = vunpack.c.h.b16 %v384
    %v1505 = vunpack.c.l.b16 %v385
    %v1506 = vunpack.c.h.b16 %v385
    %v1507 = vunpack.c.l.b16 %v386
    %v1508 = vunpack.c.h.b16 %v386
    %v1509 = vunpack.c.l.b16 %v387
    %v1510 = vunpack.c.h.b16 %v387
    %v1511 = vunpack.c.l.b16 %v388
    %v1512 = vunpack.c.h.b16 %v388
    %v1513 = vunpack.c.l.b16 %v389
    %v1514 = vunpack.c.h.b16 %v389
    %v1515 = vunpack.c.l.b16 %v390
    %v1516 = vunpack.c.h.b16 %v390
    %v1517 = vunpack.c.l.b16 %v391
    %v1518 = vunpack.c.h.b16 %v391
    %v1519 = vunpack.c.l.b16 %v392
    %v1520 = vunpack.c.h.b16 %v392
    %v1521 = vunpack.c.l.b16 %v393
    %v1522 = vunpack.c.h.b16 %v393
    %v1523 = vunpack.c.l.b16 %v394
    %v1524 = vunpack.c.h.b16 %v394
    %v1525 = vunpack.c.l.b16 %v395
    %v1526 = vunpack.c.h.b16 %v395
    %v1527 = vunpack.c.l.b16 %v396
    %v1528 = vunpack.c.h.b16 %v396
    %v1529 = vunpack.c.l.b16 %v397
    %v1530 = vunpack.c.h.b16 %v397
    %v1531 = vunpack.c.l.b16 %v398
    %v1532 = vunpack.c.h.b16 %v398
    %v1533 = vunpack.c.l.b16 %v399
    %v1534 = vunpack.c.h.b16 %v399
    %v1535 = vunpack.c.l.b16 %v400
    %v1536 = vunpack.c.h.b16 %v400
    %v1537 = vunpack.c.l.b16 %v401
    %v1538 = vunpack.c.h.b16 %v401
    %v1539 = vunpack.c.l.b16 %v402
    %v1540 = vunpack.c.h.b16 %v402
    %v1541 = vunpack.c.l.b16 %v403
    %v1542 = vunpack.c.h.b16 %v403
    %v1543 = vunpack.c.l.b16 %v404
    %v1544 = vunpack.c.h.b16 %v404
    %v1545 = vunpack.c.l.b16 %v405
    %v1546 = vunpack.c.h.b16 %v405
    %v1547 = vunpack.c.l.b16 %v406
    %v1548 = vunpack.c.h.b16 %v406
    %v1549 = vunpack.c.l.b16 %v407
    %v1550 = vunpack.c.h.b16 %v407
    %v1551 = vunpack.c.l.b16 %v408
    %v1552 = vunpack.c.h.b16 %v408
    %v1553 = vunpack.c.l.b16 %v409
    %v1554 = vunpack.c.h.b16 %v409
    %v1555 = vunpack.c.l.b16 %v410
    %v1556 = vunpack.c.h.b16 %v410
    %v1557 = vunpack.c.l.b16 %v411
    %v1558 = vunpack.c.h.b16 %v411
    %v1559 = vunpack.c.l.b16 %v412
    %v1560 = vunpack.c.h.b16 %v412
    %v1561 = vunpack.c.l.b16 %v413
    %v1562 = vunpack.c.h.b16 %v413
    %v1563 = vunpack.c.l.b16 %v414
    %v1564 = vunpack.c.h.b16 %v414
    %v1565 = vunpack.c.l.b16 %v415
    %v1566 = vunpack.c.h.b16 %v415
    %v1567 = vunpack.c.l.b16 %v416
    %v1568 = vunpack.c.h.b16 %v416
    %v1569 = vunpack.c.l.b16 %v417
    %v1570 = vunpack.c.h.b16 %v417
    %v1571 = vunpack.c.l.b16 %v418
    %v1572 = vunpack.c.h.b16 %v418
    %v1573 = vunpack.c.l.b16 %v419
    %v1574 = vunpack.c.h.b16 %v419
    %v1575 = vunpack.c.l.b16 %v420
    %v1576 = vunpack.c.h.b16 %v420
    %v1577 = vunpack.c.l.b16 %v421
    %v1578 = vunpack.c.h.b16 %v421
    %v1579 = vunpack.c.l.b16 %v422
    %v1580 = vunpack.c.h.b16 %v422
    %v1581 = vunpack.c.l.b16 %v423
    %v1582 = vunpack.c.h.b16 %v423
    %v1583 = vunpack.c.l.b16 %v424
    %v1584 = vunpack.c.h.b16 %v424
    %v1585 = vunpack.c.l.b16 %v425
    %v1586 = vunpack.c.h.b16 %v425
    %v1587 = vunpack.c.l.b16 %v426
    %v1588 = vunpack.c.h.b16 %v426
    %v1589 = vunpack.c.l.b16 %v427
    %v1590 = vunpack.c.h.b16 %v427
    %v1591 = vunpack.c.l.b16 %v428
    %v1592 = vunpack.c.h.b16 %v428
    %v1593 = vunpack.c.l.b16 %v429
    %v1594 = vunpack.c.h.b16 %v429
    %v1595 = vunpack.c.l.b16 %v430
    %v1596 = vunpack.c.h.b16 %v430
    %v1597 = vunpack.c.l.b16 %v431
    %v1598 = vunpack.c.h.b16 %v431
    %v1599 = vunpack.c.l.b16 %v432
    %v1600 = vunpack.c.h.b16 %v432
    %v1601 = vunpack.c.l.b16 %v433
    %v1602 = vunpack.c.h.b16 %v433
    %v1603 = vunpack.c.l.b16 %v434
    %v1604 = vunpack.c.h.b16 %v434
    %v1605 = vunpack.c.l.b16 %v435
    %v1606 = vunpack.c.h.b16 %v435
    %v1607 = vunpack.c.l.b16 %v436
    %v1608 = vunpack.c.h.b16 %v436
    %v1609 = vunpack.c.l.b16 %v437
    %v1610 = vunpack.c.h.b16 %v437
    %v1611 = vunpack.c.l.b16 %v438
    %v1612 = vunpack.c.h.b16 %v438
    %v1613 = vunpack.c.l.b16 %v439
    %v1614 = vunpack.c.h.b16 %v439
    %v1615 = vunpack.c.l.b16 %v440
    %v1616 = vunpack.c.h.b16 %v440
    %v1617 = vunpack.c.l.b16 %v441
    %v1618 = vunpack.c.h.b16 %v441
    %v1619 = vunpack.c.l.b16 %v442
    %v1620 = vunpack.c.h.b16 %v442
    %v1621 = vunpack.c.l.b16 %v443
    %v1622 = vunpack.c.h.b16 %v443
    %v1623 = vunpack.c.l.b16 %v444
    %v1624 = vunpack.c.h.b16 %v444
    %v1625 = vunpack.c.l.b16 %v445
    %v1626 = vunpack.c.h.b16 %v445
    %v1627 = vunpack.c.l.b16 %v446
    %v1628 = vunpack.c.h.b16 %v446
    %v1629 = vunpack.c.l.b16 %v447
    %v1630 = vunpack.c.h.b16 %v447
    %v1631 = vunpack.c.l.b16 %v448
    %v1632 = vunpack.c.h.b16 %v448
    %v1633 = vunpack.c.l.b16 %v449
    %v1634 = vunpack.c.h.b16 %v449
    %v1635 = vunpack.c.l.b16 %v450
    %v1636 = vunpack.c.h.b16 %v450
    %v1637 = vunpack.c.l.b16 %v451
    %v1638 = vunpack.c.h.b16 %v451
    %v1639 = vunpack.c.l.b16 %v452
    %v1640 = vunpack.c.h.b16 %v452
    %v1641 = vunpack.c.l.b16 %v453
    %v1642 = vunpack.c.h.b16 %v453
    %v1643 = vunpack.c.l.b16 %v454
    %v1644 = vunpack.c.h.b16 %v454
    %v1645 = vunpack.c.l.b16 %v455
    %v1646 = vunpack.c.h.b16 %v455
    %v1647 = vunpack.c.l.b16 %v456
    %v1648 = vunpack.c.h.b16 %v456
    %v1649 = vunpack.c.l.b16 %v457
    %v1650 = vunpack.c.h.b16 %v457
    %v1651 = vunpack.c.l.b16 %v458
    %v1652 = vunpack.c.h.b16 %v458
    %v1653 = vpack.c.b16 %v893, %v885
    %v1654 = vpack.c.b16 %v894, %v886
    %v1655 = vpack.c.b16 %v895, %v887
    %v1656 = vpack.c.b16 %v896, %v888
    %v1657 = vpack.c.b16 %v897, %v889
    %v1658 = vpack.c.b16 %v898, %v890
    %v1659 = vpack.c.b16 %v899, %v891
    %v1660 = vpack.c.b16 %v900, %v892
    %v1661 = vpack.c.b16 %v909, %v901
    %v1662 = vpack.c.b16 %v910, %v902
    %v1663 = vpack.c.b16 %v911, %v903
    %v1664 = vpack.c.b16 %v912, %v904
    %v1665 = vpack.c.b16 %v913, %v905
    %v1666 = vpack.c.b16 %v914, %v906
    %v1667 = vpack.c.b16 %v915, %v907
    %v1668 = vpack.c.b16 %v916, %v908
    %v1669 = vpack.c.b16 %v925, %v917
    %v1670 = vpack.c.b16 %v926, %v918
    %v1671 = vpack.c.b16 %v927, %v919
    %v1672 = vpack.c.b16 %v928, %v920
    %v1673 = vpack.c.b16 %v929, %v921
    %v1674 = vpack.c.b16 %v930, %v922
    %v1675 = vpack.c.b16 %v931, %v923
    %v1676 = vpack.c.b16 %v932, %v924
    %v1677 = vpack.c.b16 %v941, %v933
    %v1678 = vpack.c.b16 %v942, %v934
    %v1679 = vpack.c.b16 %v943, %v935
    %v1680 = vpack.c.b16 %v944, %v936
    %v1681 = vpack.c.b16 %v945, %v937
    %v1682 = vpack.c.b16 %v946, %v938
    %v1683 = vpack.c.b16 %v947, %v939
    %v1684 = vpack.c.b16 %v948, %v940
    %v1685 = vpack.c.b16 %v957, %v949
    %v1686 = vpack.c.b16 %v958, %v950
    %v1687 = vpack.c.b16 %v959, %v951
    %v1688 = vpack.c.b16 %v960, %v952
    %v1689 = vpack.c.b16 %v961, %v953
    %v1690 = vpack.c.b16 %v962, %v954
    %v1691 = vpack.c.b16 %v963, %v955
    %v1692 = vpack.c.b16 %v964, %v956
    %v1693 = vpack.c.b16 %v973, %v965
    %v1694 = vpack.c.b16 %v974, %v966
    %v1695 = vpack.c.b16 %v975, %v967
    %v1696 = vpack.c.b16 %v976, %v968
    %v1697 = vpack.c.b16 %v977, %v969
    %v1698 = vpack.c.b16 %v978, %v970
    %v1699 = vpack.c.b16 %v979, %v971
    %v1700 = vpack.c.b16 %v980, %v972
    %v1701 = vpack.c.b16 %v989, %v981
    %v1702 = vpack.c.b16 %v990, %v982
    %v1703 = vpack.c.b16 %v991, %v983
    %v1704 = vpack.c.b16 %v992, %v984
    %v1705 = vpack.c.b16 %v993, %v985
    %v1706 = vpack.c.b16 %v994, %v986
    %v1707 = vpack.c.b16 %v995, %v987
    %v1708 = vpack.c.b16 %v996, %v988
    %v1709 = vpack.c.b16 %v1005, %v997
    %v1710 = vpack.c.b16 %v1006, %v998
    %v1711 = vpack.c.b16 %v1007, %v999
    %v1712 = vpack.c.b16 %v1008, %v1000
    %v1713 = vpack.c.b16 %v1009, %v1001
    %v1714 = vpack.c.b16 %v1010, %v1002
    %v1715 = vpack.c.b16 %v1011, %v1003
    %v1716 = vpack.c.b16 %v1012, %v1004
    %v1717 = vpack.c.b16 %v1021, %v1013
    %v1718 = vpack.c.b16 %v1022, %v1014
    %v1719 = vpack.c.b16 %v1023, %v1015
    %v1720 = vpack.c.b16 %v1024, %v1016
    %v1721 = vpack.c.b16 %v1025, %v1017
    %v1722 = vpack.c.b16 %v1026, %v1018
    %v1723 = vpack.c.b16 %v1027, %v1019
    %v1724 = vpack.c.b16 %v1028, %v1020
    %v1725 = vpack.c.b16 %v1037, %v1029
    %v1726 = vpack.c.b16 %v1038, %v1030
    %v1727 = vpack.c.b16 %v1039, %v1031
    %v1728 = vpack.c.b16 %v1040, %v1032
    %v1729 = vpack.c.b16 %v1041, %v1033
    %v1730 = vpack.c.b16 %v1042, %v1034
    %v1731 = vpack.c.b16 %v1043, %v1035
    %v1732 = vpack.c.b16 %v1044, %v1036
    %v1733 = vpack.c.b16 %v1053, %v1045
    %v1734 = vpack.c.b16 %v1054, %v1046
    %v1735 = vpack.c.b16 %v1055, %v1047
    %v1736 = vpack.c.b16 %v1056, %v1048
    %v1737 = vpack.c.b16 %v1057, %v1049
    %v1738 = vpack.c.b16 %v1058, %v1050
    %v1739 = vpack.c.b16 %v1059, %v1051
    %v1740 = vpack.c.b16 %v1060, %v1052
    %v1741 = vpack.c.b16 %v1069, %v1061
    %v1742 = vpack.c.b16 %v1070, %v1062
    %v1743 = vpack.c.b16 %v1071, %v1063
    %v1744 = vpack.c.b16 %v1072, %v1064
    %v1745 = vpack.c.b16 %v1073, %v1065
    %v1746 = vpack.c.b16 %v1074, %v1066
    %v1747 = vpack.c.b16 %v1075, %v1067
    %v1748 = vpack.c.b16 %v1076, %v1068
    %v1749 = vpack.c.b16 %v1085, %v1077
    %v1750 = vpack.c.b16 %v1086, %v1078
    %v1751 = vpack.c.b16 %v1087, %v1079
    %v1752 = vpack.c.b16 %v1088, %v1080
    %v1753 = vpack.c.b16 %v1089, %v1081
    %v1754 = vpack.c.b16 %v1090, %v1082
    %v1755 = vpack.c.b16 %v1091, %v1083
    %v1756 = vpack.c.b16 %v1092, %v1084
    %v1757 = vpack.c.b16 %v1101, %v1093
    %v1758 = vpack.c.b16 %v1102, %v1094
    %v1759 = vpack.c.b16 %v1103, %v1095
    %v1760 = vpack.c.b16 %v1104, %v1096
    %v1761 = vpack.c.b16 %v1105, %v1097
    %v1762 = vpack.c.b16 %v1106, %v1098
    %v1763 = vpack.c.b16 %v1107, %v1099
    %v1764 = vpack.c.b16 %v1108, %v1100
    %v1765 = vpack.c.b16 %v1117, %v1109
    %v1766 = vpack.c.b16 %v1118, %v1110
    %v1767 = vpack.c.b16 %v1119, %v1111
    %v1768 = vpack.c.b16 %v1120, %v1112
    %v1769 = vpack.c.b16 %v1121, %v1113
    %v1770 = vpack.c.b16 %v1122, %v1114
    %v1771 = vpack.c.b16 %v1123, %v1115
    %v1772 = vpack.c.b16 %v1124, %v1116
    %v1773 = vpack.c.b16 %v1133, %v1125
    %v1774 = vpack.c.b16 %v1134, %v1126
    %v1775 = vpack.c.b16 %v1135, %v1127
    %v1776 = vpack.c.b16 %v1136, %v1128
    %v1777 = vpack.c.b16 %v1137, %v1129
    %v1778 = vpack.c.b16 %v1138, %v1130
    %v1779 = vpack.c.b16 %v1139, %v1131
    %v1780 = vpack.c.b16 %v1140, %v1132
    %v1781 = vpack.c.b16 %v1149, %v1141
    %v1782 = vpack.c.b16 %v1150, %v1142
    %v1783 = vpack.c.b16 %v1151, %v1143
    %v1784 = vpack.c.b16 %v1152, %v1144
    %v1785 = vpack.c.b16 %v1153, %v1145
    %v1786 = vpack.c.b16 %v1154, %v1146
    %v1787 = vpack.c.b16 %v1155, %v1147
    %v1788 = vpack.c.b16 %v1156, %v1148
    %v1789 = vpack.c.b16 %v1165, %v1157
    %v1790 = vpack.c.b16 %v1166, %v1158
    %v1791 = vpack.c.b16 %v1167, %v1159
    %v1792 = vpack.c.b16 %v1168, %v1160
    %v1793 = vpack.c.b16 %v1169, %v1161
    %v1794 = vpack.c.b16 %v1170, %v1162
    %v1795 = vpack.c.b16 %v1171, %v1163
    %v1796 = vpack.c.b16 %v1172, %v1164
    %v1797 = vpack.c.b16 %v1181, %v1173
    %v1798 = vpack.c.b16 %v1182, %v1174
    %v1799 = vpack.c.b16 %v1183, %v1175
    %v1800 = vpack.c.b16 %v1184, %v1176
    %v1801 = vpack.c.b16 %v1185, %v1177
    %v1802 = vpack.c.b16 %v1186, %v1178
    %v1803 = vpack.c.b16 %v1187, %v1179
    %v1804 = vpack.c.b16 %v1188, %v1180
    %v1805 = vpack.c.b16 %v1197, %v1189
    %v1806 = vpack.c.b16 %v1198, %v1190
    %v1807 = vpack.c.b16 %v1199, %v1191
    %v1808 = vpack.c.b16 %v1200, %v1192
    %v1809 = vpack.c.b16 %v1201, %v1193
    %v1810 = vpack.c.b16 %v1202, %v1194
    %v1811 = vpack.c.b16 %v1203, %v1195
    %v1812 = vpack.c.b16 %v1204, %v1196
    %v1813 = vpack.c.b16 %v1213, %v1205
    %v1814 = vpack.c.b16 %v1214, %v1206
    %v1815 = vpack.c.b16 %v1215, %v1207
    %v1816 = vpack.c.b16 %v1216, %v1208
    %v1817 = vpack.c.b16 %v1217, %v1209
    %v1818 = vpack.c.b16 %v1218, %v1210
    %v1819 = vpack.c.b16 %v1219, %v1211
    %v1820 = vpack.c.b16 %v1220, %v1212
    %v1821 = vpack.c.b16 %v1229, %v1221
    %v1822 = vpack.c.b16 %v1230, %v1222
    %v1823 = vpack.c.b16 %v1231, %v1223
    %v1824 = vpack.c.b16 %v1232, %v1224
    %v1825 = vpack.c.b16 %v1233, %v1225
    %v1826 = vpack.c.b16 %v1234, %v1226
    %v1827 = vpack.c.b16 %v1235, %v1227
    %v1828 = vpack.c.b16 %v1236, %v1228
    %v1829 = vpack.c.b16 %v1245, %v1237
    %v1830 = vpack.c.b16 %v1246, %v1238
    %v1831 = vpack.c.b16 %v1247, %v1239
    %v1832 = vpack.c.b16 %v1248, %v1240
    %v1833 = vpack.c.b16 %v1249, %v1241
    %v1834 = vpack.c.b16 %v1250, %v1242
    %v1835 = vpack.c.b16 %v1251, %v1243
    %v1836 = vpack.c.b16 %v1252, %v1244
    %v1837 = vpack.c.b16 %v1261, %v1253
    %v1838 = vpack.c.b16 %v1262, %v1254
    %v1839 = vpack.c.b16 %v1263, %v1255
    %v1840 = vpack.c.b16 %v1264, %v1256
    %v1841 = vpack.c.b16 %v1265, %v1257
    %v1842 = vpack.c.b16 %v1266, %v1258
    %v1843 = vpack.c.b16 %v1267, %v1259
    %v1844 = vpack.c.b16 %v1268, %v1260
    %v1845 = vpack.c.b16 %v1277, %v1269
    %v1846 = vpack.c.b16 %v1278, %v1270
    %v1847 = vpack.c.b16 %v1279, %v1271
    %v1848 = vpack.c.b16 %v1280, %v1272
    %v1849 = vpack.c.b16 %v1281, %v1273
    %v1850 = vpack.c.b16 %v1282, %v1274
    %v1851 = vpack.c.b16 %v1283, %v1275
    %v1852 = vpack.c.b16 %v1284, %v1276
    %v1853 = vpack.c.b16 %v1293, %v1285
    %v1854 = vpack.c.b16 %v1294, %v1286
    %v1855 = vpack.c.b16 %v1295, %v1287
    %v1856 = vpack.c.b16 %v1296, %v1288
    %v1857 = vpack.c.b16 %v1297, %v1289
    %v1858 = vpack.c.b16 %v1298, %v1290
    %v1859 = vpack.c.b16 %v1299, %v1291
    %v1860 = vpack.c.b16 %v1300, %v1292
    %v1861 = vpack.c.b16 %v1309, %v1301
    %v1862 = vpack.c.b16 %v1310, %v1302
    %v1863 = vpack.c.b16 %v1311, %v1303
    %v1864 = vpack.c.b16 %v1312, %v1304
    %v1865 = vpack.c.b16 %v1313, %v1305
    %v1866 = vpack.c.b16 %v1314, %v1306
    %v1867 = vpack.c.b16 %v1315, %v1307
    %v1868 = vpack.c.b16 %v1316, %v1308
    %v1869 = vpack.c.b16 %v1325, %v1317
    %v1870 = vpack.c.b16 %v1326, %v1318
    %v1871 = vpack.c.b16 %v1327, %v1319
    %v1872 = vpack.c.b16 %v1328, %v1320
    %v1873 = vpack.c.b16 %v1329, %v1321
    %v1874 = vpack.c.b16 %v1330, %v1322
    %v1875 = vpack.c.b16 %v1331, %v1323
    %v1876 = vpack.c.b16 %v1332, %v1324
    %v1877 = vpack.c.b16 %v1341, %v1333
    %v1878 = vpack.c.b16 %v1342, %v1334
    %v1879 = vpack.c.b16 %v1343, %v1335
    %v1880 = vpack.c.b16 %v1344, %v1336
    %v1881 = vpack.c.b16 %v1345, %v1337
    %v1882 = vpack.c.b16 %v1346, %v1338
    %v1883 = vpack.c.b16 %v1347, %v1339
    %v1884 = vpack.c.b16 %v1348, %v1340
    %v1885 = vpack.c.b16 %v1357, %v1349
    %v1886 = vpack.c.b16 %v1358, %v1350
    %v1887 = vpack.c.b16 %v1359, %v1351
    %v1888 = vpack.c.b16 %v1360, %v1352
    %v1889 = vpack.c.b16 %v1361, %v1353
    %v1890 = vpack.c.b16 %v1362, %v1354
    %v1891 = vpack.c.b16 %v1363, %v1355
    %v1892 = vpack.c.b16 %v1364, %v1356
    %v1893 = vpack.c.b16 %v1373, %v1365
    %v1894 = vpack.c.b16 %v1374, %v1366
    %v1895 = vpack.c.b16 %v1375, %v1367
    %v1896 = vpack.c.b16 %v1376, %v1368
    %v1897 = vpack.c.b16 %v1377, %v1369
    %v1898 = vpack.c.b16 %v1378, %v1370
    %v1899 = vpack.c.b16 %v1379, %v1371
    %v1900 = vpack.c.b16 %v1380, %v1372
    %v1901 = vpack.c.b16 %v1389, %v1381
    %v1902 = vpack.c.b16 %v1390, %v1382
    %v1903 = vpack.c.b16 %v1391, %v1383
    %v1904 = vpack.c.b16 %v1392, %v1384
    %v1905 = vpack.c.b16 %v1393, %v1385
    %v1906 = vpack.c.b16 %v1394, %v1386
    %v1907 = vpack.c.b16 %v1395, %v1387
    %v1908 = vpack.c.b16 %v1396, %v1388
    %v1909 = vpack.c.b16 %v1405, %v1397
    %v1910 = vpack.c.b16 %v1406, %v1398
    %v1911 = vpack.c.b16 %v1407, %v1399
    %v1912 = vpack.c.b16 %v1408, %v1400
    %v1913 = vpack.c.b16 %v1409, %v1401
    %v1914 = vpack.c.b16 %v1410, %v1402
    %v1915 = vpack.c.b16 %v1411, %v1403
    %v1916 = vpack.c.b16 %v1412, %v1404
    %v1917 = vpack.c.b16 %v1421, %v1413
    %v1918 = vpack.c.b16 %v1422, %v1414
    %v1919 = vpack.c.b16 %v1423, %v1415
    %v1920 = vpack.c.b16 %v1424, %v1416
    %v1921 = vpack.c.b16 %v1425, %v1417
    %v1922 = vpack.c.b16 %v1426, %v1418
    %v1923 = vpack.c.b16 %v1427, %v1419
    %v1924 = vpack.c.b16 %v1428, %v1420
    %v1925 = vpack.c.b16 %v1437, %v1429
    %v1926 = vpack.c.b16 %v1438, %v1430
    %v1927 = vpack.c.b16 %v1439, %v1431
    %v1928 = vpack.c.b16 %v1440, %v1432
    %v1929 = vpack.c.b16 %v1441, %v1433
    %v1930 = vpack.c.b16 %v1442, %v1434
    %v1931 = vpack.c.b16 %v1443, %v1435
    %v1932 = vpack.c.b16 %v1444, %v1436
    %v1933 = vpack.c.b16 %v1453, %v1445
    %v1934 = vpack.c.b16 %v1454, %v1446
    %v1935 = vpack.c.b16 %v1455, %v1447
    %v1936 = vpack.c.b16 %v1456, %v1448
    %v1937 = vpack.c.b16 %v1457, %v1449
    %v1938 = vpack.c.b16 %v1458, %v1450
    %v1939 = vpack.c.b16 %v1459, %v1451
    %v1940 = vpack.c.b16 %v1460, %v1452
    %v1941 = vpack.c.b16 %v1469, %v1461
    %v1942 = vpack.c.b16 %v1470, %v1462
    %v1943 = vpack.c.b16 %v1471, %v1463
    %v1944 = vpack.c.b16 %v1472, %v1464
    %v1945 = vpack.c.b16 %v1473, %v1465
    %v1946 = vpack.c.b16 %v1474, %v1466
    %v1947 = vpack.c.b16 %v1475, %v1467
    %v1948 = vpack.c.b16 %v1476, %v1468
    %v1949 = vpack.c.b16 %v1485, %v1477
    %v1950 = vpack.c.b16 %v1486, %v1478
    %v1951 = vpack.c.b16 %v1487, %v1479
    %v1952 = vpack.c.b16 %v1488, %v1480
    %v1953 = vpack.c.b16 %v1489, %v1481
    %v1954 = vpack.c.b16 %v1490, %v1482
    %v1955 = vpack.c.b16 %v1491, %v1483
    %v1956 = vpack.c.b16 %v1492, %v1484
    %v1957 = vpack.c.b16 %v1501, %v1493
    %v1958 = vpack.c.b16 %v1502, %v1494
    %v1959 = vpack.c.b16 %v1503, %v1495
    %v1960 = vpack.c.b16 %v1504, %v1496
    %v1961 = vpack.c.b16 %v1505, %v1497
    %v1962 = vpack.c.b16 %v1506, %v1498
    %v1963 = vpack.c.b16 %v1507, %v1499
    %v1964 = vpack.c.b16 %v1508, %v1500
    %v1965 = vpack.c.b16 %v1517, %v1509
    %v1966 = vpack.c.b16 %v1518, %v1510
    %v1967 = vpack.c.b16 %v1519, %v1511
    %v1968 = vpack.c.b16 %v1520, %v1512
    %v1969 = vpack.c.b16 %v1521, %v1513
    %v1970 = vpack.c.b16 %v1522, %v1514
    %v1971 = vpack.c.b16 %v1523, %v1515
    %v1972 = vpack.c.b16 %v1524, %v1516
    %v1973 = vpack.c.b16 %v1533, %v1525
    %v1974 = vpack.c.b16 %v1534, %v1526
    %v1975 = vpack.c.b16 %v1535, %v1527
    %v1976 = vpack.c.b16 %v1536, %v1528
    %v1977 = vpack.c.b16 %v1537, %v1529
    %v1978 = vpack.c.b16 %v1538, %v1530
    %v1979 = vpack.c.b16 %v1539, %v1531
    %v1980 = vpack.c.b16 %v1540, %v1532
    %v1981 = vpack.c.b16 %v1549, %v1541
    %v1982 = vpack.c.b16 %v1550, %v1542
    %v1983 = vpack.c.b16 %v1551, %v1543
    %v1984 = vpack.c.b16 %v1552, %v1544
    %v1985 = vpack.c.b16 %v1553, %v1545
    %v1986 = vpack.c.b16 %v1554, %v1546
    %v1987 = vpack.c.b16 %v1555, %v1547
    %v1988 = vpack.c.b16 %v1556, %v1548
    %v1989 = vpack.c.b16 %v1565, %v1557
    %v1990 = vpack.c.b16 %v1566, %v1558
    %v1991 = vpack.c.b16 %v1567, %v1559
    %v1992 = vpack.c.b16 %v1568, %v1560
    %v1993 = vpack.c.b16 %v1569, %v1561
    %v1994 = vpack.c.b16 %v1570, %v1562
    %v1995 = vpack.c.b16 %v1571, %v1563
    %v1996 = vpack.c.b16 %v1572, %v1564
    %v1997 = vpack.c.b16 %v1581, %v1573
    %v1998 = vpack.c.b16 %v1582, %v1574
    %v1999 = vpack.c.b16 %v1583, %v1575
    %v2000 = vpack.c.b16 %v1584, %v1576
    %v2001 = vpack.c.b16 %v1585, %v1577
    %v2002 = vpack.c.b16 %v1586, %v1578
    %v2003 = vpack.c.b16 %v1587, %v1579
    %v2004 = vpack.c.b16 %v1588, %v1580
    %v2005 = vpack.c.b16 %v1597, %v1589
    %v2006 = vpack.c.b16 %v1598, %v1590
    %v2007 = vpack.c.b16 %v1599, %v1591
    %v2008 = vpack.c.b16 %v1600, %v1592
    %v2009 = vpack.c.b16 %v1601, %v1593
    %v2010 = vpack.c.b16 %v1602, %v1594
    %v2011 = vpack.c.b16 %v1603, %v1595
    %v2012 = vpack.c.b16 %v1604, %v1596
    %v2013 = vpack.c.b16 %v1613, %v1605
    %v2014 = vpack.c.b16 %v1614, %v1606
    %v2015 = vpack.c.b16 %v1615, %v1607
    %v2016 = vpack.c.b16 %v1616, %v1608
    %v2017 = vpack.c.b16 %v1617, %v1609
    %v2018 = vpack.c.b16 %v1618, %v1610
    %v2019 = vpack.c.b16 %v1619, %v1611
    %v2020 = vpack.c.b16 %v1620, %v1612
    %v2021 = vpack.c.b16 %v1629, %v1621
    %v2022 = vpack.c.b16 %v1630, %v1622
    %v2023 = vpack.c.b16 %v1631, %v1623
    %v2024 = vpack.c.b16 %v1632, %v1624
    %v2025 = vpack.c.b16 %v1633, %v1625
    %v2026 = vpack.c.b16 %v1634, %v1626
    %v2027 = vpack.c.b16 %v1635, %v1627
    %v2028 = vpack.c.b16 %v1636, %v1628
    %v2029 = vpack.c.b16 %v1645, %v1637
    %v2030 = vpack.c.b16 %v1646, %v1638
    %v2031 = vpack.c.b16 %v1647, %v1639
    %v2032 = vpack.c.b16 %v1648, %v1640
    %v2033 = vpack.c.b16 %v1649, %v1641
    %v2034 = vpack.c.b16 %v1650, %v1642
    %v2035 = vpack.c.b16 %v1651, %v1643
    %v2036 = vpack.c.b16 %v1652, %v1644
    %2421 = vmatprep.subr.bf16.mxu0 %v1654
    %2422 = vmatpush1.bf16.msra.mxu0 %v1653
    %2423 = vmatprep.subr.bf16.mxu0 %v1662
    %2424 = vmatpush1.bf16.msra.mxu0 %v1661
    %2425 = vmatprep.subr.bf16.mxu0 %v1670
    %2426 = vmatpush1.bf16.msra.mxu0 %v1669
    %2427 = vmatprep.subr.bf16.mxu0 %v1678
    %2428 = vmatpush1.bf16.msra.mxu0 %v1677
    %2429 = vmatprep.subr.bf16.mxu0 %v1686
    %2430 = vmatpush1.bf16.msra.mxu0 %v1685
    %2431 = vmatprep.subr.bf16.mxu0 %v1694
    %2432 = vmatpush1.bf16.msra.mxu0 %v1693
    %2433 = vmatprep.subr.bf16.mxu0 %v1702
    %2434 = vmatpush1.bf16.msra.mxu0 %v1701
    %2435 = vmatprep.subr.bf16.mxu0 %v1710
    %2436 = vmatpush1.bf16.msra.mxu0 %v1709
    %2437 = vmatprep.subr.bf16.mxu0 %v1718
    %2438 = vmatpush1.bf16.msra.mxu0 %v1717
    %2439 = vmatprep.subr.bf16.mxu0 %v1726
    %2440 = vmatpush1.bf16.msra.mxu0 %v1725
    %2441 = vmatprep.subr.bf16.mxu0 %v1734
    %2442 = vmatpush1.bf16.msra.mxu0 %v1733
    %2443 = vmatprep.subr.bf16.mxu0 %v1742
    %2444 = vmatpush1.bf16.msra.mxu0 %v1741
    %2445 = vmatprep.subr.bf16.mxu0 %v1750
    %2446 = vmatpush1.bf16.msra.mxu0 %v1749
    %2447 = vmatprep.subr.bf16.mxu0 %v1758
    %2448 = vmatpush1.bf16.msra.mxu0 %v1757
    %2449 = vmatprep.subr.bf16.mxu0 %v1766
    %2450 = vmatpush1.bf16.msra.mxu0 %v1765
    %2451 = vmatprep.subr.bf16.mxu0 %v1774
    %2452 = vmatpush1.bf16.msra.mxu0 %v1773
    %2453 = vmatprep.mubr.bf16.mxu0 %v70
    %2454 = vmatmul.mubr.bf16.gmra.mrb[0].mxu0 %v69
    %v2455 = vpop.f32.mrb[0].mxu0
    %v2456 = vadd.f32 %v464, %v2455
    %v2457 = vpop.f32.mrb[0].mxu0
    %v2458 = vadd.f32 %v468, %v2457
    %v2459 = vpop.f32.mrb[0].mxu0
    %v2460 = vpop.f32.mrb[0].mxu0
    %2461 = vdwg.mxu0
    %2462 = vmatprep.subr.bf16.mxu0 %v1782
    %2463 = vmatpush1.bf16.msra.mxu0 %v1781
    %2464 = vmatprep.subr.bf16.mxu0 %v1790
    %2465 = vmatpush1.bf16.msra.mxu0 %v1789
    %2466 = vmatprep.subr.bf16.mxu0 %v1798
    %2467 = vmatpush1.bf16.msra.mxu0 %v1797
    %2468 = vmatprep.subr.bf16.mxu0 %v1806
    %2469 = vmatpush1.bf16.msra.mxu0 %v1805
    %2470 = vmatprep.subr.bf16.mxu0 %v1814
    %2471 = vmatpush1.bf16.msra.mxu0 %v1813
    %2472 = vmatprep.subr.bf16.mxu0 %v1822
    %2473 = vmatpush1.bf16.msra.mxu0 %v1821
    %2474 = vmatprep.subr.bf16.mxu0 %v1830
    %2475 = vmatpush1.bf16.msra.mxu0 %v1829
    %2476 = vmatprep.subr.bf16.mxu0 %v1838
    %2477 = vmatpush1.bf16.msra.mxu0 %v1837
    %2478 = vmatprep.subr.bf16.mxu0 %v1846
    %2479 = vmatpush1.bf16.msra.mxu0 %v1845
    %2480 = vmatprep.subr.bf16.mxu0 %v1854
    %2481 = vmatpush1.bf16.msra.mxu0 %v1853
    %2482 = vmatprep.subr.bf16.mxu0 %v1862
    %2483 = vmatpush1.bf16.msra.mxu0 %v1861
    %2484 = vmatprep.subr.bf16.mxu0 %v1870
    %2485 = vmatpush1.bf16.msra.mxu0 %v1869
    %2486 = vmatprep.subr.bf16.mxu0 %v1878
    %2487 = vmatpush1.bf16.msra.mxu0 %v1877
    %2488 = vmatprep.subr.bf16.mxu0 %v1886
    %2489 = vmatpush1.bf16.msra.mxu0 %v1885
    %2490 = vmatprep.subr.bf16.mxu0 %v1894
    %2491 = vmatpush1.bf16.msra.mxu0 %v1893
    %2492 = vmatprep.subr.bf16.mxu0 %v1902
    %2493 = vmatpush1.bf16.msra.mxu0 %v1901
    %2494 = vmatprep.mubr.bf16.mxu0 %v72
    %2495 = vmatmul.mubr.bf16.gmra.mrb[0].mxu0 %v71
    %v2496 = vpop.f32.mrb[0].mxu0
    %v2497 = vadd.f32 %v2456, %v2496
    %v2498 = vpop.f32.mrb[0].mxu0
    %v2499 = vadd.f32 %v2458, %v2498
    %v2500 = vpop.f32.mrb[0].mxu0
    %v2501 = vpop.f32.mrb[0].mxu0
    %2502 = vdwg.mxu0
    %2503 = vmatprep.subr.bf16.mxu0 %v1910
    %2504 = vmatpush1.bf16.msra.mxu0 %v1909
    %2505 = vmatprep.subr.bf16.mxu0 %v1918
    %2506 = vmatpush1.bf16.msra.mxu0 %v1917
    %2507 = vmatprep.subr.bf16.mxu0 %v1926
    %2508 = vmatpush1.bf16.msra.mxu0 %v1925
    %2509 = vmatprep.subr.bf16.mxu0 %v1934
    %2510 = vmatpush1.bf16.msra.mxu0 %v1933
    %2511 = vmatprep.subr.bf16.mxu0 %v1942
    %2512 = vmatpush1.bf16.msra.mxu0 %v1941
    %2513 = vmatprep.subr.bf16.mxu0 %v1950
    %2514 = vmatpush1.bf16.msra.mxu0 %v1949
    %2515 = vmatprep.subr.bf16.mxu0 %v1958
    %2516 = vmatpush1.bf16.msra.mxu0 %v1957
    %2517 = vmatprep.subr.bf16.mxu0 %v1966
    %2518 = vmatpush1.bf16.msra.mxu0 %v1965
    %2519 = vmatprep.subr.bf16.mxu0 %v1974
    %2520 = vmatpush1.bf16.msra.mxu0 %v1973
    %2521 = vmatprep.subr.bf16.mxu0 %v1982
    %2522 = vmatpush1.bf16.msra.mxu0 %v1981
    %2523 = vmatprep.subr.bf16.mxu0 %v1990
    %2524 = vmatpush1.bf16.msra.mxu0 %v1989
    %2525 = vmatprep.subr.bf16.mxu0 %v1998
    %2526 = vmatpush1.bf16.msra.mxu0 %v1997
    %2527 = vmatprep.subr.bf16.mxu0 %v2006
    %2528 = vmatpush1.bf16.msra.mxu0 %v2005
    %2529 = vmatprep.subr.bf16.mxu0 %v2014
    %2530 = vmatpush1.bf16.msra.mxu0 %v2013
    %2531 = vmatprep.subr.bf16.mxu0 %v2022
    %2532 = vmatpush1.bf16.msra.mxu0 %v2021
    %2533 = vmatprep.subr.bf16.mxu0 %v2030
    %2534 = vmatpush1.bf16.msra.mxu0 %v2029
    %2535 = vmatprep.mubr.bf16.mxu0 %v74
    %2536 = vmatmul.mubr.bf16.gmra.mrb[0].mxu0 %v73
    %v2537 = vpop.f32.mrb[0].mxu0
    %v2538 = vadd.f32 %v2497, %v2537
    %v2539 = vpop.f32.mrb[0].mxu0
    %v2540 = vadd.f32 %v2499, %v2539
    %v2541 = vpop.f32.mrb[0].mxu0
    %v2542 = vpop.f32.mrb[0].mxu0
    %2543 = vdwg.mxu0
    %2544 = vmatprep.subr.bf16.mxu0 %v1656
    %2545 = vmatpush1.bf16.msra.mxu0 %v1655
    %2546 = vmatprep.subr.bf16.mxu0 %v1664
    %2547 = vmatpush1.bf16.msra.mxu0 %v1663
    %2548 = vmatprep.subr.bf16.mxu0 %v1672
    %2549 = vmatpush1.bf16.msra.mxu0 %v1671
    %2550 = vmatprep.subr.bf16.mxu0 %v1680
    %2551 = vmatpush1.bf16.msra.mxu0 %v1679
    %2552 = vmatprep.subr.bf16.mxu0 %v1688
    %2553 = vmatpush1.bf16.msra.mxu0 %v1687
    %2554 = vmatprep.subr.bf16.mxu0 %v1696
    %2555 = vmatpush1.bf16.msra.mxu0 %v1695
    %2556 = vmatprep.subr.bf16.mxu0 %v1704
    %2557 = vmatpush1.bf16.msra.mxu0 %v1703
    %2558 = vmatprep.subr.bf16.mxu0 %v1712
    %2559 = vmatpush1.bf16.msra.mxu0 %v1711
    %2560 = vmatprep.subr.bf16.mxu0 %v1720
    %2561 = vmatpush1.bf16.msra.mxu0 %v1719
    %2562 = vmatprep.subr.bf16.mxu0 %v1728
    %2563 = vmatpush1.bf16.msra.mxu0 %v1727
    %2564 = vmatprep.subr.bf16.mxu0 %v1736
    %2565 = vmatpush1.bf16.msra.mxu0 %v1735
    %2566 = vmatprep.subr.bf16.mxu0 %v1744
    %2567 = vmatpush1.bf16.msra.mxu0 %v1743
    %2568 = vmatprep.subr.bf16.mxu0 %v1752
    %2569 = vmatpush1.bf16.msra.mxu0 %v1751
    %2570 = vmatprep.subr.bf16.mxu0 %v1760
    %2571 = vmatpush1.bf16.msra.mxu0 %v1759
    %2572 = vmatprep.subr.bf16.mxu0 %v1768
    %2573 = vmatpush1.bf16.msra.mxu0 %v1767
    %2574 = vmatprep.subr.bf16.mxu0 %v1776
    %2575 = vmatpush1.bf16.msra.mxu0 %v1775
    %2576 = vmatprep.mubr.bf16.mxu0 %v70
    %2577 = vmatmul.mubr.bf16.gmra.mrb[0].mxu0 %v69
    %v2578 = vpop.f32.mrb[0].mxu0
    %v2579 = vadd.f32 %v472, %v2578
    %v2580 = vpop.f32.mrb[0].mxu0
    %v2581 = vadd.f32 %v476, %v2580
    %v2582 = vpop.f32.mrb[0].mxu0
    %v2583 = vpop.f32.mrb[0].mxu0
    %2584 = vdwg.mxu0
    %2585 = vmatprep.subr.bf16.mxu0 %v1784
    %2586 = vmatpush1.bf16.msra.mxu0 %v1783
    %2587 = vmatprep.subr.bf16.mxu0 %v1792
    %2588 = vmatpush1.bf16.msra.mxu0 %v1791
    %2589 = vmatprep.subr.bf16.mxu0 %v1800
    %2590 = vmatpush1.bf16.msra.mxu0 %v1799
    %2591 = vmatprep.subr.bf16.mxu0 %v1808
    %2592 = vmatpush1.bf16.msra.mxu0 %v1807
    %2593 = vmatprep.subr.bf16.mxu0 %v1816
    %2594 = vmatpush1.bf16.msra.mxu0 %v1815
    %2595 = vmatprep.subr.bf16.mxu0 %v1824
    %2596 = vmatpush1.bf16.msra.mxu0 %v1823
    %2597 = vmatprep.subr.bf16.mxu0 %v1832
    %2598 = vmatpush1.bf16.msra.mxu0 %v1831
    %2599 = vmatprep.subr.bf16.mxu0 %v1840
    %2600 = vmatpush1.bf16.msra.mxu0 %v1839
    %2601 = vmatprep.subr.bf16.mxu0 %v1848
    %2602 = vmatpush1.bf16.msra.mxu0 %v1847
    %2603 = vmatprep.subr.bf16.mxu0 %v1856
    %2604 = vmatpush1.bf16.msra.mxu0 %v1855
    %2605 = vmatprep.subr.bf16.mxu0 %v1864
    %2606 = vmatpush1.bf16.msra.mxu0 %v1863
    %2607 = vmatprep.subr.bf16.mxu0 %v1872
    %2608 = vmatpush1.bf16.msra.mxu0 %v1871
    %2609 = vmatprep.subr.bf16.mxu0 %v1880
    %2610 = vmatpush1.bf16.msra.mxu0 %v1879
    %2611 = vmatprep.subr.bf16.mxu0 %v1888
    %2612 = vmatpush1.bf16.msra.mxu0 %v1887
    %2613 = vmatprep.subr.bf16.mxu0 %v1896
    %2614 = vmatpush1.bf16.msra.mxu0 %v1895
    %2615 = vmatprep.subr.bf16.mxu0 %v1904
    %2616 = vmatpush1.bf16.msra.mxu0 %v1903
    %2617 = vmatprep.mubr.bf16.mxu0 %v72
    %2618 = vmatmul.mubr.bf16.gmra.mrb[0].mxu0 %v71
    %v2619 = vpop.f32.mrb[0].mxu0
    %v2620 = vadd.f32 %v2579, %v2619
    %v2621 = vpop.f32.mrb[0].mxu0
    %v2622 = vadd.f32 %v2581, %v2621
    %v2623 = vpop.f32.mrb[0].mxu0
    %v2624 = vpop.f32.mrb[0].mxu0
    %2625 = vdwg.mxu0
    %2626 = vmatprep.subr.bf16.mxu0 %v1912
    %2627 = vmatpush1.bf16.msra.mxu0 %v1911
    %2628 = vmatprep.subr.bf16.mxu0 %v1920
    %2629 = vmatpush1.bf16.msra.mxu0 %v1919
    %2630 = vmatprep.subr.bf16.mxu0 %v1928
    %2631 = vmatpush1.bf16.msra.mxu0 %v1927
    %2632 = vmatprep.subr.bf16.mxu0 %v1936
    %2633 = vmatpush1.bf16.msra.mxu0 %v1935
    %2634 = vmatprep.subr.bf16.mxu0 %v1944
    %2635 = vmatpush1.bf16.msra.mxu0 %v1943
    %2636 = vmatprep.subr.bf16.mxu0 %v1952
    %2637 = vmatpush1.bf16.msra.mxu0 %v1951
    %2638 = vmatprep.subr.bf16.mxu0 %v1960
    %2639 = vmatpush1.bf16.msra.mxu0 %v1959
    %2640 = vmatprep.subr.bf16.mxu0 %v1968
    %2641 = vmatpush1.bf16.msra.mxu0 %v1967
    %2642 = vmatprep.subr.bf16.mxu0 %v1976
    %2643 = vmatpush1.bf16.msra.mxu0 %v1975
    %2644 = vmatprep.subr.bf16.mxu0 %v1984
    %2645 = vmatpush1.bf16.msra.mxu0 %v1983
    %2646 = vmatprep.subr.bf16.mxu0 %v1992
    %2647 = vmatpush1.bf16.msra.mxu0 %v1991
    %2648 = vmatprep.subr.bf16.mxu0 %v2000
    %2649 = vmatpush1.bf16.msra.mxu0 %v1999
    %2650 = vmatprep.subr.bf16.mxu0 %v2008
    %2651 = vmatpush1.bf16.msra.mxu0 %v2007
    %2652 = vmatprep.subr.bf16.mxu0 %v2016
    %2653 = vmatpush1.bf16.msra.mxu0 %v2015
    %2654 = vmatprep.subr.bf16.mxu0 %v2024
    %2655 = vmatpush1.bf16.msra.mxu0 %v2023
    %2656 = vmatprep.subr.bf16.mxu0 %v2032
    %2657 = vmatpush1.bf16.msra.mxu0 %v2031
    %2658 = vmatprep.mubr.bf16.mxu0 %v74
    %2659 = vmatmul.mubr.bf16.gmra.mrb[0].mxu0 %v73
    %v2660 = vpop.f32.mrb[0].mxu0
    %v2661 = vadd.f32 %v2620, %v2660
    %v2662 = vpop.f32.mrb[0].mxu0
    %v2663 = vadd.f32 %v2622, %v2662
    %v2664 = vpop.f32.mrb[0].mxu0
    %v2665 = vpop.f32.mrb[0].mxu0
    %2666 = vdwg.mxu0
    %2667 = vmatprep.subr.bf16.mxu0 %v1658
    %2668 = vmatpush1.bf16.msra.mxu0 %v1657
    %2669 = vmatprep.subr.bf16.mxu0 %v1666
    %2670 = vmatpush1.bf16.msra.mxu0 %v1665
    %2671 = vmatprep.subr.bf16.mxu0 %v1674
    %2672 = vmatpush1.bf16.msra.mxu0 %v1673
    %2673 = vmatprep.subr.bf16.mxu0 %v1682
    %2674 = vmatpush1.bf16.msra.mxu0 %v1681
    %2675 = vmatprep.subr.bf16.mxu0 %v1690
    %2676 = vmatpush1.bf16.msra.mxu0 %v1689
    %2677 = vmatprep.subr.bf16.mxu0 %v1698
    %2678 = vmatpush1.bf16.msra.mxu0 %v1697
    %2679 = vmatprep.subr.bf16.mxu0 %v1706
    %2680 = vmatpush1.bf16.msra.mxu0 %v1705
    %2681 = vmatprep.subr.bf16.mxu0 %v1714
    %2682 = vmatpush1.bf16.msra.mxu0 %v1713
    %2683 = vmatprep.subr.bf16.mxu0 %v1722
    %2684 = vmatpush1.bf16.msra.mxu0 %v1721
    %2685 = vmatprep.subr.bf16.mxu0 %v1730
    %2686 = vmatpush1.bf16.msra.mxu0 %v1729
    %2687 = vmatprep.subr.bf16.mxu0 %v1738
    %2688 = vmatpush1.bf16.msra.mxu0 %v1737
    %2689 = vmatprep.subr.bf16.mxu0 %v1746
    %2690 = vmatpush1.bf16.msra.mxu0 %v1745
    %2691 = vmatprep.subr.bf16.mxu0 %v1754
    %2692 = vmatpush1.bf16.msra.mxu0 %v1753
    %2693 = vmatprep.subr.bf16.mxu0 %v1762
    %2694 = vmatpush1.bf16.msra.mxu0 %v1761
    %2695 = vmatprep.subr.bf16.mxu0 %v1770
    %2696 = vmatpush1.bf16.msra.mxu0 %v1769
    %2697 = vmatprep.subr.bf16.mxu0 %v1778
    %2698 = vmatpush1.bf16.msra.mxu0 %v1777
    %2699 = vmatprep.mubr.bf16.mxu0 %v70
    %2700 = vmatmul.mubr.bf16.gmra.mrb[0].mxu0 %v69
    %v2701 = vpop.f32.mrb[0].mxu0
    %v2702 = vadd.f32 %v480, %v2701
    %v2703 = vpop.f32.mrb[0].mxu0
    %v2704 = vadd.f32 %v484, %v2703
    %v2705 = vpop.f32.mrb[0].mxu0
    %v2706 = vpop.f32.mrb[0].mxu0
    %2707 = vdwg.mxu0
    %2708 = vmatprep.subr.bf16.mxu0 %v1786
    %2709 = vmatpush1.bf16.msra.mxu0 %v1785
    %2710 = vmatprep.subr.bf16.mxu0 %v1794
    %2711 = vmatpush1.bf16.msra.mxu0 %v1793
    %2712 = vmatprep.subr.bf16.mxu0 %v1802
    %2713 = vmatpush1.bf16.msra.mxu0 %v1801
    %2714 = vmatprep.subr.bf16.mxu0 %v1810
    %2715 = vmatpush1.bf16.msra.mxu0 %v1809
    %2716 = vmatprep.subr.bf16.mxu0 %v1818
    %2717 = vmatpush1.bf16.msra.mxu0 %v1817
    %2718 = vmatprep.subr.bf16.mxu0 %v1826
    %2719 = vmatpush1.bf16.msra.mxu0 %v1825
    %2720 = vmatprep.subr.bf16.mxu0 %v1834
    %2721 = vmatpush1.bf16.msra.mxu0 %v1833
    %2722 = vmatprep.subr.bf16.mxu0 %v1842
    %2723 = vmatpush1.bf16.msra.mxu0 %v1841
    %2724 = vmatprep.subr.bf16.mxu0 %v1850
    %2725 = vmatpush1.bf16.msra.mxu0 %v1849
    %2726 = vmatprep.subr.bf16.mxu0 %v1858
    %2727 = vmatpush1.bf16.msra.mxu0 %v1857
    %2728 = vmatprep.subr.bf16.mxu0 %v1866
    %2729 = vmatpush1.bf16.msra.mxu0 %v1865
    %2730 = vmatprep.subr.bf16.mxu0 %v1874
    %2731 = vmatpush1.bf16.msra.mxu0 %v1873
    %2732 = vmatprep.subr.bf16.mxu0 %v1882
    %2733 = vmatpush1.bf16.msra.mxu0 %v1881
    %2734 = vmatprep.subr.bf16.mxu0 %v1890
    %2735 = vmatpush1.bf16.msra.mxu0 %v1889
    %2736 = vmatprep.subr.bf16.mxu0 %v1898
    %2737 = vmatpush1.bf16.msra.mxu0 %v1897
    %2738 = vmatprep.subr.bf16.mxu0 %v1906
    %2739 = vmatpush1.bf16.msra.mxu0 %v1905
    %2740 = vmatprep.mubr.bf16.mxu0 %v72
    %2741 = vmatmul.mubr.bf16.gmra.mrb[0].mxu0 %v71
    %v2742 = vpop.f32.mrb[0].mxu0
    %v2743 = vadd.f32 %v2702, %v2742
    %v2744 = vpop.f32.mrb[0].mxu0
    %v2745 = vadd.f32 %v2704, %v2744
    %v2746 = vpop.f32.mrb[0].mxu0
    %v2747 = vpop.f32.mrb[0].mxu0
    %2748 = vdwg.mxu0
    %2749 = vmatprep.subr.bf16.mxu0 %v1914
    %2750 = vmatpush1.bf16.msra.mxu0 %v1913
    %2751 = vmatprep.subr.bf16.mxu0 %v1922
    %2752 = vmatpush1.bf16.msra.mxu0 %v1921
    %2753 = vmatprep.subr.bf16.mxu0 %v1930
    %2754 = vmatpush1.bf16.msra.mxu0 %v1929
    %2755 = vmatprep.subr.bf16.mxu0 %v1938
    %2756 = vmatpush1.bf16.msra.mxu0 %v1937
    %2757 = vmatprep.subr.bf16.mxu0 %v1946
    %2758 = vmatpush1.bf16.msra.mxu0 %v1945
    %2759 = vmatprep.subr.bf16.mxu0 %v1954
    %2760 = vmatpush1.bf16.msra.mxu0 %v1953
    %2761 = vmatprep.subr.bf16.mxu0 %v1962
    %2762 = vmatpush1.bf16.msra.mxu0 %v1961
    %2763 = vmatprep.subr.bf16.mxu0 %v1970
    %2764 = vmatpush1.bf16.msra.mxu0 %v1969
    %2765 = vmatprep.subr.bf16.mxu0 %v1978
    %2766 = vmatpush1.bf16.msra.mxu0 %v1977
    %2767 = vmatprep.subr.bf16.mxu0 %v1986
    %2768 = vmatpush1.bf16.msra.mxu0 %v1985
    %2769 = vmatprep.subr.bf16.mxu0 %v1994
    %2770 = vmatpush1.bf16.msra.mxu0 %v1993
    %2771 = vmatprep.subr.bf16.mxu0 %v2002
    %2772 = vmatpush1.bf16.msra.mxu0 %v2001
    %2773 = vmatprep.subr.bf16.mxu0 %v2010
    %2774 = vmatpush1.bf16.msra.mxu0 %v2009
    %2775 = vmatprep.subr.bf16.mxu0 %v2018
    %2776 = vmatpush1.bf16.msra.mxu0 %v2017
    %2777 = vmatprep.subr.bf16.mxu0 %v2026
    %2778 = vmatpush1.bf16.msra.mxu0 %v2025
    %2779 = vmatprep.subr.bf16.mxu0 %v2034
    %2780 = vmatpush1.bf16.msra.mxu0 %v2033
    %2781 = vmatprep.mubr.bf16.mxu0 %v74
    %2782 = vmatmul.mubr.bf16.gmra.mrb[0].mxu0 %v73
    %v2783 = vpop.f32.mrb[0].mxu0
    %v2784 = vadd.f32 %v2743, %v2783
    %v2785 = vpop.f32.mrb[0].mxu0
    %v2786 = vadd.f32 %v2745, %v2785
    %v2787 = vpop.f32.mrb[0].mxu0
    %v2788 = vpop.f32.mrb[0].mxu0
    %2789 = vdwg.mxu0
    %2790 = vmatprep.subr.bf16.mxu0 %v1660
    %2791 = vmatpush1.bf16.msra.mxu0 %v1659
    %2792 = vmatprep.subr.bf16.mxu0 %v1668
    %2793 = vmatpush1.bf16.msra.mxu0 %v1667
    %2794 = vmatprep.subr.bf16.mxu0 %v1676
    %2795 = vmatpush1.bf16.msra.mxu0 %v1675
    %2796 = vmatprep.subr.bf16.mxu0 %v1684
    %2797 = vmatpush1.bf16.msra.mxu0 %v1683
    %2798 = vmatprep.subr.bf16.mxu0 %v1692
    %2799 = vmatpush1.bf16.msra.mxu0 %v1691
    %2800 = vmatprep.subr.bf16.mxu0 %v1700
    %2801 = vmatpush1.bf16.msra.mxu0 %v1699
    %2802 = vmatprep.subr.bf16.mxu0 %v1708
    %2803 = vmatpush1.bf16.msra.mxu0 %v1707
    %2804 = vmatprep.subr.bf16.mxu0 %v1716
    %2805 = vmatpush1.bf16.msra.mxu0 %v1715
    %2806 = vmatprep.subr.bf16.mxu0 %v1724
    %2807 = vmatpush1.bf16.msra.mxu0 %v1723
    %2808 = vmatprep.subr.bf16.mxu0 %v1732
    %2809 = vmatpush1.bf16.msra.mxu0 %v1731
    %2810 = vmatprep.subr.bf16.mxu0 %v1740
    %2811 = vmatpush1.bf16.msra.mxu0 %v1739
    %2812 = vmatprep.subr.bf16.mxu0 %v1748
    %2813 = vmatpush1.bf16.msra.mxu0 %v1747
    %2814 = vmatprep.subr.bf16.mxu0 %v1756
    %2815 = vmatpush1.bf16.msra.mxu0 %v1755
    %2816 = vmatprep.subr.bf16.mxu0 %v1764
    %2817 = vmatpush1.bf16.msra.mxu0 %v1763
    %2818 = vmatprep.subr.bf16.mxu0 %v1772
    %2819 = vmatpush1.bf16.msra.mxu0 %v1771
    %2820 = vmatprep.subr.bf16.mxu0 %v1780
    %2821 = vmatpush1.bf16.msra.mxu0 %v1779
    %2822 = vmatprep.mubr.bf16.mxu0 %v70
    %2823 = vmatmul.mubr.bf16.gmra.mrb[0].mxu0 %v69
    %v2824 = vpop.f32.mrb[0].mxu0
    %v2825 = vadd.f32 %v488, %v2824
    %v2826 = vpop.f32.mrb[0].mxu0
    %v2827 = vadd.f32 %v492, %v2826
    %v2828 = vpop.f32.mrb[0].mxu0
    %v2829 = vpop.f32.mrb[0].mxu0
    %2830 = vdwg.mxu0
    %2831 = vmatprep.subr.bf16.mxu0 %v1788
    %2832 = vmatpush1.bf16.msra.mxu0 %v1787
    %2833 = vmatprep.subr.bf16.mxu0 %v1796
    %2834 = vmatpush1.bf16.msra.mxu0 %v1795
    %2835 = vmatprep.subr.bf16.mxu0 %v1804
    %2836 = vmatpush1.bf16.msra.mxu0 %v1803
    %2837 = vmatprep.subr.bf16.mxu0 %v1812
    %2838 = vmatpush1.bf16.msra.mxu0 %v1811
    %2839 = vmatprep.subr.bf16.mxu0 %v1820
    %2840 = vmatpush1.bf16.msra.mxu0 %v1819
    %2841 = vmatprep.subr.bf16.mxu0 %v1828
    %2842 = vmatpush1.bf16.msra.mxu0 %v1827
    %2843 = vmatprep.subr.bf16.mxu0 %v1836
    %2844 = vmatpush1.bf16.msra.mxu0 %v1835
    %2845 = vmatprep.subr.bf16.mxu0 %v1844
    %2846 = vmatpush1.bf16.msra.mxu0 %v1843
    %2847 = vmatprep.subr.bf16.mxu0 %v1852
    %2848 = vmatpush1.bf16.msra.mxu0 %v1851
    %2849 = vmatprep.subr.bf16.mxu0 %v1860
    %2850 = vmatpush1.bf16.msra.mxu0 %v1859
    %2851 = vmatprep.subr.bf16.mxu0 %v1868
    %2852 = vmatpush1.bf16.msra.mxu0 %v1867
    %2853 = vmatprep.subr.bf16.mxu0 %v1876
    %2854 = vmatpush1.bf16.msra.mxu0 %v1875
    %2855 = vmatprep.subr.bf16.mxu0 %v1884
    %2856 = vmatpush1.bf16.msra.mxu0 %v1883
    %2857 = vmatprep.subr.bf16.mxu0 %v1892
    %2858 = vmatpush1.bf16.msra.mxu0 %v1891
    %2859 = vmatprep.subr.bf16.mxu0 %v1900
    %2860 = vmatpush1.bf16.msra.mxu0 %v1899
    %2861 = vmatprep.subr.bf16.mxu0 %v1908
    %2862 = vmatpush1.bf16.msra.mxu0 %v1907
    %2863 = vmatprep.mubr.bf16.mxu0 %v72
    %2864 = vmatmul.mubr.bf16.gmra.mrb[0].mxu0 %v71
    %v2865 = vpop.f32.mrb[0].mxu0
    %v2866 = vadd.f32 %v2825, %v2865
    %v2867 = vpop.f32.mrb[0].mxu0
    %v2868 = vadd.f32 %v2827, %v2867
    %v2869 = vpop.f32.mrb[0].mxu0
    %v2870 = vpop.f32.mrb[0].mxu0
    %2871 = vdwg.mxu0
    %2872 = vmatprep.subr.bf16.mxu0 %v1916
    %2873 = vmatpush1.bf16.msra.mxu0 %v1915
    %2874 = vmatprep.subr.bf16.mxu0 %v1924
    %2875 = vmatpush1.bf16.msra.mxu0 %v1923
    %2876 = vmatprep.subr.bf16.mxu0 %v1932
    %2877 = vmatpush1.bf16.msra.mxu0 %v1931
    %2878 = vmatprep.subr.bf16.mxu0 %v1940
    %2879 = vmatpush1.bf16.msra.mxu0 %v1939
    %2880 = vmatprep.subr.bf16.mxu0 %v1948
    %2881 = vmatpush1.bf16.msra.mxu0 %v1947
    %2882 = vmatprep.subr.bf16.mxu0 %v1956
    %2883 = vmatpush1.bf16.msra.mxu0 %v1955
    %2884 = vmatprep.subr.bf16.mxu0 %v1964
    %2885 = vmatpush1.bf16.msra.mxu0 %v1963
    %2886 = vmatprep.subr.bf16.mxu0 %v1972
    %2887 = vmatpush1.bf16.msra.mxu0 %v1971
    %2888 = vmatprep.subr.bf16.mxu0 %v1980
    %2889 = vmatpush1.bf16.msra.mxu0 %v1979
    %2890 = vmatprep.subr.bf16.mxu0 %v1988
    %2891 = vmatpush1.bf16.msra.mxu0 %v1987
    %2892 = vmatprep.subr.bf16.mxu0 %v1996
    %2893 = vmatpush1.bf16.msra.mxu0 %v1995
    %2894 = vmatprep.subr.bf16.mxu0 %v2004
    %2895 = vmatpush1.bf16.msra.mxu0 %v2003
    %2896 = vmatprep.subr.bf16.mxu0 %v2012
    %2897 = vmatpush1.bf16.msra.mxu0 %v2011
    %2898 = vmatprep.subr.bf16.mxu0 %v2020
    %2899 = vmatpush1.bf16.msra.mxu0 %v2019
    %2900 = vmatprep.subr.bf16.mxu0 %v2028
    %2901 = vmatpush1.bf16.msra.mxu0 %v2027
    %2902 = vmatprep.subr.bf16.mxu0 %v2036
    %2903 = vmatpush1.bf16.msra.mxu0 %v2035
    %2904 = vmatprep.mubr.bf16.mxu0 %v74
    %2905 = vmatmul.mubr.bf16.gmra.mrb[0].mxu0 %v73
    %v2906 = vpop.f32.mrb[0].mxu0
    %v2907 = vadd.f32 %v2866, %v2906
    %v2908 = vpop.f32.mrb[0].mxu0
    %v2909 = vadd.f32 %v2868, %v2908
    %v2910 = vpop.f32.mrb[0].mxu0
    %v2911 = vpop.f32.mrb[0].mxu0
    %2912 = vdwg.mxu0
    %v2913 = vpack.c.bf16 %v2538, %v2538
    %v2914 = vpack.c.bf16 %v2540, %v2540
    %v2915 = vpack.c.bf16 %v2661, %v2661
    %v2916 = vpack.c.bf16 %v2663, %v2663
    %v2917 = vpack.c.bf16 %v2784, %v2784
    %v2918 = vpack.c.bf16 %v2786, %v2786
    %v2919 = vpack.c.bf16 %v2907, %v2907
    %v2920 = vpack.c.bf16 %v2909, %v2909
    %v2921 = vld [vmem:[%s3] sm:$0xff]
    %v2922 = vld [vmem:[%s3 + $0x8] sm:$0xff]
    %v2923 = vld [vmem:[%s3 + $0x10] sm:$0xff]
    %v2924 = vld [vmem:[%s3 + $0x18] sm:$0xff]
    %v2925 = vld [vmem:[%s3 + $0x20] sm:$0xff]
    %v2926 = vld [vmem:[%s3 + $0x28] sm:$0xff]
    %v2927 = vld [vmem:[%s3 + $0x30] sm:$0xff]
    %v2928 = vld [vmem:[%s3 + $0x38] sm:$0xff]
    %v2929 = vld [vmem:[%s3 + $0x40] sm:$0xff]
    %v2930 = vld [vmem:[%s3 + $0x48] sm:$0xff]
    %v2931 = vld [vmem:[%s3 + $0x50] sm:$0xff]
    %v2932 = vld [vmem:[%s3 + $0x58] sm:$0xff]
    %v2933 = vld [vmem:[%s3 + $0x60] sm:$0xff]
    %v2934 = vld [vmem:[%s3 + $0x68] sm:$0xff]
    %v2935 = vld [vmem:[%s3 + $0x70] sm:$0xff]
    %v2936 = vld [vmem:[%s3 + $0x78] sm:$0xff]
    %v2937 = vld [vmem:[%s3 + $0x80] sm:$0xff]
    %v2938 = vld [vmem:[%s3 + $0x88] sm:$0xff]
    %v2939 = vld [vmem:[%s3 + $0x90] sm:$0xff]
    %v2940 = vld [vmem:[%s3 + $0x98] sm:$0xff]
    %v2941 = vld [vmem:[%s3 + $0xa0] sm:$0xff]
    %v2942 = vld [vmem:[%s3 + $0xa8] sm:$0xff]
    %v2943 = vld [vmem:[%s3 + $0xb0] sm:$0xff]
    %v2944 = vld [vmem:[%s3 + $0xb8] sm:$0xff]
    %v2945 = vld [vmem:[%s3 + $0xc0] sm:$0xff]
    %v2946 = vld [vmem:[%s3 + $0xc8] sm:$0xff]
    %v2947 = vld [vmem:[%s3 + $0xd0] sm:$0xff]
    %v2948 = vld [vmem:[%s3 + $0xd8] sm:$0xff]
    %v2949 = vld [vmem:[%s3 + $0xe0] sm:$0xff]
    %v2950 = vld [vmem:[%s3 + $0xe8] sm:$0xff]
    %v2951 = vld [vmem:[%s3 + $0xf0] sm:$0xff]
    %v2952 = vld [vmem:[%s3 + $0xf8] sm:$0xff]
    %v2953 = vld [vmem:[%s3 + $0x100] sm:$0xff]
    %v2954 = vld [vmem:[%s3 + $0x108] sm:$0xff]
    %v2955 = vld [vmem:[%s3 + $0x110] sm:$0xff]
    %v2956 = vld [vmem:[%s3 + $0x118] sm:$0xff]
    %v2957 = vld [vmem:[%s3 + $0x120] sm:$0xff]
    %v2958 = vld [vmem:[%s3 + $0x128] sm:$0xff]
    %v2959 = vld [vmem:[%s3 + $0x130] sm:$0xff]
    %v2960 = vld [vmem:[%s3 + $0x138] sm:$0xff]
    %v2961 = vld [vmem:[%s3 + $0x140] sm:$0xff]
    %v2962 = vld [vmem:[%s3 + $0x148] sm:$0xff]
    %v2963 = vld [vmem:[%s3 + $0x150] sm:$0xff]
    %v2964 = vld [vmem:[%s3 + $0x158] sm:$0xff]
    %v2965 = vld [vmem:[%s3 + $0x160] sm:$0xff]
    %v2966 = vld [vmem:[%s3 + $0x168] sm:$0xff]
    %v2967 = vld [vmem:[%s3 + $0x170] sm:$0xff]
    %v2968 = vld [vmem:[%s3 + $0x178] sm:$0xff]
    %v2969 = vld [vmem:[%s3 + $0x180] sm:$0xff]
    %v2970 = vld [vmem:[%s3 + $0x188] sm:$0xff]
    %v2971 = vld [vmem:[%s3 + $0x190] sm:$0xff]
    %v2972 = vld [vmem:[%s3 + $0x198] sm:$0xff]
    %v2973 = vld [vmem:[%s3 + $0x1a0] sm:$0xff]
    %v2974 = vld [vmem:[%s3 + $0x1a8] sm:$0xff]
    %v2975 = vld [vmem:[%s3 + $0x1b0] sm:$0xff]
    %v2976 = vld [vmem:[%s3 + $0x1b8] sm:$0xff]
    %v2977 = vld [vmem:[%s3 + $0x1c0] sm:$0xff]
    %v2978 = vld [vmem:[%s3 + $0x1c8] sm:$0xff]
    %v2979 = vld [vmem:[%s3 + $0x1d0] sm:$0xff]
    %v2980 = vld [vmem:[%s3 + $0x1d8] sm:$0xff]
    %v2981 = vld [vmem:[%s3 + $0x1e0] sm:$0xff]
    %v2982 = vld [vmem:[%s3 + $0x1e8] sm:$0xff]
    %v2983 = vld [vmem:[%s3 + $0x1f0] sm:$0xff]
    %v2984 = vld [vmem:[%s3 + $0x1f8] sm:$0xff]
    %v2985 = vld [vmem:[%s3 + $0x200] sm:$0xff]
    %v2986 = vld [vmem:[%s3 + $0x208] sm:$0xff]
    %v2987 = vld [vmem:[%s3 + $0x210] sm:$0xff]
    %v2988 = vld [vmem:[%s3 + $0x218] sm:$0xff]
    %v2989 = vld [vmem:[%s3 + $0x220] sm:$0xff]
    %v2990 = vld [vmem:[%s3 + $0x228] sm:$0xff]
    %v2991 = vld [vmem:[%s3 + $0x230] sm:$0xff]
    %v2992 = vld [vmem:[%s3 + $0x238] sm:$0xff]
    %v2993 = vld [vmem:[%s3 + $0x240] sm:$0xff]
    %v2994 = vld [vmem:[%s3 + $0x248] sm:$0xff]
    %v2995 = vld [vmem:[%s3 + $0x250] sm:$0xff]
    %v2996 = vld [vmem:[%s3 + $0x258] sm:$0xff]
    %v2997 = vld [vmem:[%s3 + $0x260] sm:$0xff]
    %v2998 = vld [vmem:[%s3 + $0x268] sm:$0xff]
    %v2999 = vld [vmem:[%s3 + $0x270] sm:$0xff]
    %v3000 = vld [vmem:[%s3 + $0x278] sm:$0xff]
    %v3001 = vld [vmem:[%s3 + $0x280] sm:$0xff]
    %v3002 = vld [vmem:[%s3 + $0x288] sm:$0xff]
    %v3003 = vld [vmem:[%s3 + $0x290] sm:$0xff]
    %v3004 = vld [vmem:[%s3 + $0x298] sm:$0xff]
    %v3005 = vld [vmem:[%s3 + $0x2a0] sm:$0xff]
    %v3006 = vld [vmem:[%s3 + $0x2a8] sm:$0xff]
    %v3007 = vld [vmem:[%s3 + $0x2b0] sm:$0xff]
    %v3008 = vld [vmem:[%s3 + $0x2b8] sm:$0xff]
    %v3009 = vld [vmem:[%s3 + $0x2c0] sm:$0xff]
    %v3010 = vld [vmem:[%s3 + $0x2c8] sm:$0xff]
    %v3011 = vld [vmem:[%s3 + $0x2d0] sm:$0xff]
    %v3012 = vld [vmem:[%s3 + $0x2d8] sm:$0xff]
    %v3013 = vld [vmem:[%s3 + $0x2e0] sm:$0xff]
    %v3014 = vld [vmem:[%s3 + $0x2e8] sm:$0xff]
    %v3015 = vld [vmem:[%s3 + $0x2f0] sm:$0xff]
    %v3016 = vld [vmem:[%s3 + $0x2f8] sm:$0xff]
    %v3017 = vld [vmem:[%s3 + $0x300] sm:$0xff]
    %v3018 = vld [vmem:[%s3 + $0x308] sm:$0xff]
    %v3019 = vld [vmem:[%s3 + $0x310] sm:$0xff]
    %v3020 = vld [vmem:[%s3 + $0x318] sm:$0xff]
    %v3021 = vld [vmem:[%s3 + $0x320] sm:$0xff]
    %v3022 = vld [vmem:[%s3 + $0x328] sm:$0xff]
    %v3023 = vld [vmem:[%s3 + $0x330] sm:$0xff]
    %v3024 = vld [vmem:[%s3 + $0x338] sm:$0xff]
    %v3025 = vld [vmem:[%s3 + $0x340] sm:$0xff]
    %v3026 = vld [vmem:[%s3 + $0x348] sm:$0xff]
    %v3027 = vld [vmem:[%s3 + $0x350] sm:$0xff]
    %v3028 = vld [vmem:[%s3 + $0x358] sm:$0xff]
    %v3029 = vld [vmem:[%s3 + $0x360] sm:$0xff]
    %v3030 = vld [vmem:[%s3 + $0x368] sm:$0xff]
    %v3031 = vld [vmem:[%s3 + $0x370] sm:$0xff]
    %v3032 = vld [vmem:[%s3 + $0x378] sm:$0xff]
    %v3033 = vld [vmem:[%s3 + $0x380] sm:$0xff]
    %v3034 = vld [vmem:[%s3 + $0x388] sm:$0xff]
    %v3035 = vld [vmem:[%s3 + $0x390] sm:$0xff]
    %v3036 = vld [vmem:[%s3 + $0x398] sm:$0xff]
    %v3037 = vld [vmem:[%s3 + $0x3a0] sm:$0xff]
    %v3038 = vld [vmem:[%s3 + $0x3a8] sm:$0xff]
    %v3039 = vld [vmem:[%s3 + $0x3b0] sm:$0xff]
    %v3040 = vld [vmem:[%s3 + $0x3b8] sm:$0xff]
    %v3041 = vld [vmem:[%s3 + $0x3c0] sm:$0xff]
    %v3042 = vld [vmem:[%s3 + $0x3c8] sm:$0xff]
    %v3043 = vld [vmem:[%s3 + $0x3d0] sm:$0xff]
    %v3044 = vld [vmem:[%s3 + $0x3d8] sm:$0xff]
    %v3045 = vld [vmem:[%s3 + $0x3e0] sm:$0xff]
    %v3046 = vld [vmem:[%s3 + $0x3e8] sm:$0xff]
    %v3047 = vld [vmem:[%s3 + $0x3f0] sm:$0xff]
    %v3048 = vld [vmem:[%s3 + $0x3f8] sm:$0xff]
    %v3049 = vld [vmem:[%s4] sm:$0x3]
    %v3051 = vlaneseq
    %v3052 = vshrl.u32 %v3051, 7
    %v3053 = vsub.s32 0, %v3052
    %v3054 = vrot.slane %v3049, %v3053
    %v3055 = vlaneseq
    %v3056 = vshrl.u32 %v3055, 7
    %v3057 = vsub.s32 1, %v3056
    %v3058 = vrot.slane %v3049, %v3057
    %v3189 = vunpack.c.l.b16 %v2921
    %v3190 = vunpack.c.h.b16 %v2921
    %v3191 = vunpack.c.l.b16 %v2922
    %v3192 = vunpack.c.h.b16 %v2922
    %v3193 = vunpack.c.l.b16 %v2923
    %v3194 = vunpack.c.h.b16 %v2923
    %v3195 = vunpack.c.l.b16 %v2924
    %v3196 = vunpack.c.h.b16 %v2924
    %v3197 = vunpack.c.l.b16 %v2925
    %v3198 = vunpack.c.h.b16 %v2925
    %v3199 = vunpack.c.l.b16 %v2926
    %v3200 = vunpack.c.h.b16 %v2926
    %v3201 = vunpack.c.l.b16 %v2927
    %v3202 = vunpack.c.h.b16 %v2927
    %v3203 = vunpack.c.l.b16 %v2928
    %v3204 = vunpack.c.h.b16 %v2928
    %v3205 = vunpack.c.l.b16 %v2929
    %v3206 = vunpack.c.h.b16 %v2929
    %v3207 = vunpack.c.l.b16 %v2930
    %v3208 = vunpack.c.h.b16 %v2930
    %v3209 = vunpack.c.l.b16 %v2931
    %v3210 = vunpack.c.h.b16 %v2931
    %v3211 = vunpack.c.l.b16 %v2932
    %v3212 = vunpack.c.h.b16 %v2932
    %v3213 = vunpack.c.l.b16 %v2933
    %v3214 = vunpack.c.h.b16 %v2933
    %v3215 = vunpack.c.l.b16 %v2934
    %v3216 = vunpack.c.h.b16 %v2934
    %v3217 = vunpack.c.l.b16 %v2935
    %v3218 = vunpack.c.h.b16 %v2935
    %v3219 = vunpack.c.l.b16 %v2936
    %v3220 = vunpack.c.h.b16 %v2936
    %v3221 = vunpack.c.l.b16 %v2937
    %v3222 = vunpack.c.h.b16 %v2937
    %v3223 = vunpack.c.l.b16 %v2938
    %v3224 = vunpack.c.h.b16 %v2938
    %v3225 = vunpack.c.l.b16 %v2939
    %v3226 = vunpack.c.h.b16 %v2939
    %v3227 = vunpack.c.l.b16 %v2940
    %v3228 = vunpack.c.h.b16 %v2940
    %v3229 = vunpack.c.l.b16 %v2941
    %v3230 = vunpack.c.h.b16 %v2941
    %v3231 = vunpack.c.l.b16 %v2942
    %v3232 = vunpack.c.h.b16 %v2942
    %v3233 = vunpack.c.l.b16 %v2943
    %v3234 = vunpack.c.h.b16 %v2943
    %v3235 = vunpack.c.l.b16 %v2944
    %v3236 = vunpack.c.h.b16 %v2944
    %v3237 = vunpack.c.l.b16 %v2945
    %v3238 = vunpack.c.h.b16 %v2945
    %v3239 = vunpack.c.l.b16 %v2946
    %v3240 = vunpack.c.h.b16 %v2946
    %v3241 = vunpack.c.l.b16 %v2947
    %v3242 = vunpack.c.h.b16 %v2947
    %v3243 = vunpack.c.l.b16 %v2948
    %v3244 = vunpack.c.h.b16 %v2948
    %v3245 = vunpack.c.l.b16 %v2949
    %v3246 = vunpack.c.h.b16 %v2949
    %v3247 = vunpack.c.l.b16 %v2950
    %v3248 = vunpack.c.h.b16 %v2950
    %v3249 = vunpack.c.l.b16 %v2951
    %v3250 = vunpack.c.h.b16 %v2951
    %v3251 = vunpack.c.l.b16 %v2952
    %v3252 = vunpack.c.h.b16 %v2952
    %v3253 = vunpack.c.l.b16 %v2953
    %v3254 = vunpack.c.h.b16 %v2953
    %v3255 = vunpack.c.l.b16 %v2954
    %v3256 = vunpack.c.h.b16 %v2954
    %v3257 = vunpack.c.l.b16 %v2955
    %v3258 = vunpack.c.h.b16 %v2955
    %v3259 = vunpack.c.l.b16 %v2956
    %v3260 = vunpack.c.h.b16 %v2956
    %v3261 = vunpack.c.l.b16 %v2957
    %v3262 = vunpack.c.h.b16 %v2957
    %v3263 = vunpack.c.l.b16 %v2958
    %v3264 = vunpack.c.h.b16 %v2958
    %v3265 = vunpack.c.l.b16 %v2959
    %v3266 = vunpack.c.h.b16 %v2959
    %v3267 = vunpack.c.l.b16 %v2960
    %v3268 = vunpack.c.h.b16 %v2960
    %v3269 = vunpack.c.l.b16 %v2961
    %v3270 = vunpack.c.h.b16 %v2961
    %v3271 = vunpack.c.l.b16 %v2962
    %v3272 = vunpack.c.h.b16 %v2962
    %v3273 = vunpack.c.l.b16 %v2963
    %v3274 = vunpack.c.h.b16 %v2963
    %v3275 = vunpack.c.l.b16 %v2964
    %v3276 = vunpack.c.h.b16 %v2964
    %v3277 = vunpack.c.l.b16 %v2965
    %v3278 = vunpack.c.h.b16 %v2965
    %v3279 = vunpack.c.l.b16 %v2966
    %v3280 = vunpack.c.h.b16 %v2966
    %v3281 = vunpack.c.l.b16 %v2967
    %v3282 = vunpack.c.h.b16 %v2967
    %v3283 = vunpack.c.l.b16 %v2968
    %v3284 = vunpack.c.h.b16 %v2968
    %v3285 = vunpack.c.l.b16 %v2969
    %v3286 = vunpack.c.h.b16 %v2969
    %v3287 = vunpack.c.l.b16 %v2970
    %v3288 = vunpack.c.h.b16 %v2970
    %v3289 = vunpack.c.l.b16 %v2971
    %v3290 = vunpack.c.h.b16 %v2971
    %v3291 = vunpack.c.l.b16 %v2972
    %v3292 = vunpack.c.h.b16 %v2972
    %v3293 = vunpack.c.l.b16 %v2973
    %v3294 = vunpack.c.h.b16 %v2973
    %v3295 = vunpack.c.l.b16 %v2974
    %v3296 = vunpack.c.h.b16 %v2974
    %v3297 = vunpack.c.l.b16 %v2975
    %v3298 = vunpack.c.h.b16 %v2975
    %v3299 = vunpack.c.l.b16 %v2976
    %v3300 = vunpack.c.h.b16 %v2976
    %v3301 = vunpack.c.l.b16 %v2977
    %v3302 = vunpack.c.h.b16 %v2977
    %v3303 = vunpack.c.l.b16 %v2978
    %v3304 = vunpack.c.h.b16 %v2978
    %v3305 = vunpack.c.l.b16 %v2979
    %v3306 = vunpack.c.h.b16 %v2979
    %v3307 = vunpack.c.l.b16 %v2980
    %v3308 = vunpack.c.h.b16 %v2980
    %v3309 = vunpack.c.l.b16 %v2981
    %v3310 = vunpack.c.h.b16 %v2981
    %v3311 = vunpack.c.l.b16 %v2982
    %v3312 = vunpack.c.h.b16 %v2982
    %v3313 = vunpack.c.l.b16 %v2983
    %v3314 = vunpack.c.h.b16 %v2983
    %v3315 = vunpack.c.l.b16 %v2984
    %v3316 = vunpack.c.h.b16 %v2984
    %v3317 = vunpack.c.l.b16 %v2985
    %v3318 = vunpack.c.h.b16 %v2985
    %v3319 = vunpack.c.l.b16 %v2986
    %v3320 = vunpack.c.h.b16 %v2986
    %v3321 = vunpack.c.l.b16 %v2987
    %v3322 = vunpack.c.h.b16 %v2987
    %v3323 = vunpack.c.l.b16 %v2988
    %v3324 = vunpack.c.h.b16 %v2988
    %v3325 = vunpack.c.l.b16 %v2989
    %v3326 = vunpack.c.h.b16 %v2989
    %v3327 = vunpack.c.l.b16 %v2990
    %v3328 = vunpack.c.h.b16 %v2990
    %v3329 = vunpack.c.l.b16 %v2991
    %v3330 = vunpack.c.h.b16 %v2991
    %v3331 = vunpack.c.l.b16 %v2992
    %v3332 = vunpack.c.h.b16 %v2992
    %v3333 = vunpack.c.l.b16 %v2993
    %v3334 = vunpack.c.h.b16 %v2993
    %v3335 = vunpack.c.l.b16 %v2994
    %v3336 = vunpack.c.h.b16 %v2994
    %v3337 = vunpack.c.l.b16 %v2995
    %v3338 = vunpack.c.h.b16 %v2995
    %v3339 = vunpack.c.l.b16 %v2996
    %v3340 = vunpack.c.h.b16 %v2996
    %v3341 = vunpack.c.l.b16 %v2997
    %v3342 = vunpack.c.h.b16 %v2997
    %v3343 = vunpack.c.l.b16 %v2998
    %v3344 = vunpack.c.h.b16 %v2998
    %v3345 = vunpack.c.l.b16 %v2999
    %v3346 = vunpack.c.h.b16 %v2999
    %v3347 = vunpack.c.l.b16 %v3000
    %v3348 = vunpack.c.h.b16 %v3000
    %v3349 = vunpack.c.l.b16 %v3001
    %v3350 = vunpack.c.h.b16 %v3001
    %v3351 = vunpack.c.l.b16 %v3002
    %v3352 = vunpack.c.h.b16 %v3002
    %v3353 = vunpack.c.l.b16 %v3003
    %v3354 = vunpack.c.h.b16 %v3003
    %v3355 = vunpack.c.l.b16 %v3004
    %v3356 = vunpack.c.h.b16 %v3004
    %v3357 = vunpack.c.l.b16 %v3005
    %v3358 = vunpack.c.h.b16 %v3005
    %v3359 = vunpack.c.l.b16 %v3006
    %v3360 = vunpack.c.h.b16 %v3006
    %v3361 = vunpack.c.l.b16 %v3007
    %v3362 = vunpack.c.h.b16 %v3007
    %v3363 = vunpack.c.l.b16 %v3008
    %v3364 = vunpack.c.h.b16 %v3008
    %v3365 = vunpack.c.l.b16 %v3009
    %v3366 = vunpack.c.h.b16 %v3009
    %v3367 = vunpack.c.l.b16 %v3010
    %v3368 = vunpack.c.h.b16 %v3010
    %v3369 = vunpack.c.l.b16 %v3011
    %v3370 = vunpack.c.h.b16 %v3011
    %v3371 = vunpack.c.l.b16 %v3012
    %v3372 = vunpack.c.h.b16 %v3012
    %v3373 = vunpack.c.l.b16 %v3013
    %v3374 = vunpack.c.h.b16 %v3013
    %v3375 = vunpack.c.l.b16 %v3014
    %v3376 = vunpack.c.h.b16 %v3014
    %v3377 = vunpack.c.l.b16 %v3015
    %v3378 = vunpack.c.h.b16 %v3015
    %v3379 = vunpack.c.l.b16 %v3016
    %v3380 = vunpack.c.h.b16 %v3016
    %v3381 = vunpack.c.l.b16 %v3017
    %v3382 = vunpack.c.h.b16 %v3017
    %v3383 = vunpack.c.l.b16 %v3018
    %v3384 = vunpack.c.h.b16 %v3018
    %v3385 = vunpack.c.l.b16 %v3019
    %v3386 = vunpack.c.h.b16 %v3019
    %v3387 = vunpack.c.l.b16 %v3020
    %v3388 = vunpack.c.h.b16 %v3020
    %v3389 = vunpack.c.l.b16 %v3021
    %v3390 = vunpack.c.h.b16 %v3021
    %v3391 = vunpack.c.l.b16 %v3022
    %v3392 = vunpack.c.h.b16 %v3022
    %v3393 = vunpack.c.l.b16 %v3023
    %v3394 = vunpack.c.h.b16 %v3023
    %v3395 = vunpack.c.l.b16 %v3024
    %v3396 = vunpack.c.h.b16 %v3024
    %v3397 = vunpack.c.l.b16 %v3025
    %v3398 = vunpack.c.h.b16 %v3025
    %v3399 = vunpack.c.l.b16 %v3026
    %v3400 = vunpack.c.h.b16 %v3026
    %v3401 = vunpack.c.l.b16 %v3027
    %v3402 = vunpack.c.h.b16 %v3027
    %v3403 = vunpack.c.l.b16 %v3028
    %v3404 = vunpack.c.h.b16 %v3028
    %v3405 = vunpack.c.l.b16 %v3029
    %v3406 = vunpack.c.h.b16 %v3029
    %v3407 = vunpack.c.l.b16 %v3030
    %v3408 = vunpack.c.h.b16 %v3030
    %v3409 = vunpack.c.l.b16 %v3031
    %v3410 = vunpack.c.h.b16 %v3031
    %v3411 = vunpack.c.l.b16 %v3032
    %v3412 = vunpack.c.h.b16 %v3032
    %v3413 = vunpack.c.l.b16 %v3033
    %v3414 = vunpack.c.h.b16 %v3033
    %v3415 = vunpack.c.l.b16 %v3034
    %v3416 = vunpack.c.h.b16 %v3034
    %v3417 = vunpack.c.l.b16 %v3035
    %v3418 = vunpack.c.h.b16 %v3035
    %v3419 = vunpack.c.l.b16 %v3036
    %v3420 = vunpack.c.h.b16 %v3036
    %v3421 = vunpack.c.l.b16 %v3037
    %v3422 = vunpack.c.h.b16 %v3037
    %v3423 = vunpack.c.l.b16 %v3038
    %v3424 = vunpack.c.h.b16 %v3038
    %v3425 = vunpack.c.l.b16 %v3039
    %v3426 = vunpack.c.h.b16 %v3039
    %v3427 = vunpack.c.l.b16 %v3040
    %v3428 = vunpack.c.h.b16 %v3040
    %v3429 = vunpack.c.l.b16 %v3041
    %v3430 = vunpack.c.h.b16 %v3041
    %v3431 = vunpack.c.l.b16 %v3042
    %v3432 = vunpack.c.h.b16 %v3042
    %v3433 = vunpack.c.l.b16 %v3043
    %v3434 = vunpack.c.h.b16 %v3043
    %v3435 = vunpack.c.l.b16 %v3044
    %v3436 = vunpack.c.h.b16 %v3044
    %v3437 = vunpack.c.l.b16 %v3045
    %v3438 = vunpack.c.h.b16 %v3045
    %v3439 = vunpack.c.l.b16 %v3046
    %v3440 = vunpack.c.h.b16 %v3046
    %v3441 = vunpack.c.l.b16 %v3047
    %v3442 = vunpack.c.h.b16 %v3047
    %v3443 = vunpack.c.l.b16 %v3048
    %v3444 = vunpack.c.h.b16 %v3048
    %v3445 = vpack.c.b16 %v3191, %v3189
    %v3446 = vpack.c.b16 %v3192, %v3190
    %v3447 = vpack.c.b16 %v3195, %v3193
    %v3448 = vpack.c.b16 %v3196, %v3194
    %v3449 = vpack.c.b16 %v3199, %v3197
    %v3450 = vpack.c.b16 %v3200, %v3198
    %v3451 = vpack.c.b16 %v3203, %v3201
    %v3452 = vpack.c.b16 %v3204, %v3202
    %v3453 = vpack.c.b16 %v3207, %v3205
    %v3454 = vpack.c.b16 %v3208, %v3206
    %v3455 = vpack.c.b16 %v3211, %v3209
    %v3456 = vpack.c.b16 %v3212, %v3210
    %v3457 = vpack.c.b16 %v3215, %v3213
    %v3458 = vpack.c.b16 %v3216, %v3214
    %v3459 = vpack.c.b16 %v3219, %v3217
    %v3460 = vpack.c.b16 %v3220, %v3218
    %v3461 = vpack.c.b16 %v3223, %v3221
    %v3462 = vpack.c.b16 %v3224, %v3222
    %v3463 = vpack.c.b16 %v3227, %v3225
    %v3464 = vpack.c.b16 %v3228, %v3226
    %v3465 = vpack.c.b16 %v3231, %v3229
    %v3466 = vpack.c.b16 %v3232, %v3230
    %v3467 = vpack.c.b16 %v3235, %v3233
    %v3468 = vpack.c.b16 %v3236, %v3234
    %v3469 = vpack.c.b16 %v3239, %v3237
    %v3470 = vpack.c.b16 %v3240, %v3238
    %v3471 = vpack.c.b16 %v3243, %v3241
    %v3472 = vpack.c.b16 %v3244, %v3242
    %v3473 = vpack.c.b16 %v3247, %v3245
    %v3474 = vpack.c.b16 %v3248, %v3246
    %v3475 = vpack.c.b16 %v3251, %v3249
    %v3476 = vpack.c.b16 %v3252, %v3250
    %v3477 = vpack.c.b16 %v3255, %v3253
    %v3478 = vpack.c.b16 %v3256, %v3254
    %v3479 = vpack.c.b16 %v3259, %v3257
    %v3480 = vpack.c.b16 %v3260, %v3258
    %v3481 = vpack.c.b16 %v3263, %v3261
    %v3482 = vpack.c.b16 %v3264, %v3262
    %v3483 = vpack.c.b16 %v3267, %v3265
    %v3484 = vpack.c.b16 %v3268, %v3266
    %v3485 = vpack.c.b16 %v3271, %v3269
    %v3486 = vpack.c.b16 %v3272, %v3270
    %v3487 = vpack.c.b16 %v3275, %v3273
    %v3488 = vpack.c.b16 %v3276, %v3274
    %v3489 = vpack.c.b16 %v3279, %v3277
    %v3490 = vpack.c.b16 %v3280, %v3278
    %v3491 = vpack.c.b16 %v3283, %v3281
    %v3492 = vpack.c.b16 %v3284, %v3282
    %v3493 = vpack.c.b16 %v3287, %v3285
    %v3494 = vpack.c.b16 %v3288, %v3286
    %v3495 = vpack.c.b16 %v3291, %v3289
    %v3496 = vpack.c.b16 %v3292, %v3290
    %v3497 = vpack.c.b16 %v3295, %v3293
    %v3498 = vpack.c.b16 %v3296, %v3294
    %v3499 = vpack.c.b16 %v3299, %v3297
    %v3500 = vpack.c.b16 %v3300, %v3298
    %v3501 = vpack.c.b16 %v3303, %v3301
    %v3502 = vpack.c.b16 %v3304, %v3302
    %v3503 = vpack.c.b16 %v3307, %v3305
    %v3504 = vpack.c.b16 %v3308, %v3306
    %v3505 = vpack.c.b16 %v3311, %v3309
    %v3506 = vpack.c.b16 %v3312, %v3310
    %v3507 = vpack.c.b16 %v3315, %v3313
    %v3508 = vpack.c.b16 %v3316, %v3314
    %v3509 = vpack.c.b16 %v3319, %v3317
    %v3510 = vpack.c.b16 %v3320, %v3318
    %v3511 = vpack.c.b16 %v3323, %v3321
    %v3512 = vpack.c.b16 %v3324, %v3322
    %v3513 = vpack.c.b16 %v3327, %v3325
    %v3514 = vpack.c.b16 %v3328, %v3326
    %v3515 = vpack.c.b16 %v3331, %v3329
    %v3516 = vpack.c.b16 %v3332, %v3330
    %v3517 = vpack.c.b16 %v3335, %v3333
    %v3518 = vpack.c.b16 %v3336, %v3334
    %v3519 = vpack.c.b16 %v3339, %v3337
    %v3520 = vpack.c.b16 %v3340, %v3338
    %v3521 = vpack.c.b16 %v3343, %v3341
    %v3522 = vpack.c.b16 %v3344, %v3342
    %v3523 = vpack.c.b16 %v3347, %v3345
    %v3524 = vpack.c.b16 %v3348, %v3346
    %v3525 = vpack.c.b16 %v3351, %v3349
    %v3526 = vpack.c.b16 %v3352, %v3350
    %v3527 = vpack.c.b16 %v3355, %v3353
    %v3528 = vpack.c.b16 %v3356, %v3354
    %v3529 = vpack.c.b16 %v3359, %v3357
    %v3530 = vpack.c.b16 %v3360, %v3358
    %v3531 = vpack.c.b16 %v3363, %v3361
    %v3532 = vpack.c.b16 %v3364, %v3362
    %v3533 = vpack.c.b16 %v3367, %v3365
    %v3534 = vpack.c.b16 %v3368, %v3366
    %v3535 = vpack.c.b16 %v3371, %v3369
    %v3536 = vpack.c.b16 %v3372, %v3370
    %v3537 = vpack.c.b16 %v3375, %v3373
    %v3538 = vpack.c.b16 %v3376, %v3374
    %v3539 = vpack.c.b16 %v3379, %v3377
    %v3540 = vpack.c.b16 %v3380, %v3378
    %v3541 = vpack.c.b16 %v3383, %v3381
    %v3542 = vpack.c.b16 %v3384, %v3382
    %v3543 = vpack.c.b16 %v3387, %v3385
    %v3544 = vpack.c.b16 %v3388, %v3386
    %v3545 = vpack.c.b16 %v3391, %v3389
    %v3546 = vpack.c.b16 %v3392, %v3390
    %v3547 = vpack.c.b16 %v3395, %v3393
    %v3548 = vpack.c.b16 %v3396, %v3394
    %v3549 = vpack.c.b16 %v3399, %v3397
    %v3550 = vpack.c.b16 %v3400, %v3398
    %v3551 = vpack.c.b16 %v3403, %v3401
    %v3552 = vpack.c.b16 %v3404, %v3402
    %v3553 = vpack.c.b16 %v3407, %v3405
    %v3554 = vpack.c.b16 %v3408, %v3406
    %v3555 = vpack.c.b16 %v3411, %v3409
    %v3556 = vpack.c.b16 %v3412, %v3410
    %v3557 = vpack.c.b16 %v3415, %v3413
    %v3558 = vpack.c.b16 %v3416, %v3414
    %v3559 = vpack.c.b16 %v3419, %v3417
    %v3560 = vpack.c.b16 %v3420, %v3418
    %v3561 = vpack.c.b16 %v3423, %v3421
    %v3562 = vpack.c.b16 %v3424, %v3422
    %v3563 = vpack.c.b16 %v3427, %v3425
    %v3564 = vpack.c.b16 %v3428, %v3426
    %v3565 = vpack.c.b16 %v3431, %v3429
    %v3566 = vpack.c.b16 %v3432, %v3430
    %v3567 = vpack.c.b16 %v3435, %v3433
    %v3568 = vpack.c.b16 %v3436, %v3434
    %v3569 = vpack.c.b16 %v3439, %v3437
    %v3570 = vpack.c.b16 %v3440, %v3438
    %v3571 = vpack.c.b16 %v3443, %v3441
    %v3572 = vpack.c.b16 %v3444, %v3442
    %3701 = vmatprep.subr.bf16.mxu0 %v3446
    %3702 = vmatpush1.bf16.msra.mxu0 %v3445
    %3703 = vmatprep.subr.bf16.mxu0 %v3448
    %3704 = vmatpush1.bf16.msra.mxu0 %v3447
    %3705 = vmatprep.subr.bf16.mxu0 %v3450
    %3706 = vmatpush1.bf16.msra.mxu0 %v3449
    %3707 = vmatprep.subr.bf16.mxu0 %v3452
    %3708 = vmatpush1.bf16.msra.mxu0 %v3451
    %3709 = vmatprep.subr.bf16.mxu0 %v3454
    %3710 = vmatpush1.bf16.msra.mxu0 %v3453
    %3711 = vmatprep.subr.bf16.mxu0 %v3456
    %3712 = vmatpush1.bf16.msra.mxu0 %v3455
    %3713 = vmatprep.subr.bf16.mxu0 %v3458
    %3714 = vmatpush1.bf16.msra.mxu0 %v3457
    %3715 = vmatprep.subr.bf16.mxu0 %v3460
    %3716 = vmatpush1.bf16.msra.mxu0 %v3459
    %3717 = vmatprep.subr.bf16.mxu0 %v3462
    %3718 = vmatpush1.bf16.msra.mxu0 %v3461
    %3719 = vmatprep.subr.bf16.mxu0 %v3464
    %3720 = vmatpush1.bf16.msra.mxu0 %v3463
    %3721 = vmatprep.subr.bf16.mxu0 %v3466
    %3722 = vmatpush1.bf16.msra.mxu0 %v3465
    %3723 = vmatprep.subr.bf16.mxu0 %v3468
    %3724 = vmatpush1.bf16.msra.mxu0 %v3467
    %3725 = vmatprep.subr.bf16.mxu0 %v3470
    %3726 = vmatpush1.bf16.msra.mxu0 %v3469
    %3727 = vmatprep.subr.bf16.mxu0 %v3472
    %3728 = vmatpush1.bf16.msra.mxu0 %v3471
    %3729 = vmatprep.subr.bf16.mxu0 %v3474
    %3730 = vmatpush1.bf16.msra.mxu0 %v3473
    %3731 = vmatprep.subr.bf16.mxu0 %v3476
    %3732 = vmatpush1.bf16.msra.mxu0 %v3475
    %3733 = vmatprep.mubr.bf16.mxu0 %v2914
    %3734 = vmatmul.mubr.bf16.gmra.mrb[0].mxu0 %v2913
    %v3735 = vpop.f32.mrb[0].mxu0
    %v3736 = vadd.f32 %v3054, %v3735
    %v3737 = vpop.f32.mrb[0].mxu0
    %v3738 = vadd.f32 %v3058, %v3737
    %v3739 = vpop.f32.mrb[0].mxu0
    %v3740 = vpop.f32.mrb[0].mxu0
    %3741 = vdwg.mxu0
    %3742 = vmatprep.subr.bf16.mxu0 %v3478
    %3743 = vmatpush1.bf16.msra.mxu0 %v3477
    %3744 = vmatprep.subr.bf16.mxu0 %v3480
    %3745 = vmatpush1.bf16.msra.mxu0 %v3479
    %3746 = vmatprep.subr.bf16.mxu0 %v3482
    %3747 = vmatpush1.bf16.msra.mxu0 %v3481
    %3748 = vmatprep.subr.bf16.mxu0 %v3484
    %3749 = vmatpush1.bf16.msra.mxu0 %v3483
    %3750 = vmatprep.subr.bf16.mxu0 %v3486
    %3751 = vmatpush1.bf16.msra.mxu0 %v3485
    %3752 = vmatprep.subr.bf16.mxu0 %v3488
    %3753 = vmatpush1.bf16.msra.mxu0 %v3487
    %3754 = vmatprep.subr.bf16.mxu0 %v3490
    %3755 = vmatpush1.bf16.msra.mxu0 %v3489
    %3756 = vmatprep.subr.bf16.mxu0 %v3492
    %3757 = vmatpush1.bf16.msra.mxu0 %v3491
    %3758 = vmatprep.subr.bf16.mxu0 %v3494
    %3759 = vmatpush1.bf16.msra.mxu0 %v3493
    %3760 = vmatprep.subr.bf16.mxu0 %v3496
    %3761 = vmatpush1.bf16.msra.mxu0 %v3495
    %3762 = vmatprep.subr.bf16.mxu0 %v3498
    %3763 = vmatpush1.bf16.msra.mxu0 %v3497
    %3764 = vmatprep.subr.bf16.mxu0 %v3500
    %3765 = vmatpush1.bf16.msra.mxu0 %v3499
    %3766 = vmatprep.subr.bf16.mxu0 %v3502
    %3767 = vmatpush1.bf16.msra.mxu0 %v3501
    %3768 = vmatprep.subr.bf16.mxu0 %v3504
    %3769 = vmatpush1.bf16.msra.mxu0 %v3503
    %3770 = vmatprep.subr.bf16.mxu0 %v3506
    %3771 = vmatpush1.bf16.msra.mxu0 %v3505
    %3772 = vmatprep.subr.bf16.mxu0 %v3508
    %3773 = vmatpush1.bf16.msra.mxu0 %v3507
    %3774 = vmatprep.mubr.bf16.mxu0 %v2916
    %3775 = vmatmul.mubr.bf16.gmra.mrb[0].mxu0 %v2915
    %v3776 = vpop.f32.mrb[0].mxu0
    %v3777 = vadd.f32 %v3736, %v3776
    %v3778 = vpop.f32.mrb[0].mxu0
    %v3779 = vadd.f32 %v3738, %v3778
    %v3780 = vpop.f32.mrb[0].mxu0
    %v3781 = vpop.f32.mrb[0].mxu0
    %3782 = vdwg.mxu0
    %3783 = vmatprep.subr.bf16.mxu0 %v3510
    %3784 = vmatpush1.bf16.msra.mxu0 %v3509
    %3785 = vmatprep.subr.bf16.mxu0 %v3512
    %3786 = vmatpush1.bf16.msra.mxu0 %v3511
    %3787 = vmatprep.subr.bf16.mxu0 %v3514
    %3788 = vmatpush1.bf16.msra.mxu0 %v3513
    %3789 = vmatprep.subr.bf16.mxu0 %v3516
    %3790 = vmatpush1.bf16.msra.mxu0 %v3515
    %3791 = vmatprep.subr.bf16.mxu0 %v3518
    %3792 = vmatpush1.bf16.msra.mxu0 %v3517
    %3793 = vmatprep.subr.bf16.mxu0 %v3520
    %3794 = vmatpush1.bf16.msra.mxu0 %v3519
    %3795 = vmatprep.subr.bf16.mxu0 %v3522
    %3796 = vmatpush1.bf16.msra.mxu0 %v3521
    %3797 = vmatprep.subr.bf16.mxu0 %v3524
    %3798 = vmatpush1.bf16.msra.mxu0 %v3523
    %3799 = vmatprep.subr.bf16.mxu0 %v3526
    %3800 = vmatpush1.bf16.msra.mxu0 %v3525
    %3801 = vmatprep.subr.bf16.mxu0 %v3528
    %3802 = vmatpush1.bf16.msra.mxu0 %v3527
    %3803 = vmatprep.subr.bf16.mxu0 %v3530
    %3804 = vmatpush1.bf16.msra.mxu0 %v3529
    %3805 = vmatprep.subr.bf16.mxu0 %v3532
    %3806 = vmatpush1.bf16.msra.mxu0 %v3531
    %3807 = vmatprep.subr.bf16.mxu0 %v3534
    %3808 = vmatpush1.bf16.msra.mxu0 %v3533
    %3809 = vmatprep.subr.bf16.mxu0 %v3536
    %3810 = vmatpush1.bf16.msra.mxu0 %v3535
    %3811 = vmatprep.subr.bf16.mxu0 %v3538
    %3812 = vmatpush1.bf16.msra.mxu0 %v3537
    %3813 = vmatprep.subr.bf16.mxu0 %v3540
    %3814 = vmatpush1.bf16.msra.mxu0 %v3539
    %3815 = vmatprep.mubr.bf16.mxu0 %v2918
    %3816 = vmatmul.mubr.bf16.gmra.mrb[0].mxu0 %v2917
    %v3817 = vpop.f32.mrb[0].mxu0
    %v3818 = vadd.f32 %v3777, %v3817
    %v3819 = vpop.f32.mrb[0].mxu0
    %v3820 = vadd.f32 %v3779, %v3819
    %v3821 = vpop.f32.mrb[0].mxu0
    %v3822 = vpop.f32.mrb[0].mxu0
    %3823 = vdwg.mxu0
    %3824 = vmatprep.subr.bf16.mxu0 %v3542
    %3825 = vmatpush1.bf16.msra.mxu0 %v3541
    %3826 = vmatprep.subr.bf16.mxu0 %v3544
    %3827 = vmatpush1.bf16.msra.mxu0 %v3543
    %3828 = vmatprep.subr.bf16.mxu0 %v3546
    %3829 = vmatpush1.bf16.msra.mxu0 %v3545
    %3830 = vmatprep.subr.bf16.mxu0 %v3548
    %3831 = vmatpush1.bf16.msra.mxu0 %v3547
    %3832 = vmatprep.subr.bf16.mxu0 %v3550
    %3833 = vmatpush1.bf16.msra.mxu0 %v3549
    %3834 = vmatprep.subr.bf16.mxu0 %v3552
    %3835 = vmatpush1.bf16.msra.mxu0 %v3551
    %3836 = vmatprep.subr.bf16.mxu0 %v3554
    %3837 = vmatpush1.bf16.msra.mxu0 %v3553
    %3838 = vmatprep.subr.bf16.mxu0 %v3556
    %3839 = vmatpush1.bf16.msra.mxu0 %v3555
    %3840 = vmatprep.subr.bf16.mxu0 %v3558
    %3841 = vmatpush1.bf16.msra.mxu0 %v3557
    %3842 = vmatprep.subr.bf16.mxu0 %v3560
    %3843 = vmatpush1.bf16.msra.mxu0 %v3559
    %3844 = vmatprep.subr.bf16.mxu0 %v3562
    %3845 = vmatpush1.bf16.msra.mxu0 %v3561
    %3846 = vmatprep.subr.bf16.mxu0 %v3564
    %3847 = vmatpush1.bf16.msra.mxu0 %v3563
    %3848 = vmatprep.subr.bf16.mxu0 %v3566
    %3849 = vmatpush1.bf16.msra.mxu0 %v3565
    %3850 = vmatprep.subr.bf16.mxu0 %v3568
    %3851 = vmatpush1.bf16.msra.mxu0 %v3567
    %3852 = vmatprep.subr.bf16.mxu0 %v3570
    %3853 = vmatpush1.bf16.msra.mxu0 %v3569
    %3854 = vmatprep.subr.bf16.mxu0 %v3572
    %3855 = vmatpush1.bf16.msra.mxu0 %v3571
    %3856 = vmatprep.mubr.bf16.mxu0 %v2920
    %3857 = vmatmul.mubr.bf16.gmra.mrb[0].mxu0 %v2919
    %v3858 = vpop.f32.mrb[0].mxu0
    %v3859 = vadd.f32 %v3818, %v3858
    %v3860 = vpop.f32.mrb[0].mxu0
    %v3861 = vadd.f32 %v3820, %v3860
    %v3862 = vpop.f32.mrb[0].mxu0
    %v3863 = vpop.f32.mrb[0].mxu0
    %3864 = vdwg.mxu0
    %v3865 = vmax.f32 %v3859, 0.0
    %v3866 = vmax.f32 %v3861, 0.0
    %v3867 = vpack.c.bf16 %v3865, %v3865
    %v3868 = vpack.c.bf16 %v3866, %v3866
    %v3869 = vld [vmem:[%s5] sm:$0xff]
    %v3870 = vld [vmem:[%s5 + $0x8] sm:$0xff]
    %v3871 = vld [vmem:[%s5 + $0x10] sm:$0xff]
    %v3872 = vld [vmem:[%s5 + $0x18] sm:$0xff]
    %v3873 = vld [vmem:[%s5 + $0x20] sm:$0xff]
    %v3874 = vld [vmem:[%s5 + $0x28] sm:$0xff]
    %v3875 = vld [vmem:[%s5 + $0x30] sm:$0xff]
    %v3876 = vld [vmem:[%s5 + $0x38] sm:$0xff]
    %v3877 = vld [vmem:[%s5 + $0x40] sm:$0xff]
    %v3878 = vld [vmem:[%s5 + $0x48] sm:$0xff]
    %v3879 = vld [vmem:[%s5 + $0x50] sm:$0xff]
    %v3880 = vld [vmem:[%s5 + $0x58] sm:$0xff]
    %v3881 = vld [vmem:[%s5 + $0x60] sm:$0xff]
    %v3882 = vld [vmem:[%s5 + $0x68] sm:$0xff]
    %v3883 = vld [vmem:[%s5 + $0x70] sm:$0xff]
    %v3884 = vld [vmem:[%s5 + $0x78] sm:$0xff]
    %v3885 = vld [vmem:[%s5 + $0x80] sm:$0xff]
    %v3886 = vld [vmem:[%s5 + $0x88] sm:$0xff]
    %v3887 = vld [vmem:[%s5 + $0x90] sm:$0xff]
    %v3888 = vld [vmem:[%s5 + $0x98] sm:$0xff]
    %v3889 = vld [vmem:[%s5 + $0xa0] sm:$0xff]
    %v3890 = vld [vmem:[%s5 + $0xa8] sm:$0xff]
    %v3891 = vld [vmem:[%s5 + $0xb0] sm:$0xff]
    %v3892 = vld [vmem:[%s5 + $0xb8] sm:$0xff]
    %v3893 = vld [vmem:[%s5 + $0xc0] sm:$0xff]
    %v3894 = vld [vmem:[%s5 + $0xc8] sm:$0xff]
    %v3895 = vld [vmem:[%s5 + $0xd0] sm:$0xff]
    %v3896 = vld [vmem:[%s5 + $0xd8] sm:$0xff]
    %v3897 = vld [vmem:[%s5 + $0xe0] sm:$0xff]
    %v3898 = vld [vmem:[%s5 + $0xe8] sm:$0xff]
    %v3899 = vld [vmem:[%s5 + $0xf0] sm:$0xff]
    %v3900 = vld [vmem:[%s5 + $0xf8] sm:$0xff]
    %v3901 = vld [vmem:[%s6] sm:$0x3]
    %v3903 = vlaneseq
    %v3904 = vshrl.u32 %v3903, 7
    %v3905 = vsub.s32 0, %v3904
    %v3906 = vrot.slane %v3901, %v3905
    %v3907 = vlaneseq
    %v3908 = vshrl.u32 %v3907, 7
    %v3909 = vsub.s32 1, %v3908
    %v3910 = vrot.slane %v3901, %v3909
    %v3945 = vunpack.c.l.b16 %v3869
    %v3946 = vunpack.c.h.b16 %v3869
    %v3947 = vunpack.c.l.b16 %v3870
    %v3948 = vunpack.c.h.b16 %v3870
    %v3949 = vunpack.c.l.b16 %v3871
    %v3950 = vunpack.c.h.b16 %v3871
    %v3951 = vunpack.c.l.b16 %v3872
    %v3952 = vunpack.c.h.b16 %v3872
    %v3953 = vunpack.c.l.b16 %v3873
    %v3954 = vunpack.c.h.b16 %v3873
    %v3955 = vunpack.c.l.b16 %v3874
    %v3956 = vunpack.c.h.b16 %v3874
    %v3957 = vunpack.c.l.b16 %v3875
    %v3958 = vunpack.c.h.b16 %v3875
    %v3959 = vunpack.c.l.b16 %v3876
    %v3960 = vunpack.c.h.b16 %v3876
    %v3961 = vunpack.c.l.b16 %v3877
    %v3962 = vunpack.c.h.b16 %v3877
    %v3963 = vunpack.c.l.b16 %v3878
    %v3964 = vunpack.c.h.b16 %v3878
    %v3965 = vunpack.c.l.b16 %v3879
    %v3966 = vunpack.c.h.b16 %v3879
    %v3967 = vunpack.c.l.b16 %v3880
    %v3968 = vunpack.c.h.b16 %v3880
    %v3969 = vunpack.c.l.b16 %v3881
    %v3970 = vunpack.c.h.b16 %v3881
    %v3971 = vunpack.c.l.b16 %v3882
    %v3972 = vunpack.c.h.b16 %v3882
    %v3973 = vunpack.c.l.b16 %v3883
    %v3974 = vunpack.c.h.b16 %v3883
    %v3975 = vunpack.c.l.b16 %v3884
    %v3976 = vunpack.c.h.b16 %v3884
    %v3977 = vunpack.c.l.b16 %v3885
    %v3978 = vunpack.c.h.b16 %v3885
    %v3979 = vunpack.c.l.b16 %v3886
    %v3980 = vunpack.c.h.b16 %v3886
    %v3981 = vunpack.c.l.b16 %v3887
    %v3982 = vunpack.c.h.b16 %v3887
    %v3983 = vunpack.c.l.b16 %v3888
    %v3984 = vunpack.c.h.b16 %v3888
    %v3985 = vunpack.c.l.b16 %v3889
    %v3986 = vunpack.c.h.b16 %v3889
    %v3987 = vunpack.c.l.b16 %v3890
    %v3988 = vunpack.c.h.b16 %v3890
    %v3989 = vunpack.c.l.b16 %v3891
    %v3990 = vunpack.c.h.b16 %v3891
    %v3991 = vunpack.c.l.b16 %v3892
    %v3992 = vunpack.c.h.b16 %v3892
    %v3993 = vunpack.c.l.b16 %v3893
    %v3994 = vunpack.c.h.b16 %v3893
    %v3995 = vunpack.c.l.b16 %v3894
    %v3996 = vunpack.c.h.b16 %v3894
    %v3997 = vunpack.c.l.b16 %v3895
    %v3998 = vunpack.c.h.b16 %v3895
    %v3999 = vunpack.c.l.b16 %v3896
    %v4000 = vunpack.c.h.b16 %v3896
    %v4001 = vunpack.c.l.b16 %v3897
    %v4002 = vunpack.c.h.b16 %v3897
    %v4003 = vunpack.c.l.b16 %v3898
    %v4004 = vunpack.c.h.b16 %v3898
    %v4005 = vunpack.c.l.b16 %v3899
    %v4006 = vunpack.c.h.b16 %v3899
    %v4007 = vunpack.c.l.b16 %v3900
    %v4008 = vunpack.c.h.b16 %v3900
    %v4009 = vpack.c.b16 %v3947, %v3945
    %v4010 = vpack.c.b16 %v3948, %v3946
    %v4011 = vpack.c.b16 %v3951, %v3949
    %v4012 = vpack.c.b16 %v3952, %v3950
    %v4013 = vpack.c.b16 %v3955, %v3953
    %v4014 = vpack.c.b16 %v3956, %v3954
    %v4015 = vpack.c.b16 %v3959, %v3957
    %v4016 = vpack.c.b16 %v3960, %v3958
    %v4017 = vpack.c.b16 %v3963, %v3961
    %v4018 = vpack.c.b16 %v3964, %v3962
    %v4019 = vpack.c.b16 %v3967, %v3965
    %v4020 = vpack.c.b16 %v3968, %v3966
    %v4021 = vpack.c.b16 %v3971, %v3969
    %v4022 = vpack.c.b16 %v3972, %v3970
    %v4023 = vpack.c.b16 %v3975, %v3973
    %v4024 = vpack.c.b16 %v3976, %v3974
    %v4025 = vpack.c.b16 %v3979, %v3977
    %v4026 = vpack.c.b16 %v3980, %v3978
    %v4027 = vpack.c.b16 %v3983, %v3981
    %v4028 = vpack.c.b16 %v3984, %v3982
    %v4029 = vpack.c.b16 %v3987, %v3985
    %v4030 = vpack.c.b16 %v3988, %v3986
    %v4031 = vpack.c.b16 %v3991, %v3989
    %v4032 = vpack.c.b16 %v3992, %v3990
    %v4033 = vpack.c.b16 %v3995, %v3993
    %v4034 = vpack.c.b16 %v3996, %v3994
    %v4035 = vpack.c.b16 %v3999, %v3997
    %v4036 = vpack.c.b16 %v4000, %v3998
    %v4037 = vpack.c.b16 %v4003, %v4001
    %v4038 = vpack.c.b16 %v4004, %v4002
    %v4039 = vpack.c.b16 %v4007, %v4005
    %v4040 = vpack.c.b16 %v4008, %v4006
    %4073 = vmatprep.subr.bf16.mxu0 %v4010
    %4074 = vmatpush1.bf16.msra.mxu0 %v4009
    %4075 = vmatprep.subr.bf16.mxu0 %v4012
    %4076 = vmatpush1.bf16.msra.mxu0 %v4011
    %4077 = vmatprep.subr.bf16.mxu0 %v4014
    %4078 = vmatpush1.bf16.msra.mxu0 %v4013
    %4079 = vmatprep.subr.bf16.mxu0 %v4016
    %4080 = vmatpush1.bf16.msra.mxu0 %v4015
    %4081 = vmatprep.subr.bf16.mxu0 %v4018
    %4082 = vmatpush1.bf16.msra.mxu0 %v4017
    %4083 = vmatprep.subr.bf16.mxu0 %v4020
    %4084 = vmatpush1.bf16.msra.mxu0 %v4019
    %4085 = vmatprep.subr.bf16.mxu0 %v4022
    %4086 = vmatpush1.bf16.msra.mxu0 %v4021
    %4087 = vmatprep.subr.bf16.mxu0 %v4024
    %4088 = vmatpush1.bf16.msra.mxu0 %v4023
    %4089 = vmatprep.subr.bf16.mxu0 %v4026
    %4090 = vmatpush1.bf16.msra.mxu0 %v4025
    %4091 = vmatprep.subr.bf16.mxu0 %v4028
    %4092 = vmatpush1.bf16.msra.mxu0 %v4027
    %4093 = vmatprep.subr.bf16.mxu0 %v4030
    %4094 = vmatpush1.bf16.msra.mxu0 %v4029
    %4095 = vmatprep.subr.bf16.mxu0 %v4032
    %4096 = vmatpush1.bf16.msra.mxu0 %v4031
    %4097 = vmatprep.subr.bf16.mxu0 %v4034
    %4098 = vmatpush1.bf16.msra.mxu0 %v4033
    %4099 = vmatprep.subr.bf16.mxu0 %v4036
    %4100 = vmatpush1.bf16.msra.mxu0 %v4035
    %4101 = vmatprep.subr.bf16.mxu0 %v4038
    %4102 = vmatpush1.bf16.msra.mxu0 %v4037
    %4103 = vmatprep.subr.bf16.mxu0 %v4040
    %4104 = vmatpush1.bf16.msra.mxu0 %v4039
    %4105 = vmatprep.mubr.bf16.mxu0 %v3868
    %4106 = vmatmul.mubr.bf16.gmra.mrb[0].mxu0 %v3867
    %v4107 = vpop.f32.mrb[0].mxu0
    %v4108 = vadd.f32 %v3906, %v4107
    %v4109 = vpop.f32.mrb[0].mxu0
    %v4110 = vadd.f32 %v3910, %v4109
    %v4111 = vpop.f32.mrb[0].mxu0
    %v4112 = vpop.f32.mrb[0].mxu0
    %4113 = vdwg.mxu0
    %v4114 = vmax.f32 %v4108, 0.0
    %v4115 = vmax.f32 %v4110, 0.0
    %v4116 = vpack.c.bf16 %v4114, %v4114
    %v4117 = vpack.c.bf16 %v4115, %v4115
    %v4118 = vld [vmem:[%s7] sm:$0xf]
    %v4119 = vld [vmem:[%s7 + $0x4] sm:$0xf]
    %v4120 = vld [vmem:[%s7 + $0x8] sm:$0xf]
    %v4121 = vld [vmem:[%s7 + $0xc] sm:$0xf]
    %v4122 = vld [vmem:[%s7 + $0x10] sm:$0xf]
    %v4123 = vld [vmem:[%s7 + $0x14] sm:$0xf]
    %v4124 = vld [vmem:[%s7 + $0x18] sm:$0xf]
    %v4125 = vld [vmem:[%s7 + $0x1c] sm:$0xf]
    %v4126 = vld [vmem:[%s7 + $0x20] sm:$0xf]
    %v4127 = vld [vmem:[%s7 + $0x24] sm:$0xf]
    %v4128 = vld [vmem:[%s7 + $0x28] sm:$0xf]
    %v4129 = vld [vmem:[%s7 + $0x2c] sm:$0xf]
    %v4130 = vld [vmem:[%s7 + $0x30] sm:$0xf]
    %v4131 = vld [vmem:[%s7 + $0x34] sm:$0xf]
    %v4132 = vld [vmem:[%s7 + $0x38] sm:$0xf]
    %v4133 = vld [vmem:[%s7 + $0x3c] sm:$0xf]
    %v4134 = vld [vmem:[%s7 + $0x40] sm:$0xf]
    %v4135 = vld [vmem:[%s7 + $0x44] sm:$0xf]
    %v4136 = vld [vmem:[%s7 + $0x48] sm:$0xf]
    %v4137 = vld [vmem:[%s7 + $0x4c] sm:$0xf]
    %v4138 = vld [vmem:[%s7 + $0x50] sm:$0xf]
    %v4139 = vld [vmem:[%s7 + $0x54] sm:$0xf]
    %v4140 = vld [vmem:[%s7 + $0x58] sm:$0xf]
    %v4141 = vld [vmem:[%s7 + $0x5c] sm:$0xf]
    %v4142 = vld [vmem:[%s7 + $0x60] sm:$0xf]
    %v4143 = vld [vmem:[%s7 + $0x64] sm:$0xf]
    %v4144 = vld [vmem:[%s7 + $0x68] sm:$0xf]
    %v4145 = vld [vmem:[%s7 + $0x6c] sm:$0xf]
    %v4146 = vld [vmem:[%s7 + $0x70] sm:$0xf]
    %v4147 = vld [vmem:[%s7 + $0x74] sm:$0xf]
    %v4148 = vld [vmem:[%s7 + $0x78] sm:$0xf]
    %v4149 = vld [vmem:[%s7 + $0x7c] sm:$0xf]
    %v4150 = vld [vmem:[%s8] sm:$0x1]
    %v4152 = vlaneseq
    %v4153 = vshrl.u32 %v4152, 7
    %v4154 = vsub.s32 0, %v4153
    %v4155 = vrot.slane %v4150, %v4154
    %v4189 = vunpack.c.l.b16 %v4118
    %v4190 = vunpack.c.l.b16 %v4119
    %v4191 = vunpack.c.l.b16 %v4120
    %v4192 = vunpack.c.l.b16 %v4121
    %v4193 = vunpack.c.l.b16 %v4122
    %v4194 = vunpack.c.l.b16 %v4123
    %v4195 = vunpack.c.l.b16 %v4124
    %v4196 = vunpack.c.l.b16 %v4125
    %v4197 = vunpack.c.l.b16 %v4126
    %v4198 = vunpack.c.l.b16 %v4127
    %v4199 = vunpack.c.l.b16 %v4128
    %v4200 = vunpack.c.l.b16 %v4129
    %v4201 = vunpack.c.l.b16 %v4130
    %v4202 = vunpack.c.l.b16 %v4131
    %v4203 = vunpack.c.l.b16 %v4132
    %v4204 = vunpack.c.l.b16 %v4133
    %v4205 = vunpack.c.l.b16 %v4134
    %v4206 = vunpack.c.l.b16 %v4135
    %v4207 = vunpack.c.l.b16 %v4136
    %v4208 = vunpack.c.l.b16 %v4137
    %v4209 = vunpack.c.l.b16 %v4138
    %v4210 = vunpack.c.l.b16 %v4139
    %v4211 = vunpack.c.l.b16 %v4140
    %v4212 = vunpack.c.l.b16 %v4141
    %v4213 = vunpack.c.l.b16 %v4142
    %v4214 = vunpack.c.l.b16 %v4143
    %v4215 = vunpack.c.l.b16 %v4144
    %v4216 = vunpack.c.l.b16 %v4145
    %v4217 = vunpack.c.l.b16 %v4146
    %v4218 = vunpack.c.l.b16 %v4147
    %v4219 = vunpack.c.l.b16 %v4148
    %v4220 = vunpack.c.l.b16 %v4149
    %v4221 = vpack.c.b16 %v4190, %v4189
    %v4222 = vpack.c.b16 %v4192, %v4191
    %v4223 = vpack.c.b16 %v4194, %v4193
    %v4224 = vpack.c.b16 %v4196, %v4195
    %v4225 = vpack.c.b16 %v4198, %v4197
    %v4226 = vpack.c.b16 %v4200, %v4199
    %v4227 = vpack.c.b16 %v4202, %v4201
    %v4228 = vpack.c.b16 %v4204, %v4203
    %v4229 = vpack.c.b16 %v4206, %v4205
    %v4230 = vpack.c.b16 %v4208, %v4207
    %v4231 = vpack.c.b16 %v4210, %v4209
    %v4232 = vpack.c.b16 %v4212, %v4211
    %v4233 = vpack.c.b16 %v4214, %v4213
    %v4234 = vpack.c.b16 %v4216, %v4215
    %v4235 = vpack.c.b16 %v4218, %v4217
    %v4236 = vpack.c.b16 %v4220, %v4219
    %4253 = vmatprep.subr.bf16.mxu0 0
    %4254 = vmatpush1.bf16.msra.mxu0 %v4221
    %4255 = vmatprep.subr.bf16.mxu0 0
    %4256 = vmatpush1.bf16.msra.mxu0 %v4222
    %4257 = vmatprep.subr.bf16.mxu0 0
    %4258 = vmatpush1.bf16.msra.mxu0 %v4223
    %4259 = vmatprep.subr.bf16.mxu0 0
    %4260 = vmatpush1.bf16.msra.mxu0 %v4224
    %4261 = vmatprep.subr.bf16.mxu0 0
    %4262 = vmatpush1.bf16.msra.mxu0 %v4225
    %4263 = vmatprep.subr.bf16.mxu0 0
    %4264 = vmatpush1.bf16.msra.mxu0 %v4226
    %4265 = vmatprep.subr.bf16.mxu0 0
    %4266 = vmatpush1.bf16.msra.mxu0 %v4227
    %4267 = vmatprep.subr.bf16.mxu0 0
    %4268 = vmatpush1.bf16.msra.mxu0 %v4228
    %4269 = vmatprep.subr.bf16.mxu0 0
    %4270 = vmatpush1.bf16.msra.mxu0 %v4229
    %4271 = vmatprep.subr.bf16.mxu0 0
    %4272 = vmatpush1.bf16.msra.mxu0 %v4230
    %4273 = vmatprep.subr.bf16.mxu0 0
    %4274 = vmatpush1.bf16.msra.mxu0 %v4231
    %4275 = vmatprep.subr.bf16.mxu0 0
    %4276 = vmatpush1.bf16.msra.mxu0 %v4232
    %4277 = vmatprep.subr.bf16.mxu0 0
    %4278 = vmatpush1.bf16.msra.mxu0 %v4233
    %4279 = vmatprep.subr.bf16.mxu0 0
    %4280 = vmatpush1.bf16.msra.mxu0 %v4234
    %4281 = vmatprep.subr.bf16.mxu0 0
    %4282 = vmatpush1.bf16.msra.mxu0 %v4235
    %4283 = vmatprep.subr.bf16.mxu0 0
    %4284 = vmatpush1.bf16.msra.mxu0 %v4236
    %4285 = vmatprep.mubr.bf16.mxu0 %v4117
    %4286 = vmatmul.mubr.bf16.gmra.mrb[0].mxu0 %v4116
    %v4287 = vpop.f32.mrb[0].mxu0
    %v4288 = vadd.f32 %v4155, %v4287
    %v4289 = vpop.f32.mrb[0].mxu0
    %v4290 = vpop.f32.mrb[0].mxu0
    %v4291 = vpop.f32.mrb[0].mxu0
    %4292 = vdwg.mxu0
    %vm4293 = vcmask 1041408
    %v4294 = vsel %vm4293, %v4288, -inf
    %4295 = vmax.xlane.f32.xlu0 %v4294
    %v4296 = vpop.xlane.xlu0 %4295
    %v4297 = vsub.f32 %v4288, %v4296
    %v4298 = vmul.f32 %v4297, 1.442695
    %v4299 = vpow.pop %v4298
    %v4300 = vsel %vm4293, %v4299, 0.0
    %4301 = vadd.xlane.f32.xlu0 %v4300
    %v4302 = vpop.xlane.xlu0 %4301
    %v4303 = vrcp.pop %v4302
    %v4304 = vmul.f32 %v4299, %v4303
    %4305 = vst [vmem:[#allocation2] sm:$0x3] %v4304
    // Predicated region
    $region38: #{_lambda_.1} parent=1 // pred_check
      _
    $region39: #{_lambda_.1} parent=1 // pred_check_branch
      %4307 = sbr.rel (0) target = $region41
    $region40: #{_lambda_.1} parent=1 // pred_region
      %s4309 = ssub.s32 32, 32
      %4310 = vsyncadd [#allocation3], %s4309
      %s4312 = sshll.u32 [#allocation2], 4
      %s4313 = int_to_ptr.vmem [resolvable:$true] %s4312
      %4315 = dma.vmem_to_hbm [thread:$0]  %s4313, 32, %s9, [#allocation3]
    $region41: #{_lambda_.1} parent=1 // pred_fallthru
      _
    // Predicated region
    $region42: #{_lambda_.1} parent=1 // pred_check
      _
    $region43: #{_lambda_.1} parent=1 // pred_check_branch
      %4317 = sbr.rel (0) target = $region45
    $region44: #{_lambda_.1} parent=1 // pred_region
      %4318 = dma.done [#allocation3], 32
    $region45: #{_lambda_.1} parent=1 // pred_fallthru
      _
    %4319 = vsyncpa [#allocation3], 1

</llo_original>
